<compile_context>
chip_gen: v6e
topology: v6e:2x2x1
jax: 0.10.0
libtpu: 0.0.40
codegen_flags: <defaults>
</compile_context>

<pallas_src>
import math
from functools import partial

import jax
import jax.numpy as jnp
from jax import lax
from jax.experimental import pallas as pl
from jax.experimental.pallas import tpu as pltpu


# ----------------------------------------------------------------------------
# exact GELU: erf via Abramowitz–Stegun 7.1.26 (max abs err ~1.5e-7 == f32 level),
# built only from exp/mul/add so it lowers cleanly in Mosaic.
# TODO(synk): switch to lax.erf once an erf lowering is guaranteed in Mosaic.
# ----------------------------------------------------------------------------
def _gelu_erf(x):
    z = x * (1.0 / math.sqrt(2.0))
    a = jnp.abs(z)
    t = 1.0 / (1.0 + 0.3275911 * a)
    poly = t * (0.254829592 + t * (-0.284496736 + t * (1.421413741
             + t * (-1.453152027 + t * 1.061405429))))
    erf_abs = 1.0 - poly * jnp.exp(-a * a)
    erf = jnp.where(z < 0.0, -erf_abs, erf_abs)
    return 0.5 * x * (1.0 + erf)


# ----------------------------------------------------------------------------
# Kernel 1: projections + conv(V) + landmarks (LN+GELU) + RBF kernels, per batch
# ----------------------------------------------------------------------------
def _fused_proj_rbf_kernel(x_ref, mask_ref, wq_ref, bq_ref, wv_ref, bv_ref,
                           wland_ref, gamma_ref, beta_ref, wconv_ref,
                           k1_ref, k2_ref, k3v_ref, convv_ref, q_scr,
                           *, nhead, head_dim, num_landmarks, ratio,
                           conv_taps, conv_pad, seq_len):
    f32 = jnp.float32
    dh, m, N = head_dim, num_landmarks, seq_len

    x = x_ref[0]            # (N, H)
    msk = mask_ref[0]       # (N, 1)

    # head-batched projections (full H-wide MXU matmuls)
    q = (jnp.dot(x, wq_ref[...], preferred_element_type=f32) + bq_ref[...]) * msk
    v = (jnp.dot(x, wv_ref[...], preferred_element_type=f32) + bv_ref[...]) * msk
    q = q * (1.0 / (float(dh) ** 0.25))   # Q / sqrt(sqrt(head_dim))
    q_scr[...] = q

    # depthwise Conv2d over the sequence (kernel=(conv,1), groups=nhead) as
    # shifted adds: roll on the sublane axis + edge masking, per-column weights.
    wc = wconv_ref[...]                                  # (conv_taps, H)
    row = lax.broadcasted_iota(jnp.int32, (N, 1), 0)
    convv = jnp.zeros(v.shape, f32)
    for k in range(conv_taps):
        s = k - conv_pad
        shifted = v if s == 0 else pltpu.roll(v, shift=(-s) % N, axis=0)
        valid = jnp.logical_and(row + s >= 0, row + s < N)
        convv = convv + jnp.where(valid, shifted, 0.0) * wc[k:k + 1, :]
    convv_ref[0] = convv

    # strided landmark gather (Conv1d kernel=stride=ratio): rows r::ratio of q
    q_strided = [q_scr[pl.ds(r, m, stride=ratio), :] for r in range(ratio)]  # (m, H)

    for h in range(nhead):
        c0 = h * dh
        q_h = q[:, c0:c0 + dh]          # (N, dh)
        v_h = v[:, c0:c0 + dh]          # (N, dh)

        # raw landmarks: sum_r q[r::ratio, head] @ Wconv1d[:, :, r]^T
        lm = jnp.zeros((m, dh), f32)
        for r in range(ratio):
            lm = lm + jnp.dot(q_strided[r][:, c0:c0 + dh], wland_ref[r],
                              preferred_element_type=f32)

        # LayerNorm + exact GELU (EUP/VPU work, hidden under the MXU matmuls)
        mu = jnp.mean(lm, axis=-1, keepdims=True)
        var = jnp.mean((lm - mu) ** 2, axis=-1, keepdims=True)
        lm = (lm - mu) * lax.rsqrt(var + 1e-5) * gamma_ref[...] + beta_ref[...]
        lm = _gelu_erf(lm)

        # RBF kernels
        qsq = jnp.sum(q_h * q_h, axis=-1, keepdims=True)       # (N, 1)
        lsq = jnp.sum(lm * lm, axis=-1, keepdims=True)          # (m, 1)
        qk = jnp.einsum('nd,md->nm', q_h, lm, preferred_element_type=f32)
        k1_h = jnp.exp(-0.5 * jnp.maximum(qsq + lsq.T - 2.0 * qk, 0.0))   # (N, m)
        ll = jnp.einsum('md,ld->ml', lm, lm, preferred_element_type=f32)
        k2_h = jnp.exp(-0.5 * jnp.maximum(lsq + lsq.T - 2.0 * ll, 0.0))   # (m, m)
        k3v_h = jnp.einsum('nm,nd->md', k1_h, v_h, preferred_element_type=f32)

        k1_ref[0, :, h * m:(h + 1) * m] = k1_h
        k2_ref[0, h] = k2_h
        k3v_ref[0, :, c0:c0 + dh] = k3v_h


# ----------------------------------------------------------------------------
# Kernel 2: per-(b,h) Newton–Schulz inverse (alpha scalar-prefetched) + output
# ----------------------------------------------------------------------------
def _newton_output_kernel(alpha_ref, k1_ref, k2_ref, k3v_ref, convv_ref, out_ref,
                          *, nhead, head_dim, num_landmarks, max_iter):
    f32 = jnp.float32
    dh, m = head_dim, num_landmarks
    alpha = alpha_ref[0]    # scalar (SMEM), global-max Newton init

    for h in range(nhead):
        P = k2_ref[0, h]                 # (m, m)
        V0 = alpha * P

        # Newton–Schulz: C = 2V - V P V, break-before-update like the reference.
        # TODO(synk): the reference couples the |C|.max() early-exit over the whole
        # (B, nhead) batch; here it is per-(b, h) (only differs on diverging matrices).
        def newton(_, carry):
            V, stopped = carry
            VP = jnp.dot(V, P, preferred_element_type=f32)
            C = 2.0 * V - jnp.dot(VP, V, preferred_element_type=f32)
            stopped = jnp.logical_or(stopped, jnp.max(jnp.abs(C)) > 10000.0)
            return (jnp.where(stopped, V, C), stopped)

        Vinv, _ = lax.fori_loop(0, max_iter, newton, (V0, jnp.asarray(False)))

        w = jnp.dot(Vinv, k3v_ref[0, :, h * dh:(h + 1) * dh],
                    preferred_element_type=f32)                  # (m, dh)
        attn_h = jnp.dot(k1_ref[0, :, h * m:(h + 1) * m], w,
                         preferred_element_type=f32)             # (N, dh)
        out_ref[0, :, h * dh:(h + 1) * dh] = (
            attn_h + convv_ref[0, :, h * dh:(h + 1) * dh])


# ----------------------------------------------------------------------------
# Wrapper
# ----------------------------------------------------------------------------
def softmax_free_attention(x, mask, params, *, num_heads, num_landmarks,
                           conv_size, max_iter=20):
    f32 = jnp.float32
    x = x.astype(f32)
    B, N, H = x.shape
    dh = H // num_heads
    m = num_landmarks
    ratio = N // m
    assert m * ratio == N and dh * num_heads == H

    mask3 = mask.astype(f32)[:, :, None]                   # (B, N, 1)
    wq, bq = params['wq'].astype(f32), params['bq'].astype(f32)   # (H,H), (1,H)
    wv, bv = params['wv'].astype(f32), params['bv'].astype(f32)
    wland = params['wland'].astype(f32)                    # (ratio, dh, dh)
    gamma = params['ln_gamma'].astype(f32).reshape(1, dh)
    beta = params['ln_beta'].astype(f32).reshape(1, dh)

    if conv_size > 0:
        wconv = params['wconv'].astype(f32)                # (nhead, conv)
        wconv_cols = jnp.repeat(wconv.T, dh, axis=1)       # (conv, H) per-column
        conv_pad = conv_size // 2
    else:
        wconv_cols = jnp.zeros((1, H), f32)
        conv_pad = 0
    conv_taps = wconv_cols.shape[0]

    cparams = pltpu.CompilerParams(dimension_semantics=("parallel",),
                                   vmem_limit_bytes=32 * 1024 * 1024)
    # TODO(synk): for large N (>= ~2048) add a sequence-tile grid axis (accumulate
    # k3v over it) so whole-N blocks do not exceed v7x's 64 MiB VMEM.

    kernel1 = partial(_fused_proj_rbf_kernel, nhead=num_heads, head_dim=dh,
                      num_landmarks=m, ratio=ratio, conv_taps=conv_taps,
                      conv_pad=conv_pad, seq_len=N)

    k1, k2, k3v, convv = pl.pallas_call(
        kernel1,
        grid=(B,),
        in_specs=[
            pl.BlockSpec((1, N, H), lambda b: (b, 0, 0)),
            pl.BlockSpec((1, N, 1), lambda b: (b, 0, 0)),
            pl.BlockSpec((H, H), lambda b: (0, 0)),
            pl.BlockSpec((1, H), lambda b: (0, 0)),
            pl.BlockSpec((H, H), lambda b: (0, 0)),
            pl.BlockSpec((1, H), lambda b: (0, 0)),
            pl.BlockSpec((ratio, dh, dh), lambda b: (0, 0, 0)),
            pl.BlockSpec((1, dh), lambda b: (0, 0)),
            pl.BlockSpec((1, dh), lambda b: (0, 0)),
            pl.BlockSpec((conv_taps, H), lambda b: (0, 0)),
        ],
        out_specs=[
            pl.BlockSpec((1, N, num_heads * m), lambda b: (b, 0, 0)),
            pl.BlockSpec((1, num_heads, m, m), lambda b: (b, 0, 0, 0)),
            pl.BlockSpec((1, m, H), lambda b: (b, 0, 0)),
            pl.BlockSpec((1, N, H), lambda b: (b, 0, 0)),
        ],
        out_shape=[
            jax.ShapeDtypeStruct((B, N, num_heads * m), f32),
            jax.ShapeDtypeStruct((B, num_heads, m, m), f32),
            jax.ShapeDtypeStruct((B, m, H), f32),
            jax.ShapeDtypeStruct((B, N, H), f32),
        ],
        scratch_shapes=[pltpu.VMEM((N, H), f32)],
        compiler_params=cparams,
    )(x, mask3, wq, bq, wv, bv, wland, gamma, beta, wconv_cols)

    # --- global-max Newton alpha on the tiny (B, nhead, m, m) k2 (plain JAX) ---
    eye = jnp.eye(m, dtype=f32)
    PP = jnp.einsum('bhij,bhjk->bhik', k2, k2)
    row_max = jnp.max(jnp.sum(k2, axis=-1))
    alpha0 = 2.0 / (row_max * row_max)

    def pnorm_of(a):
        return jnp.max(jnp.sum(jnp.abs(eye - a * PP), axis=-2))

    def cond(c):
        _, p, n = c
        return jnp.logical_and(p > 1.01, n < 10)

    def body(c):
        a, _, n = c
        a = a * 0.5
        return (a, pnorm_of(a), n + 1)

    alpha, _, _ = lax.while_loop(cond, body, (alpha0, pnorm_of(alpha0), jnp.int32(0)))
    alpha_arr = jnp.reshape(alpha, (1,)).astype(f32)

    kernel2 = partial(_newton_output_kernel, nhead=num_heads, head_dim=dh,
                      num_landmarks=m, max_iter=max_iter)

    out = pl.pallas_call(
        kernel2,
        grid_spec=pltpu.PrefetchScalarGridSpec(
            num_scalar_prefetch=1,
            grid=(B,),
            in_specs=[
                pl.BlockSpec((1, N, num_heads * m), lambda b, a: (b, 0, 0)),
                pl.BlockSpec((1, num_heads, m, m), lambda b, a: (b, 0, 0, 0)),
                pl.BlockSpec((1, m, H), lambda b, a: (b, 0, 0)),
                pl.BlockSpec((1, N, H), lambda b, a: (b, 0, 0)),
            ],
            out_specs=pl.BlockSpec((1, N, H), lambda b, a: (b, 0, 0)),
        ),
        out_shape=jax.ShapeDtypeStruct((B, N, H), f32),
        compiler_params=cparams,
    )(alpha_arr, k1, k2, k3v, convv)

    # output is already in combined-heads [B, N, H] layout — no transpose needed
    return out


# ----------------------------------------------------------------------------
if __name__ == "__main__":
    B, N, HIDDEN, NHEAD = 2, 16, 32, 4        # seq=16, hidden=32, 4 heads
    DH = HIDDEN // NHEAD                      # head_dim = 8
    M_LM = 4                                  # num_landmarks
    RATIO = N // M_LM                         # conv1d kernel/stride = 4
    CONV = 3                                  # depthwise conv kernel size
    f32 = jnp.float32

    key = jax.random.PRNGKey(0)
    ks = jax.random.split(key, 9)

    x = jax.random.normal(ks[0], (B, N, HIDDEN), f32)
    mask = jnp.ones((B, N), f32).at[1, N - 3:].set(0.0)

    # Full nn.Linear weights (stored already transposed: q = x @ wq + bq).
    wq = jax.random.normal(ks[1], (HIDDEN, HIDDEN), f32) * 0.05
    bq = jax.random.normal(ks[2], (1, HIDDEN), f32) * 0.02
    wv = jax.random.normal(ks[3], (HIDDEN, HIDDEN), f32) * 0.05
    bv = jax.random.normal(ks[4], (1, HIDDEN), f32) * 0.02

    # Conv1d landmark weight (out_ch, in_ch, ratio) -> (ratio, in_ch, out_ch)
    wconv1d = jax.random.normal(ks[5], (DH, DH, RATIO), f32) * 0.1
    wland = jnp.transpose(wconv1d, (2, 1, 0))

    # LayerNorm affine params.
    ln_gamma = 1.0 + 0.1 * jax.random.normal(ks[6], (DH,), f32)
    ln_beta = 0.05 * jax.random.normal(ks[7], (DH,), f32)

    # Depthwise Conv2d weight (nhead, 1, CONV, 1) stored as (nhead, CONV).
    wconv2d = jax.random.normal(ks[8], (NHEAD, CONV), f32) * 0.2

    params = dict(wq=wq, bq=bq, wv=wv, bv=bv, wland=wland,
                  ln_gamma=ln_gamma, ln_beta=ln_beta, wconv=wconv2d)

    out = softmax_free_attention(x, mask, params, num_heads=NHEAD,
                                 num_landmarks=M_LM, conv_size=CONV, max_iter=20)
    out = jax.block_until_ready(out)
    assert out.shape == (B, N, HIDDEN)
    assert bool(jnp.all(jnp.isfinite(out)))
    print("KERNEL_OK")
</pallas_src>

<mosaic_0001>
module attributes {stable_mosaic.version = 11 : i64} {
  func.func @_fused_proj_rbf_kernel(%arg0: i32, %arg1: memref<1x16x32xf32, #tpu.memory_space<vmem>>, %arg2: memref<1x16x1xf32, #tpu.memory_space<vmem>>, %arg3: memref<32x32xf32, #tpu.memory_space<vmem>>, %arg4: memref<1x32xf32, #tpu.memory_space<vmem>>, %arg5: memref<32x32xf32, #tpu.memory_space<vmem>>, %arg6: memref<1x32xf32, #tpu.memory_space<vmem>>, %arg7: memref<4x8x8xf32, #tpu.memory_space<vmem>>, %arg8: memref<1x8xf32, #tpu.memory_space<vmem>>, %arg9: memref<1x8xf32, #tpu.memory_space<vmem>>, %arg10: memref<3x32xf32, #tpu.memory_space<vmem>>, %arg11: memref<1x16x16xf32, #tpu.memory_space<vmem>>, %arg12: memref<1x4x4x4xf32, #tpu.memory_space<vmem>>, %arg13: memref<1x4x32xf32, #tpu.memory_space<vmem>>, %arg14: memref<1x16x32xf32, #tpu.memory_space<vmem>>, %arg15: memref<16x32xf32, #tpu.memory_space<vmem>>) attributes {dimension_semantics = [#tpu.dimension_semantics<parallel>], iteration_bounds = array<i64: 2>, scalar_prefetch = 0 : i64, scratch_operands = 1 : i64, tpu.core_type = #tpu.core_type<tc>, window_params = [{transform_indices = @transform_0, window_bounds = array<i64: 1, 16, 32>}, {transform_indices = @transform_1, window_bounds = array<i64: 1, 16, 1>}, {pipeline_mode = #tpu.pipeline_mode<synchronous>, transform_indices = @transform_2, window_bounds = array<i64: 32, 32>}, {pipeline_mode = #tpu.pipeline_mode<synchronous>, transform_indices = @transform_3, window_bounds = array<i64: 1, 32>}, {pipeline_mode = #tpu.pipeline_mode<synchronous>, transform_indices = @transform_4, window_bounds = array<i64: 32, 32>}, {pipeline_mode = #tpu.pipeline_mode<synchronous>, transform_indices = @transform_5, window_bounds = array<i64: 1, 32>}, {pipeline_mode = #tpu.pipeline_mode<synchronous>, transform_indices = @transform_6, window_bounds = array<i64: 4, 8, 8>}, {pipeline_mode = #tpu.pipeline_mode<synchronous>, transform_indices = @transform_7, window_bounds = array<i64: 1, 8>}, {pipeline_mode = #tpu.pipeline_mode<synchronous>, transform_indices = @transform_8, window_bounds = array<i64: 1, 8>}, {pipeline_mode = #tpu.pipeline_mode<synchronous>, transform_indices = @transform_9, window_bounds = array<i64: 3, 32>}, {transform_indices = @transform_10, window_bounds = array<i64: 1, 16, 16>}, {transform_indices = @transform_11, window_bounds = array<i64: 1, 4, 4, 4>}, {transform_indices = @transform_12, window_bounds = array<i64: 1, 4, 32>}, {transform_indices = @transform_13, window_bounds = array<i64: 1, 16, 32>}]} {
    %c0 = arith.constant 0 : index
    %c0_0 = arith.constant 0 : index
    %c0_1 = arith.constant 0 : index
    %0 = vector.load %arg1[%c0, %c0_0, %c0_1] : memref<1x16x32xf32, #tpu.memory_space<vmem>>, vector<1x16x32xf32>
    %1 = vector.shape_cast %0 : vector<1x16x32xf32> to vector<16x32xf32>
    %c0_2 = arith.constant 0 : index
    %c0_3 = arith.constant 0 : index
    %c0_4 = arith.constant 0 : index
    %2 = vector.load %arg2[%c0_2, %c0_3, %c0_4] : memref<1x16x1xf32, #tpu.memory_space<vmem>>, vector<1x16x1xf32>
    %3 = vector.shape_cast %2 : vector<1x16x1xf32> to vector<16x1xf32>
    %c0_5 = arith.constant 0 : index
    %c0_6 = arith.constant 0 : index
    %4 = vector.load %arg3[%c0_5, %c0_6] : memref<32x32xf32, #tpu.memory_space<vmem>>, vector<32x32xf32>
    %cst = arith.constant dense<0.000000e+00> : vector<16x32xf32>
    %5 = tpu.matmul %1, %4, %cst {dimension_numbers = #tpu.dot_dimension_numbers<[1], [0], [0], [1], [0, 0, 1, 1], [], []>} : vector<16x32xf32>, vector<32x32xf32>, vector<16x32xf32> -> vector<16x32xf32>
    %c0_7 = arith.constant 0 : index
    %c0_8 = arith.constant 0 : index
    %6 = vector.load %arg4[%c0_7, %c0_8] : memref<1x32xf32, #tpu.memory_space<vmem>>, vector<1x32xf32>
    %7 = vector.broadcast %6 : vector<1x32xf32> to vector<16x32xf32>
    %8 = arith.addf %5, %7 : vector<16x32xf32>
    %9 = vector.broadcast %3 : vector<16x1xf32> to vector<16x32xf32>
    %10 = arith.mulf %8, %9 : vector<16x32xf32>
    %c0_9 = arith.constant 0 : index
    %c0_10 = arith.constant 0 : index
    %11 = vector.load %arg5[%c0_9, %c0_10] : memref<32x32xf32, #tpu.memory_space<vmem>>, vector<32x32xf32>
    %cst_11 = arith.constant dense<0.000000e+00> : vector<16x32xf32>
    %12 = tpu.matmul %1, %11, %cst_11 {dimension_numbers = #tpu.dot_dimension_numbers<[1], [0], [0], [1], [0, 0, 1, 1], [], []>} : vector<16x32xf32>, vector<32x32xf32>, vector<16x32xf32> -> vector<16x32xf32>
    %c0_12 = arith.constant 0 : index
    %c0_13 = arith.constant 0 : index
    %13 = vector.load %arg6[%c0_12, %c0_13] : memref<1x32xf32, #tpu.memory_space<vmem>>, vector<1x32xf32>
    %14 = vector.broadcast %13 : vector<1x32xf32> to vector<16x32xf32>
    %15 = arith.addf %12, %14 : vector<16x32xf32>
    %16 = vector.broadcast %3 : vector<16x1xf32> to vector<16x32xf32>
    %17 = arith.mulf %15, %16 : vector<16x32xf32>
    %cst_14 = arith.constant 0.594603539 : f32
    %18 = vector.broadcast %cst_14 : f32 to vector<16x32xf32>
    %19 = arith.mulf %10, %18 : vector<16x32xf32>
    %c0_15 = arith.constant 0 : index
    %c0_16 = arith.constant 0 : index
    %20 = vector.load %arg15[%c0_15, %c0_16] : memref<16x32xf32, #tpu.memory_space<vmem>>, vector<16x32xf32>
    tpu.vector_store %arg15[%c0_15, %c0_16], %19 {strides = array<i32>} : memref<16x32xf32, #tpu.memory_space<vmem>>, vector<16x32xf32>,
    %c0_17 = arith.constant 0 : index
    %c0_18 = arith.constant 0 : index
    %21 = vector.load %arg10[%c0_17, %c0_18] : memref<3x32xf32, #tpu.memory_space<vmem>>, vector<3x32xf32>
    %22 = tpu.iota {dimensions = array<i32: 0>} : vector<16x1xi32>
    %cst_19 = arith.constant 0.000000e+00 : f32
    %23 = vector.broadcast %cst_19 : f32 to vector<16x32xf32>
    %c1_i32 = arith.constant 1 : i32
    %24 = tpu.dynamic_rotate %17 by %c1_i32 dim 0 : vector<16x32xf32>, i32 -> vector<16x32xf32>
    %c-1_i32 = arith.constant -1 : i32
    %25 = vector.broadcast %c-1_i32 : i32 to vector<16x1xi32>
    %26 = arith.addi %22, %25 : vector<16x1xi32>
    %c0_i32 = arith.constant 0 : i32
    %27 = vector.broadcast %c0_i32 : i32 to vector<16x1xi32>
    %28 = arith.cmpi sge, %26, %27 : vector<16x1xi32>
    %c-1_i32_20 = arith.constant -1 : i32
    %29 = vector.broadcast %c-1_i32_20 : i32 to vector<16x1xi32>
    %30 = arith.addi %22, %29 : vector<16x1xi32>
    %c16_i32 = arith.constant 16 : i32
    %31 = vector.broadcast %c16_i32 : i32 to vector<16x1xi32>
    %32 = arith.cmpi slt, %30, %31 : vector<16x1xi32>
    %33 = arith.andi %28, %32 : vector<16x1xi1>
    %cst_21 = arith.constant 0.000000e+00 : f32
    %34 = vector.shape_cast %33 : vector<16x1xi1> to vector<16x1xi1>
    %35 = vector.broadcast %34 : vector<16x1xi1> to vector<16x32xi1>
    %36 = vector.broadcast %cst_21 : f32 to vector<16x32xf32>
    %37 = arith.select %35, %24, %36 : vector<16x32xi1>, vector<16x32xf32>
    %38 = vector.extract_strided_slice %21 {offsets = [0, 0], sizes = [1, 32], strides = [1, 1]} : vector<3x32xf32> to vector<1x32xf32>
    %39 = vector.broadcast %38 : vector<1x32xf32> to vector<16x32xf32>
    %40 = arith.mulf %37, %39 : vector<16x32xf32>
    %41 = arith.addf %23, %40 : vector<16x32xf32>
    %c0_i32_22 = arith.constant 0 : i32
    %42 = vector.broadcast %c0_i32_22 : i32 to vector<16x1xi32>
    %43 = arith.addi %22, %42 : vector<16x1xi32>
    %c0_i32_23 = arith.constant 0 : i32
    %44 = vector.broadcast %c0_i32_23 : i32 to vector<16x1xi32>
    %45 = arith.cmpi sge, %43, %44 : vector<16x1xi32>
    %c0_i32_24 = arith.constant 0 : i32
    %46 = vector.broadcast %c0_i32_24 : i32 to vector<16x1xi32>
    %47 = arith.addi %22, %46 : vector<16x1xi32>
    %c16_i32_25 = arith.constant 16 : i32
    %48 = vector.broadcast %c16_i32_25 : i32 to vector<16x1xi32>
    %49 = arith.cmpi slt, %47, %48 : vector<16x1xi32>
    %50 = arith.andi %45, %49 : vector<16x1xi1>
    %cst_26 = arith.constant 0.000000e+00 : f32
    %51 = vector.shape_cast %50 : vector<16x1xi1> to vector<16x1xi1>
    %52 = vector.broadcast %51 : vector<16x1xi1> to vector<16x32xi1>
    %53 = vector.broadcast %cst_26 : f32 to vector<16x32xf32>
    %54 = arith.select %52, %17, %53 : vector<16x32xi1>, vector<16x32xf32>
    %55 = vector.extract_strided_slice %21 {offsets = [1, 0], sizes = [1, 32], strides = [1, 1]} : vector<3x32xf32> to vector<1x32xf32>
    %56 = vector.broadcast %55 : vector<1x32xf32> to vector<16x32xf32>
    %57 = arith.mulf %54, %56 : vector<16x32xf32>
    %58 = arith.addf %41, %57 : vector<16x32xf32>
    %c15_i32 = arith.constant 15 : i32
    %59 = tpu.dynamic_rotate %17 by %c15_i32 dim 0 : vector<16x32xf32>, i32 -> vector<16x32xf32>
    %c1_i32_27 = arith.constant 1 : i32
    %60 = vector.broadcast %c1_i32_27 : i32 to vector<16x1xi32>
    %61 = arith.addi %22, %60 : vector<16x1xi32>
    %c0_i32_28 = arith.constant 0 : i32
    %62 = vector.broadcast %c0_i32_28 : i32 to vector<16x1xi32>
    %63 = arith.cmpi sge, %61, %62 : vector<16x1xi32>
    %c1_i32_29 = arith.constant 1 : i32
    %64 = vector.broadcast %c1_i32_29 : i32 to vector<16x1xi32>
    %65 = arith.addi %22, %64 : vector<16x1xi32>
    %c16_i32_30 = arith.constant 16 : i32
    %66 = vector.broadcast %c16_i32_30 : i32 to vector<16x1xi32>
    %67 = arith.cmpi slt, %65, %66 : vector<16x1xi32>
    %68 = arith.andi %63, %67 : vector<16x1xi1>
    %cst_31 = arith.constant 0.000000e+00 : f32
    %69 = vector.shape_cast %68 : vector<16x1xi1> to vector<16x1xi1>
    %70 = vector.broadcast %69 : vector<16x1xi1> to vector<16x32xi1>
    %71 = vector.broadcast %cst_31 : f32 to vector<16x32xf32>
    %72 = arith.select %70, %59, %71 : vector<16x32xi1>, vector<16x32xf32>
    %73 = vector.extract_strided_slice %21 {offsets = [2, 0], sizes = [1, 32], strides = [1, 1]} : vector<3x32xf32> to vector<1x32xf32>
    %74 = vector.broadcast %73 : vector<1x32xf32> to vector<16x32xf32>
    %75 = arith.mulf %72, %74 : vector<16x32xf32>
    %76 = arith.addf %58, %75 : vector<16x32xf32>
    %c0_32 = arith.constant 0 : index
    %c0_33 = arith.constant 0 : index
    %c0_34 = arith.constant 0 : index
    %77 = vector.load %arg14[%c0_32, %c0_33, %c0_34] : memref<1x16x32xf32, #tpu.memory_space<vmem>>, vector<1x16x32xf32>
    %78 = vector.shape_cast %77 : vector<1x16x32xf32> to vector<16x32xf32>
    %79 = vector.shape_cast %76 : vector<16x32xf32> to vector<1x16x32xf32>
    tpu.vector_store %arg14[%c0_32, %c0_33, %c0_34], %79 {strides = array<i32>} : memref<1x16x32xf32, #tpu.memory_space<vmem>>, vector<1x16x32xf32>,
    %c0_35 = arith.constant 0 : index
    %c0_36 = arith.constant 0 : index
    %80 = tpu.strided_load %arg15[%c0_35, %c0_36] {strides = array<i32: 4, 1>} : memref<16x32xf32, #tpu.memory_space<vmem>>, vector<4x32xf32>
    %c1 = arith.constant 1 : index
    %c0_37 = arith.constant 0 : index
    %81 = tpu.strided_load %arg15[%c1, %c0_37] {strides = array<i32: 4, 1>} : memref<16x32xf32, #tpu.memory_space<vmem>>, vector<4x32xf32>
    %c2 = arith.constant 2 : index
    %c0_38 = arith.constant 0 : index
    %82 = tpu.strided_load %arg15[%c2, %c0_38] {strides = array<i32: 4, 1>} : memref<16x32xf32, #tpu.memory_space<vmem>>, vector<4x32xf32>
    %c3 = arith.constant 3 : index
    %c0_39 = arith.constant 0 : index
    %83 = tpu.strided_load %arg15[%c3, %c0_39] {strides = array<i32: 4, 1>} : memref<16x32xf32, #tpu.memory_space<vmem>>, vector<4x32xf32>
    %84 = vector.extract_strided_slice %19 {offsets = [0, 0], sizes = [16, 8], strides = [1, 1]} : vector<16x32xf32> to vector<16x8xf32>
    %85 = vector.extract_strided_slice %17 {offsets = [0, 0], sizes = [16, 8], strides = [1, 1]} : vector<16x32xf32> to vector<16x8xf32>
    %cst_40 = arith.constant 0.000000e+00 : f32
    %86 = vector.broadcast %cst_40 : f32 to vector<4x8xf32>
    %87 = vector.extract_strided_slice %80 {offsets = [0, 0], sizes = [4, 8], strides = [1, 1]} : vector<4x32xf32> to vector<4x8xf32>
    %c0_41 = arith.constant 0 : index
    %c0_42 = arith.constant 0 : index
    %c0_43 = arith.constant 0 : index
    %88 = vector.load %arg7[%c0_41, %c0_42, %c0_43] : memref<4x8x8xf32, #tpu.memory_space<vmem>>, vector<1x8x8xf32>
    %89 = vector.shape_cast %88 : vector<1x8x8xf32> to vector<8x8xf32>
    %cst_44 = arith.constant dense<0.000000e+00> : vector<4x8xf32>
    %90 = tpu.matmul %87, %89, %cst_44 {dimension_numbers = #tpu.dot_dimension_numbers<[1], [0], [0], [1], [0, 0, 1, 1], [], []>} : vector<4x8xf32>, vector<8x8xf32>, vector<4x8xf32> -> vector<4x8xf32>
    %91 = arith.addf %86, %90 : vector<4x8xf32>
    %92 = vector.extract_strided_slice %81 {offsets = [0, 0], sizes = [4, 8], strides = [1, 1]} : vector<4x32xf32> to vector<4x8xf32>
    %c1_45 = arith.constant 1 : index
    %c0_46 = arith.constant 0 : index
    %c0_47 = arith.constant 0 : index
    %93 = vector.load %arg7[%c1_45, %c0_46, %c0_47] : memref<4x8x8xf32, #tpu.memory_space<vmem>>, vector<1x8x8xf32>
    %94 = vector.shape_cast %93 : vector<1x8x8xf32> to vector<8x8xf32>
    %cst_48 = arith.constant dense<0.000000e+00> : vector<4x8xf32>
    %95 = tpu.matmul %92, %94, %cst_48 {dimension_numbers = #tpu.dot_dimension_numbers<[1], [0], [0], [1], [0, 0, 1, 1], [], []>} : vector<4x8xf32>, vector<8x8xf32>, vector<4x8xf32> -> vector<4x8xf32>
    %96 = arith.addf %91, %95 : vector<4x8xf32>
    %97 = vector.extract_strided_slice %82 {offsets = [0, 0], sizes = [4, 8], strides = [1, 1]} : vector<4x32xf32> to vector<4x8xf32>
    %c2_49 = arith.constant 2 : index
    %c0_50 = arith.constant 0 : index
    %c0_51 = arith.constant 0 : index
    %98 = vector.load %arg7[%c2_49, %c0_50, %c0_51] : memref<4x8x8xf32, #tpu.memory_space<vmem>>, vector<1x8x8xf32>
    %99 = vector.shape_cast %98 : vector<1x8x8xf32> to vector<8x8xf32>
    %cst_52 = arith.constant dense<0.000000e+00> : vector<4x8xf32>
    %100 = tpu.matmul %97, %99, %cst_52 {dimension_numbers = #tpu.dot_dimension_numbers<[1], [0], [0], [1], [0, 0, 1, 1], [], []>} : vector<4x8xf32>, vector<8x8xf32>, vector<4x8xf32> -> vector<4x8xf32>
    %101 = arith.addf %96, %100 : vector<4x8xf32>
    %102 = vector.extract_strided_slice %83 {offsets = [0, 0], sizes = [4, 8], strides = [1, 1]} : vector<4x32xf32> to vector<4x8xf32>
    %c3_53 = arith.constant 3 : index
    %c0_54 = arith.constant 0 : index
    %c0_55 = arith.constant 0 : index
    %103 = vector.load %arg7[%c3_53, %c0_54, %c0_55] : memref<4x8x8xf32, #tpu.memory_space<vmem>>, vector<1x8x8xf32>
    %104 = vector.shape_cast %103 : vector<1x8x8xf32> to vector<8x8xf32>
    %cst_56 = arith.constant dense<0.000000e+00> : vector<4x8xf32>
    %105 = tpu.matmul %102, %104, %cst_56 {dimension_numbers = #tpu.dot_dimension_numbers<[1], [0], [0], [1], [0, 0, 1, 1], [], []>} : vector<4x8xf32>, vector<8x8xf32>, vector<4x8xf32> -> vector<4x8xf32>
    %106 = arith.addf %101, %105 : vector<4x8xf32>
    %cst_57 = arith.constant dense<0.000000e+00> : vector<4xf32>
    %107 = vector.multi_reduction <add>, %106, %cst_57 [1] : vector<4x8xf32> to vector<4xf32>
    %108 = vector.shape_cast %107 : vector<4xf32> to vector<4x1xf32>
    %cst_58 = arith.constant 8.000000e+00 : f32
    %109 = vector.broadcast %cst_58 : f32 to vector<4x1xf32>
    %110 = arith.divf %108, %109 : vector<4x1xf32>
    %111 = vector.broadcast %110 : vector<4x1xf32> to vector<4x8xf32>
    %112 = arith.subf %106, %111 : vector<4x8xf32>
    %113 = arith.mulf %112, %112 : vector<4x8xf32>
    %cst_59 = arith.constant dense<0.000000e+00> : vector<4xf32>
    %114 = vector.multi_reduction <add>, %113, %cst_59 [1] : vector<4x8xf32> to vector<4xf32>
    %115 = vector.shape_cast %114 : vector<4xf32> to vector<4x1xf32>
    %cst_60 = arith.constant 8.000000e+00 : f32
    %116 = vector.broadcast %cst_60 : f32 to vector<4x1xf32>
    %117 = arith.divf %115, %116 : vector<4x1xf32>
    %118 = vector.broadcast %110 : vector<4x1xf32> to vector<4x8xf32>
    %119 = arith.subf %106, %118 : vector<4x8xf32>
    %cst_61 = arith.constant 9.99999974E-6 : f32
    %120 = vector.broadcast %cst_61 : f32 to vector<4x1xf32>
    %121 = arith.addf %117, %120 : vector<4x1xf32>
    %122 = math.rsqrt %121 : vector<4x1xf32>
    %123 = vector.broadcast %122 : vector<4x1xf32> to vector<4x8xf32>
    %124 = arith.mulf %119, %123 : vector<4x8xf32>
    %c0_62 = arith.constant 0 : index
    %c0_63 = arith.constant 0 : index
    %125 = vector.load %arg8[%c0_62, %c0_63] : memref<1x8xf32, #tpu.memory_space<vmem>>, vector<1x8xf32>
    %126 = vector.broadcast %125 : vector<1x8xf32> to vector<4x8xf32>
    %127 = arith.mulf %124, %126 : vector<4x8xf32>
    %c0_64 = arith.constant 0 : index
    %c0_65 = arith.constant 0 : index
    %128 = vector.load %arg9[%c0_64, %c0_65] : memref<1x8xf32, #tpu.memory_space<vmem>>, vector<1x8xf32>
    %129 = vector.broadcast %128 : vector<1x8xf32> to vector<4x8xf32>
    %130 = arith.addf %127, %129 : vector<4x8xf32>
    %cst_66 = arith.constant 0.707106769 : f32
    %131 = vector.broadcast %cst_66 : f32 to vector<4x8xf32>
    %132 = arith.mulf %130, %131 : vector<4x8xf32>
    %133 = math.absf %132 : vector<4x8xf32>
    %cst_67 = arith.constant 0.327591091 : f32
    %134 = vector.broadcast %cst_67 : f32 to vector<4x8xf32>
    %135 = arith.mulf %134, %133 : vector<4x8xf32>
    %cst_68 = arith.constant 1.000000e+00 : f32
    %136 = vector.broadcast %cst_68 : f32 to vector<4x8xf32>
    %137 = arith.addf %136, %135 : vector<4x8xf32>
    %cst_69 = arith.constant 1.000000e+00 : f32
    %138 = vector.broadcast %cst_69 : f32 to vector<4x8xf32>
    %139 = arith.divf %138, %137 : vector<4x8xf32>
    %cst_70 = arith.constant 1.06140542 : f32
    %140 = vector.broadcast %cst_70 : f32 to vector<4x8xf32>
    %141 = arith.mulf %139, %140 : vector<4x8xf32>
    %cst_71 = arith.constant -1.45315206 : f32
    %142 = vector.broadcast %cst_71 : f32 to vector<4x8xf32>
    %143 = arith.addf %142, %141 : vector<4x8xf32>
    %144 = arith.mulf %139, %143 : vector<4x8xf32>
    %cst_72 = arith.constant 1.42141378 : f32
    %145 = vector.broadcast %cst_72 : f32 to vector<4x8xf32>
    %146 = arith.addf %145, %144 : vector<4x8xf32>
    %147 = arith.mulf %139, %146 : vector<4x8xf32>
    %cst_73 = arith.constant -0.284496725 : f32
    %148 = vector.broadcast %cst_73 : f32 to vector<4x8xf32>
    %149 = arith.addf %148, %147 : vector<4x8xf32>
    %150 = arith.mulf %139, %149 : vector<4x8xf32>
    %cst_74 = arith.constant 0.254829586 : f32
    %151 = vector.broadcast %cst_74 : f32 to vector<4x8xf32>
    %152 = arith.addf %151, %150 : vector<4x8xf32>
    %153 = arith.mulf %139, %152 : vector<4x8xf32>
    %cst_75 = arith.constant 0.000000e+00 : f32
    %154 = vector.broadcast %cst_75 : f32 to vector<4x8xf32>
    %155 = arith.subf %154, %133 : vector<4x8xf32>
    %156 = arith.mulf %155, %133 : vector<4x8xf32>
    %157 = math.exp %156 : vector<4x8xf32>
    %158 = arith.mulf %153, %157 : vector<4x8xf32>
    %cst_76 = arith.constant 1.000000e+00 : f32
    %159 = vector.broadcast %cst_76 : f32 to vector<4x8xf32>
    %160 = arith.subf %159, %158 : vector<4x8xf32>
    %cst_77 = arith.constant 0.000000e+00 : f32
    %161 = vector.broadcast %cst_77 : f32 to vector<4x8xf32>
    %162 = arith.cmpf olt, %132, %161 : vector<4x8xf32>
    %cst_78 = arith.constant 0.000000e+00 : f32
    %163 = vector.broadcast %cst_78 : f32 to vector<4x8xf32>
    %164 = arith.subf %163, %160 : vector<4x8xf32>
    %165 = arith.select %162, %164, %160 : vector<4x8xi1>, vector<4x8xf32>
    %cst_79 = arith.constant 5.000000e-01 : f32
    %166 = vector.broadcast %cst_79 : f32 to vector<4x8xf32>
    %167 = arith.mulf %166, %130 : vector<4x8xf32>
    %cst_80 = arith.constant 1.000000e+00 : f32
    %168 = vector.broadcast %cst_80 : f32 to vector<4x8xf32>
    %169 = arith.addf %168, %165 : vector<4x8xf32>
    %170 = arith.mulf %167, %169 : vector<4x8xf32>
    %171 = arith.mulf %84, %84 : vector<16x8xf32>
    %cst_81 = arith.constant dense<0.000000e+00> : vector<16xf32>
    %172 = vector.multi_reduction <add>, %171, %cst_81 [1] : vector<16x8xf32> to vector<16xf32>
    %173 = vector.shape_cast %172 : vector<16xf32> to vector<16x1xf32>
    %174 = arith.mulf %170, %170 : vector<4x8xf32>
    %cst_82 = arith.constant dense<0.000000e+00> : vector<4xf32>
    %175 = vector.multi_reduction <add>, %174, %cst_82 [1] : vector<4x8xf32> to vector<4xf32>
    %176 = vector.shape_cast %175 : vector<4xf32> to vector<4x1xf32>
    "tpu.trace_start"() <{level = 10 : i32, message = "nd,md->nm"}> : () -> ()
    %cst_83 = arith.constant dense<0.000000e+00> : vector<16x4xf32>
    %177 = tpu.matmul %84, %170, %cst_83 {dimension_numbers = #tpu.dot_dimension_numbers<[1], [1], [0], [0], [0, 0, 1, 0], [], []>} : vector<16x8xf32>, vector<4x8xf32>, vector<16x4xf32> -> vector<16x4xf32>
    "tpu.trace_stop"() : () -> ()
    %178 = tpu.transpose %176, [1, 0] : vector<4x1xf32> -> vector<1x4xf32>
    %179 = vector.broadcast %173 : vector<16x1xf32> to vector<16x4xf32>
    %180 = vector.broadcast %178 : vector<1x4xf32> to vector<16x4xf32>
    %181 = arith.addf %179, %180 : vector<16x4xf32>
    %cst_84 = arith.constant 2.000000e+00 : f32
    %182 = vector.broadcast %cst_84 : f32 to vector<16x4xf32>
    %183 = arith.mulf %182, %177 : vector<16x4xf32>
    %184 = arith.subf %181, %183 : vector<16x4xf32>
    %cst_85 = arith.constant 0.000000e+00 : f32
    %185 = vector.broadcast %cst_85 : f32 to vector<16x4xf32>
    %186 = arith.maximumf %184, %185 : vector<16x4xf32>
    %cst_86 = arith.constant -5.000000e-01 : f32
    %187 = vector.broadcast %cst_86 : f32 to vector<16x4xf32>
    %188 = arith.mulf %187, %186 : vector<16x4xf32>
    %189 = math.exp %188 : vector<16x4xf32>
    "tpu.trace_start"() <{level = 10 : i32, message = "md,ld->ml"}> : () -> ()
    %cst_87 = arith.constant dense<0.000000e+00> : vector<4x4xf32>
    %190 = tpu.matmul %170, %170, %cst_87 {dimension_numbers = #tpu.dot_dimension_numbers<[1], [1], [0], [0], [0, 0, 1, 0], [], []>} : vector<4x8xf32>, vector<4x8xf32>, vector<4x4xf32> -> vector<4x4xf32>
    "tpu.trace_stop"() : () -> ()
    %191 = tpu.transpose %176, [1, 0] : vector<4x1xf32> -> vector<1x4xf32>
    %192 = vector.broadcast %176 : vector<4x1xf32> to vector<4x4xf32>
    %193 = vector.broadcast %191 : vector<1x4xf32> to vector<4x4xf32>
    %194 = arith.addf %192, %193 : vector<4x4xf32>
    %cst_88 = arith.constant 2.000000e+00 : f32
    %195 = vector.broadcast %cst_88 : f32 to vector<4x4xf32>
    %196 = arith.mulf %195, %190 : vector<4x4xf32>
    %197 = arith.subf %194, %196 : vector<4x4xf32>
    %cst_89 = arith.constant 0.000000e+00 : f32
    %198 = vector.broadcast %cst_89 : f32 to vector<4x4xf32>
    %199 = arith.maximumf %197, %198 : vector<4x4xf32>
    %cst_90 = arith.constant -5.000000e-01 : f32
    %200 = vector.broadcast %cst_90 : f32 to vector<4x4xf32>
    %201 = arith.mulf %200, %199 : vector<4x4xf32>
    %202 = math.exp %201 : vector<4x4xf32>
    "tpu.trace_start"() <{level = 10 : i32, message = "nm,nd->md"}> : () -> ()
    %cst_91 = arith.constant dense<0.000000e+00> : vector<4x8xf32>
    %203 = tpu.matmul %189, %85, %cst_91 {dimension_numbers = #tpu.dot_dimension_numbers<[0], [0], [1], [1], [0, 1, 1, 1], [], []>} : vector<16x4xf32>, vector<16x8xf32>, vector<4x8xf32> -> vector<4x8xf32>
    "tpu.trace_stop"() : () -> ()
    %c0_92 = arith.constant 0 : index
    %c0_93 = arith.constant 0 : index
    %c0_94 = arith.constant 0 : index
    %204 = vector.load %arg11[%c0_92, %c0_93, %c0_94] : memref<1x16x16xf32, #tpu.memory_space<vmem>>, vector<1x16x4xf32>
    %205 = vector.shape_cast %204 : vector<1x16x4xf32> to vector<16x4xf32>
    %206 = vector.shape_cast %189 : vector<16x4xf32> to vector<1x16x4xf32>
    tpu.vector_store %arg11[%c0_92, %c0_93, %c0_94], %206 {strides = array<i32>} : memref<1x16x16xf32, #tpu.memory_space<vmem>>, vector<1x16x4xf32>,
    %c0_95 = arith.constant 0 : index
    %c0_96 = arith.constant 0 : index
    %c0_97 = arith.constant 0 : index
    %c0_98 = arith.constant 0 : index
    %207 = vector.load %arg12[%c0_95, %c0_96, %c0_97, %c0_98] : memref<1x4x4x4xf32, #tpu.memory_space<vmem>>, vector<1x1x4x4xf32>
    %208 = vector.shape_cast %207 : vector<1x1x4x4xf32> to vector<4x4xf32>
    %209 = vector.shape_cast %202 : vector<4x4xf32> to vector<1x1x4x4xf32>
    tpu.vector_store %arg12[%c0_95, %c0_96, %c0_97, %c0_98], %209 {strides = array<i32>} : memref<1x4x4x4xf32, #tpu.memory_space<vmem>>, vector<1x1x4x4xf32>,
    %c0_99 = arith.constant 0 : index
    %c0_100 = arith.constant 0 : index
    %c0_101 = arith.constant 0 : index
    %210 = vector.load %arg13[%c0_99, %c0_100, %c0_101] : memref<1x4x32xf32, #tpu.memory_space<vmem>>, vector<1x4x8xf32>
    %211 = vector.shape_cast %210 : vector<1x4x8xf32> to vector<4x8xf32>
    %212 = vector.shape_cast %203 : vector<4x8xf32> to vector<1x4x8xf32>
    tpu.vector_store %arg13[%c0_99, %c0_100, %c0_101], %212 {strides = array<i32>} : memref<1x4x32xf32, #tpu.memory_space<vmem>>, vector<1x4x8xf32>,
    %213 = vector.extract_strided_slice %19 {offsets = [0, 8], sizes = [16, 8], strides = [1, 1]} : vector<16x32xf32> to vector<16x8xf32>
    %214 = vector.extract_strided_slice %17 {offsets = [0, 8], sizes = [16, 8], strides = [1, 1]} : vector<16x32xf32> to vector<16x8xf32>
    %cst_102 = arith.constant 0.000000e+00 : f32
    %215 = vector.broadcast %cst_102 : f32 to vector<4x8xf32>
    %216 = vector.extract_strided_slice %80 {offsets = [0, 8], sizes = [4, 8], strides = [1, 1]} : vector<4x32xf32> to vector<4x8xf32>
    %c0_103 = arith.constant 0 : index
    %c0_104 = arith.constant 0 : index
    %c0_105 = arith.constant 0 : index
    %217 = vector.load %arg7[%c0_103, %c0_104, %c0_105] : memref<4x8x8xf32, #tpu.memory_space<vmem>>, vector<1x8x8xf32>
    %218 = vector.shape_cast %217 : vector<1x8x8xf32> to vector<8x8xf32>
    %cst_106 = arith.constant dense<0.000000e+00> : vector<4x8xf32>
    %219 = tpu.matmul %216, %218, %cst_106 {dimension_numbers = #tpu.dot_dimension_numbers<[1], [0], [0], [1], [0, 0, 1, 1], [], []>} : vector<4x8xf32>, vector<8x8xf32>, vector<4x8xf32> -> vector<4x8xf32>
    %220 = arith.addf %215, %219 : vector<4x8xf32>
    %221 = vector.extract_strided_slice %81 {offsets = [0, 8], sizes = [4, 8], strides = [1, 1]} : vector<4x32xf32> to vector<4x8xf32>
    %c1_107 = arith.constant 1 : index
    %c0_108 = arith.constant 0 : index
    %c0_109 = arith.constant 0 : index
    %222 = vector.load %arg7[%c1_107, %c0_108, %c0_109] : memref<4x8x8xf32, #tpu.memory_space<vmem>>, vector<1x8x8xf32>
    %223 = vector.shape_cast %222 : vector<1x8x8xf32> to vector<8x8xf32>
    %cst_110 = arith.constant dense<0.000000e+00> : vector<4x8xf32>
    %224 = tpu.matmul %221, %223, %cst_110 {dimension_numbers = #tpu.dot_dimension_numbers<[1], [0], [0], [1], [0, 0, 1, 1], [], []>} : vector<4x8xf32>, vector<8x8xf32>, vector<4x8xf32> -> vector<4x8xf32>
    %225 = arith.addf %220, %224 : vector<4x8xf32>
    %226 = vector.extract_strided_slice %82 {offsets = [0, 8], sizes = [4, 8], strides = [1, 1]} : vector<4x32xf32> to vector<4x8xf32>
    %c2_111 = arith.constant 2 : index
    %c0_112 = arith.constant 0 : index
    %c0_113 = arith.constant 0 : index
    %227 = vector.load %arg7[%c2_111, %c0_112, %c0_113] : memref<4x8x8xf32, #tpu.memory_space<vmem>>, vector<1x8x8xf32>
    %228 = vector.shape_cast %227 : vector<1x8x8xf32> to vector<8x8xf32>
    %cst_114 = arith.constant dense<0.000000e+00> : vector<4x8xf32>
    %229 = tpu.matmul %226, %228, %cst_114 {dimension_numbers = #tpu.dot_dimension_numbers<[1], [0], [0], [1], [0, 0, 1, 1], [], []>} : vector<4x8xf32>, vector<8x8xf32>, vector<4x8xf32> -> vector<4x8xf32>
    %230 = arith.addf %225, %229 : vector<4x8xf32>
    %231 = vector.extract_strided_slice %83 {offsets = [0, 8], sizes = [4, 8], strides = [1, 1]} : vector<4x32xf32> to vector<4x8xf32>
    %c3_115 = arith.constant 3 : index
    %c0_116 = arith.constant 0 : index
    %c0_117 = arith.constant 0 : index
    %232 = vector.load %arg7[%c3_115, %c0_116, %c0_117] : memref<4x8x8xf32, #tpu.memory_space<vmem>>, vector<1x8x8xf32>
    %233 = vector.shape_cast %232 : vector<1x8x8xf32> to vector<8x8xf32>
    %cst_118 = arith.constant dense<0.000000e+00> : vector<4x8xf32>
    %234 = tpu.matmul %231, %233, %cst_118 {dimension_numbers = #tpu.dot_dimension_numbers<[1], [0], [0], [1], [0, 0, 1, 1], [], []>} : vector<4x8xf32>, vector<8x8xf32>, vector<4x8xf32> -> vector<4x8xf32>
    %235 = arith.addf %230, %234 : vector<4x8xf32>
    %cst_119 = arith.constant dense<0.000000e+00> : vector<4xf32>
    %236 = vector.multi_reduction <add>, %235, %cst_119 [1] : vector<4x8xf32> to vector<4xf32>
    %237 = vector.shape_cast %236 : vector<4xf32> to vector<4x1xf32>
    %cst_120 = arith.constant 8.000000e+00 : f32
    %238 = vector.broadcast %cst_120 : f32 to vector<4x1xf32>
    %239 = arith.divf %237, %238 : vector<4x1xf32>
    %240 = vector.broadcast %239 : vector<4x1xf32> to vector<4x8xf32>
    %241 = arith.subf %235, %240 : vector<4x8xf32>
    %242 = arith.mulf %241, %241 : vector<4x8xf32>
    %cst_121 = arith.constant dense<0.000000e+00> : vector<4xf32>
    %243 = vector.multi_reduction <add>, %242, %cst_121 [1] : vector<4x8xf32> to vector<4xf32>
    %244 = vector.shape_cast %243 : vector<4xf32> to vector<4x1xf32>
    %cst_122 = arith.constant 8.000000e+00 : f32
    %245 = vector.broadcast %cst_122 : f32 to vector<4x1xf32>
    %246 = arith.divf %244, %245 : vector<4x1xf32>
    %247 = vector.broadcast %239 : vector<4x1xf32> to vector<4x8xf32>
    %248 = arith.subf %235, %247 : vector<4x8xf32>
    %cst_123 = arith.constant 9.99999974E-6 : f32
    %249 = vector.broadcast %cst_123 : f32 to vector<4x1xf32>
    %250 = arith.addf %246, %249 : vector<4x1xf32>
    %251 = math.rsqrt %250 : vector<4x1xf32>
    %252 = vector.broadcast %251 : vector<4x1xf32> to vector<4x8xf32>
    %253 = arith.mulf %248, %252 : vector<4x8xf32>
    %c0_124 = arith.constant 0 : index
    %c0_125 = arith.constant 0 : index
    %254 = vector.load %arg8[%c0_124, %c0_125] : memref<1x8xf32, #tpu.memory_space<vmem>>, vector<1x8xf32>
    %255 = vector.broadcast %254 : vector<1x8xf32> to vector<4x8xf32>
    %256 = arith.mulf %253, %255 : vector<4x8xf32>
    %c0_126 = arith.constant 0 : index
    %c0_127 = arith.constant 0 : index
    %257 = vector.load %arg9[%c0_126, %c0_127] : memref<1x8xf32, #tpu.memory_space<vmem>>, vector<1x8xf32>
    %258 = vector.broadcast %257 : vector<1x8xf32> to vector<4x8xf32>
    %259 = arith.addf %256, %258 : vector<4x8xf32>
    %cst_128 = arith.constant 0.707106769 : f32
    %260 = vector.broadcast %cst_128 : f32 to vector<4x8xf32>
    %261 = arith.mulf %259, %260 : vector<4x8xf32>
    %262 = math.absf %261 : vector<4x8xf32>
    %cst_129 = arith.constant 0.327591091 : f32
    %263 = vector.broadcast %cst_129 : f32 to vector<4x8xf32>
    %264 = arith.mulf %263, %262 : vector<4x8xf32>
    %cst_130 = arith.constant 1.000000e+00 : f32
    %265 = vector.broadcast %cst_130 : f32 to vector<4x8xf32>
    %266 = arith.addf %265, %264 : vector<4x8xf32>
    %cst_131 = arith.constant 1.000000e+00 : f32
    %267 = vector.broadcast %cst_131 : f32 to vector<4x8xf32>
    %268 = arith.divf %267, %266 : vector<4x8xf32>
    %cst_132 = arith.constant 1.06140542 : f32
    %269 = vector.broadcast %cst_132 : f32 to vector<4x8xf32>
    %270 = arith.mulf %268, %269 : vector<4x8xf32>
    %cst_133 = arith.constant -1.45315206 : f32
    %271 = vector.broadcast %cst_133 : f32 to vector<4x8xf32>
    %272 = arith.addf %271, %270 : vector<4x8xf32>
    %273 = arith.mulf %268, %272 : vector<4x8xf32>
    %cst_134 = arith.constant 1.42141378 : f32
    %274 = vector.broadcast %cst_134 : f32 to vector<4x8xf32>
    %275 = arith.addf %274, %273 : vector<4x8xf32>
    %276 = arith.mulf %268, %275 : vector<4x8xf32>
    %cst_135 = arith.constant -0.284496725 : f32
    %277 = vector.broadcast %cst_135 : f32 to vector<4x8xf32>
    %278 = arith.addf %277, %276 : vector<4x8xf32>
    %279 = arith.mulf %268, %278 : vector<4x8xf32>
    %cst_136 = arith.constant 0.254829586 : f32
    %280 = vector.broadcast %cst_136 : f32 to vector<4x8xf32>
    %281 = arith.addf %280, %279 : vector<4x8xf32>
    %282 = arith.mulf %268, %281 : vector<4x8xf32>
    %cst_137 = arith.constant 0.000000e+00 : f32
    %283 = vector.broadcast %cst_137 : f32 to vector<4x8xf32>
    %284 = arith.subf %283, %262 : vector<4x8xf32>
    %285 = arith.mulf %284, %262 : vector<4x8xf32>
    %286 = math.exp %285 : vector<4x8xf32>
    %287 = arith.mulf %282, %286 : vector<4x8xf32>
    %cst_138 = arith.constant 1.000000e+00 : f32
    %288 = vector.broadcast %cst_138 : f32 to vector<4x8xf32>
    %289 = arith.subf %288, %287 : vector<4x8xf32>
    %cst_139 = arith.constant 0.000000e+00 : f32
    %290 = vector.broadcast %cst_139 : f32 to vector<4x8xf32>
    %291 = arith.cmpf olt, %261, %290 : vector<4x8xf32>
    %cst_140 = arith.constant 0.000000e+00 : f32
    %292 = vector.broadcast %cst_140 : f32 to vector<4x8xf32>
    %293 = arith.subf %292, %289 : vector<4x8xf32>
    %294 = arith.select %291, %293, %289 : vector<4x8xi1>, vector<4x8xf32>
    %cst_141 = arith.constant 5.000000e-01 : f32
    %295 = vector.broadcast %cst_141 : f32 to vector<4x8xf32>
    %296 = arith.mulf %295, %259 : vector<4x8xf32>
    %cst_142 = arith.constant 1.000000e+00 : f32
    %297 = vector.broadcast %cst_142 : f32 to vector<4x8xf32>
    %298 = arith.addf %297, %294 : vector<4x8xf32>
    %299 = arith.mulf %296, %298 : vector<4x8xf32>
    %300 = arith.mulf %213, %213 : vector<16x8xf32>
    %cst_143 = arith.constant dense<0.000000e+00> : vector<16xf32>
    %301 = vector.multi_reduction <add>, %300, %cst_143 [1] : vector<16x8xf32> to vector<16xf32>
    %302 = vector.shape_cast %301 : vector<16xf32> to vector<16x1xf32>
    %303 = arith.mulf %299, %299 : vector<4x8xf32>
    %cst_144 = arith.constant dense<0.000000e+00> : vector<4xf32>
    %304 = vector.multi_reduction <add>, %303, %cst_144 [1] : vector<4x8xf32> to vector<4xf32>
    %305 = vector.shape_cast %304 : vector<4xf32> to vector<4x1xf32>
    "tpu.trace_start"() <{level = 10 : i32, message = "nd,md->nm"}> : () -> ()
    %cst_145 = arith.constant dense<0.000000e+00> : vector<16x4xf32>
    %306 = tpu.matmul %213, %299, %cst_145 {dimension_numbers = #tpu.dot_dimension_numbers<[1], [1], [0], [0], [0, 0, 1, 0], [], []>} : vector<16x8xf32>, vector<4x8xf32>, vector<16x4xf32> -> vector<16x4xf32>
    "tpu.trace_stop"() : () -> ()
    %307 = tpu.transpose %305, [1, 0] : vector<4x1xf32> -> vector<1x4xf32>
    %308 = vector.broadcast %302 : vector<16x1xf32> to vector<16x4xf32>
    %309 = vector.broadcast %307 : vector<1x4xf32> to vector<16x4xf32>
    %310 = arith.addf %308, %309 : vector<16x4xf32>
    %cst_146 = arith.constant 2.000000e+00 : f32
    %311 = vector.broadcast %cst_146 : f32 to vector<16x4xf32>
    %312 = arith.mulf %311, %306 : vector<16x4xf32>
    %313 = arith.subf %310, %312 : vector<16x4xf32>
    %cst_147 = arith.constant 0.000000e+00 : f32
    %314 = vector.broadcast %cst_147 : f32 to vector<16x4xf32>
    %315 = arith.maximumf %313, %314 : vector<16x4xf32>
    %cst_148 = arith.constant -5.000000e-01 : f32
    %316 = vector.broadcast %cst_148 : f32 to vector<16x4xf32>
    %317 = arith.mulf %316, %315 : vector<16x4xf32>
    %318 = math.exp %317 : vector<16x4xf32>
    "tpu.trace_start"() <{level = 10 : i32, message = "md,ld->ml"}> : () -> ()
    %cst_149 = arith.constant dense<0.000000e+00> : vector<4x4xf32>
    %319 = tpu.matmul %299, %299, %cst_149 {dimension_numbers = #tpu.dot_dimension_numbers<[1], [1], [0], [0], [0, 0, 1, 0], [], []>} : vector<4x8xf32>, vector<4x8xf32>, vector<4x4xf32> -> vector<4x4xf32>
    "tpu.trace_stop"() : () -> ()
    %320 = tpu.transpose %305, [1, 0] : vector<4x1xf32> -> vector<1x4xf32>
    %321 = vector.broadcast %305 : vector<4x1xf32> to vector<4x4xf32>
    %322 = vector.broadcast %320 : vector<1x4xf32> to vector<4x4xf32>
    %323 = arith.addf %321, %322 : vector<4x4xf32>
    %cst_150 = arith.constant 2.000000e+00 : f32
    %324 = vector.broadcast %cst_150 : f32 to vector<4x4xf32>
    %325 = arith.mulf %324, %319 : vector<4x4xf32>
    %326 = arith.subf %323, %325 : vector<4x4xf32>
    %cst_151 = arith.constant 0.000000e+00 : f32
    %327 = vector.broadcast %cst_151 : f32 to vector<4x4xf32>
    %328 = arith.maximumf %326, %327 : vector<4x4xf32>
    %cst_152 = arith.constant -5.000000e-01 : f32
    %329 = vector.broadcast %cst_152 : f32 to vector<4x4xf32>
    %330 = arith.mulf %329, %328 : vector<4x4xf32>
    %331 = math.exp %330 : vector<4x4xf32>
    "tpu.trace_start"() <{level = 10 : i32, message = "nm,nd->md"}> : () -> ()
    %cst_153 = arith.constant dense<0.000000e+00> : vector<4x8xf32>
    %332 = tpu.matmul %318, %214, %cst_153 {dimension_numbers = #tpu.dot_dimension_numbers<[0], [0], [1], [1], [0, 1, 1, 1], [], []>} : vector<16x4xf32>, vector<16x8xf32>, vector<4x8xf32> -> vector<4x8xf32>
    "tpu.trace_stop"() : () -> ()
    %c0_154 = arith.constant 0 : index
    %c0_155 = arith.constant 0 : index
    %c4 = arith.constant 4 : index
    %333 = vector.load %arg11[%c0_154, %c0_155, %c4] : memref<1x16x16xf32, #tpu.memory_space<vmem>>, vector<1x16x4xf32>
    %334 = vector.shape_cast %333 : vector<1x16x4xf32> to vector<16x4xf32>
    %335 = vector.shape_cast %318 : vector<16x4xf32> to vector<1x16x4xf32>
    tpu.vector_store %arg11[%c0_154, %c0_155, %c4], %335 {strides = array<i32>} : memref<1x16x16xf32, #tpu.memory_space<vmem>>, vector<1x16x4xf32>,
    %c0_156 = arith.constant 0 : index
    %c1_157 = arith.constant 1 : index
    %c0_158 = arith.constant 0 : index
    %c0_159 = arith.constant 0 : index
    %336 = vector.load %arg12[%c0_156, %c1_157, %c0_158, %c0_159] : memref<1x4x4x4xf32, #tpu.memory_space<vmem>>, vector<1x1x4x4xf32>
    %337 = vector.shape_cast %336 : vector<1x1x4x4xf32> to vector<4x4xf32>
    %338 = vector.shape_cast %331 : vector<4x4xf32> to vector<1x1x4x4xf32>
    tpu.vector_store %arg12[%c0_156, %c1_157, %c0_158, %c0_159], %338 {strides = array<i32>} : memref<1x4x4x4xf32, #tpu.memory_space<vmem>>, vector<1x1x4x4xf32>,
    %c0_160 = arith.constant 0 : index
    %c0_161 = arith.constant 0 : index
    %c8 = arith.constant 8 : index
    %339 = vector.load %arg13[%c0_160, %c0_161, %c8] : memref<1x4x32xf32, #tpu.memory_space<vmem>>, vector<1x4x8xf32>
    %340 = vector.shape_cast %339 : vector<1x4x8xf32> to vector<4x8xf32>
    %341 = vector.shape_cast %332 : vector<4x8xf32> to vector<1x4x8xf32>
    tpu.vector_store %arg13[%c0_160, %c0_161, %c8], %341 {strides = array<i32>} : memref<1x4x32xf32, #tpu.memory_space<vmem>>, vector<1x4x8xf32>,
    %342 = vector.extract_strided_slice %19 {offsets = [0, 16], sizes = [16, 8], strides = [1, 1]} : vector<16x32xf32> to vector<16x8xf32>
    %343 = vector.extract_strided_slice %17 {offsets = [0, 16], sizes = [16, 8], strides = [1, 1]} : vector<16x32xf32> to vector<16x8xf32>
    %cst_162 = arith.constant 0.000000e+00 : f32
    %344 = vector.broadcast %cst_162 : f32 to vector<4x8xf32>
    %345 = vector.extract_strided_slice %80 {offsets = [0, 16], sizes = [4, 8], strides = [1, 1]} : vector<4x32xf32> to vector<4x8xf32>
    %c0_163 = arith.constant 0 : index
    %c0_164 = arith.constant 0 : index
    %c0_165 = arith.constant 0 : index
    %346 = vector.load %arg7[%c0_163, %c0_164, %c0_165] : memref<4x8x8xf32, #tpu.memory_space<vmem>>, vector<1x8x8xf32>
    %347 = vector.shape_cast %346 : vector<1x8x8xf32> to vector<8x8xf32>
    %cst_166 = arith.constant dense<0.000000e+00> : vector<4x8xf32>
    %348 = tpu.matmul %345, %347, %cst_166 {dimension_numbers = #tpu.dot_dimension_numbers<[1], [0], [0], [1], [0, 0, 1, 1], [], []>} : vector<4x8xf32>, vector<8x8xf32>, vector<4x8xf32> -> vector<4x8xf32>
    %349 = arith.addf %344, %348 : vector<4x8xf32>
    %350 = vector.extract_strided_slice %81 {offsets = [0, 16], sizes = [4, 8], strides = [1, 1]} : vector<4x32xf32> to vector<4x8xf32>
    %c1_167 = arith.constant 1 : index
    %c0_168 = arith.constant 0 : index
    %c0_169 = arith.constant 0 : index
    %351 = vector.load %arg7[%c1_167, %c0_168, %c0_169] : memref<4x8x8xf32, #tpu.memory_space<vmem>>, vector<1x8x8xf32>
    %352 = vector.shape_cast %351 : vector<1x8x8xf32> to vector<8x8xf32>
    %cst_170 = arith.constant dense<0.000000e+00> : vector<4x8xf32>
    %353 = tpu.matmul %350, %352, %cst_170 {dimension_numbers = #tpu.dot_dimension_numbers<[1], [0], [0], [1], [0, 0, 1, 1], [], []>} : vector<4x8xf32>, vector<8x8xf32>, vector<4x8xf32> -> vector<4x8xf32>
    %354 = arith.addf %349, %353 : vector<4x8xf32>
    %355 = vector.extract_strided_slice %82 {offsets = [0, 16], sizes = [4, 8], strides = [1, 1]} : vector<4x32xf32> to vector<4x8xf32>
    %c2_171 = arith.constant 2 : index
    %c0_172 = arith.constant 0 : index
    %c0_173 = arith.constant 0 : index
    %356 = vector.load %arg7[%c2_171, %c0_172, %c0_173] : memref<4x8x8xf32, #tpu.memory_space<vmem>>, vector<1x8x8xf32>
    %357 = vector.shape_cast %356 : vector<1x8x8xf32> to vector<8x8xf32>
    %cst_174 = arith.constant dense<0.000000e+00> : vector<4x8xf32>
    %358 = tpu.matmul %355, %357, %cst_174 {dimension_numbers = #tpu.dot_dimension_numbers<[1], [0], [0], [1], [0, 0, 1, 1], [], []>} : vector<4x8xf32>, vector<8x8xf32>, vector<4x8xf32> -> vector<4x8xf32>
    %359 = arith.addf %354, %358 : vector<4x8xf32>
    %360 = vector.extract_strided_slice %83 {offsets = [0, 16], sizes = [4, 8], strides = [1, 1]} : vector<4x32xf32> to vector<4x8xf32>
    %c3_175 = arith.constant 3 : index
    %c0_176 = arith.constant 0 : index
    %c0_177 = arith.constant 0 : index
    %361 = vector.load %arg7[%c3_175, %c0_176, %c0_177] : memref<4x8x8xf32, #tpu.memory_space<vmem>>, vector<1x8x8xf32>
    %362 = vector.shape_cast %361 : vector<1x8x8xf32> to vector<8x8xf32>
    %cst_178 = arith.constant dense<0.000000e+00> : vector<4x8xf32>
    %363 = tpu.matmul %360, %362, %cst_178 {dimension_numbers = #tpu.dot_dimension_numbers<[1], [0], [0], [1], [0, 0, 1, 1], [], []>} : vector<4x8xf32>, vector<8x8xf32>, vector<4x8xf32> -> vector<4x8xf32>
    %364 = arith.addf %359, %363 : vector<4x8xf32>
    %cst_179 = arith.constant dense<0.000000e+00> : vector<4xf32>
    %365 = vector.multi_reduction <add>, %364, %cst_179 [1] : vector<4x8xf32> to vector<4xf32>
    %366 = vector.shape_cast %365 : vector<4xf32> to vector<4x1xf32>
    %cst_180 = arith.constant 8.000000e+00 : f32
    %367 = vector.broadcast %cst_180 : f32 to vector<4x1xf32>
    %368 = arith.divf %366, %367 : vector<4x1xf32>
    %369 = vector.broadcast %368 : vector<4x1xf32> to vector<4x8xf32>
    %370 = arith.subf %364, %369 : vector<4x8xf32>
    %371 = arith.mulf %370, %370 : vector<4x8xf32>
    %cst_181 = arith.constant dense<0.000000e+00> : vector<4xf32>
    %372 = vector.multi_reduction <add>, %371, %cst_181 [1] : vector<4x8xf32> to vector<4xf32>
    %373 = vector.shape_cast %372 : vector<4xf32> to vector<4x1xf32>
    %cst_182 = arith.constant 8.000000e+00 : f32
    %374 = vector.broadcast %cst_182 : f32 to vector<4x1xf32>
    %375 = arith.divf %373, %374 : vector<4x1xf32>
    %376 = vector.broadcast %368 : vector<4x1xf32> to vector<4x8xf32>
    %377 = arith.subf %364, %376 : vector<4x8xf32>
    %cst_183 = arith.constant 9.99999974E-6 : f32
    %378 = vector.broadcast %cst_183 : f32 to vector<4x1xf32>
    %379 = arith.addf %375, %378 : vector<4x1xf32>
    %380 = math.rsqrt %379 : vector<4x1xf32>
    %381 = vector.broadcast %380 : vector<4x1xf32> to vector<4x8xf32>
    %382 = arith.mulf %377, %381 : vector<4x8xf32>
    %c0_184 = arith.constant 0 : index
    %c0_185 = arith.constant 0 : index
    %383 = vector.load %arg8[%c0_184, %c0_185] : memref<1x8xf32, #tpu.memory_space<vmem>>, vector<1x8xf32>
    %384 = vector.broadcast %383 : vector<1x8xf32> to vector<4x8xf32>
    %385 = arith.mulf %382, %384 : vector<4x8xf32>
    %c0_186 = arith.constant 0 : index
    %c0_187 = arith.constant 0 : index
    %386 = vector.load %arg9[%c0_186, %c0_187] : memref<1x8xf32, #tpu.memory_space<vmem>>, vector<1x8xf32>
    %387 = vector.broadcast %386 : vector<1x8xf32> to vector<4x8xf32>
    %388 = arith.addf %385, %387 : vector<4x8xf32>
    %cst_188 = arith.constant 0.707106769 : f32
    %389 = vector.broadcast %cst_188 : f32 to vector<4x8xf32>
    %390 = arith.mulf %388, %389 : vector<4x8xf32>
    %391 = math.absf %390 : vector<4x8xf32>
    %cst_189 = arith.constant 0.327591091 : f32
    %392 = vector.broadcast %cst_189 : f32 to vector<4x8xf32>
    %393 = arith.mulf %392, %391 : vector<4x8xf32>
    %cst_190 = arith.constant 1.000000e+00 : f32
    %394 = vector.broadcast %cst_190 : f32 to vector<4x8xf32>
    %395 = arith.addf %394, %393 : vector<4x8xf32>
    %cst_191 = arith.constant 1.000000e+00 : f32
    %396 = vector.broadcast %cst_191 : f32 to vector<4x8xf32>
    %397 = arith.divf %396, %395 : vector<4x8xf32>
    %cst_192 = arith.constant 1.06140542 : f32
    %398 = vector.broadcast %cst_192 : f32 to vector<4x8xf32>
    %399 = arith.mulf %397, %398 : vector<4x8xf32>
    %cst_193 = arith.constant -1.45315206 : f32
    %400 = vector.broadcast %cst_193 : f32 to vector<4x8xf32>
    %401 = arith.addf %400, %399 : vector<4x8xf32>
    %402 = arith.mulf %397, %401 : vector<4x8xf32>
    %cst_194 = arith.constant 1.42141378 : f32
    %403 = vector.broadcast %cst_194 : f32 to vector<4x8xf32>
    %404 = arith.addf %403, %402 : vector<4x8xf32>
    %405 = arith.mulf %397, %404 : vector<4x8xf32>
    %cst_195 = arith.constant -0.284496725 : f32
    %406 = vector.broadcast %cst_195 : f32 to vector<4x8xf32>
    %407 = arith.addf %406, %405 : vector<4x8xf32>
    %408 = arith.mulf %397, %407 : vector<4x8xf32>
    %cst_196 = arith.constant 0.254829586 : f32
    %409 = vector.broadcast %cst_196 : f32 to vector<4x8xf32>
    %410 = arith.addf %409, %408 : vector<4x8xf32>
    %411 = arith.mulf %397, %410 : vector<4x8xf32>
    %cst_197 = arith.constant 0.000000e+00 : f32
    %412 = vector.broadcast %cst_197 : f32 to vector<4x8xf32>
    %413 = arith.subf %412, %391 : vector<4x8xf32>
    %414 = arith.mulf %413, %391 : vector<4x8xf32>
    %415 = math.exp %414 : vector<4x8xf32>
    %416 = arith.mulf %411, %415 : vector<4x8xf32>
    %cst_198 = arith.constant 1.000000e+00 : f32
    %417 = vector.broadcast %cst_198 : f32 to vector<4x8xf32>
    %418 = arith.subf %417, %416 : vector<4x8xf32>
    %cst_199 = arith.constant 0.000000e+00 : f32
    %419 = vector.broadcast %cst_199 : f32 to vector<4x8xf32>
    %420 = arith.cmpf olt, %390, %419 : vector<4x8xf32>
    %cst_200 = arith.constant 0.000000e+00 : f32
    %421 = vector.broadcast %cst_200 : f32 to vector<4x8xf32>
    %422 = arith.subf %421, %418 : vector<4x8xf32>
    %423 = arith.select %420, %422, %418 : vector<4x8xi1>, vector<4x8xf32>
    %cst_201 = arith.constant 5.000000e-01 : f32
    %424 = vector.broadcast %cst_201 : f32 to vector<4x8xf32>
    %425 = arith.mulf %424, %388 : vector<4x8xf32>
    %cst_202 = arith.constant 1.000000e+00 : f32
    %426 = vector.broadcast %cst_202 : f32 to vector<4x8xf32>
    %427 = arith.addf %426, %423 : vector<4x8xf32>
    %428 = arith.mulf %425, %427 : vector<4x8xf32>
    %429 = arith.mulf %342, %342 : vector<16x8xf32>
    %cst_203 = arith.constant dense<0.000000e+00> : vector<16xf32>
    %430 = vector.multi_reduction <add>, %429, %cst_203 [1] : vector<16x8xf32> to vector<16xf32>
    %431 = vector.shape_cast %430 : vector<16xf32> to vector<16x1xf32>
    %432 = arith.mulf %428, %428 : vector<4x8xf32>
    %cst_204 = arith.constant dense<0.000000e+00> : vector<4xf32>
    %433 = vector.multi_reduction <add>, %432, %cst_204 [1] : vector<4x8xf32> to vector<4xf32>
    %434 = vector.shape_cast %433 : vector<4xf32> to vector<4x1xf32>
    "tpu.trace_start"() <{level = 10 : i32, message = "nd,md->nm"}> : () -> ()
    %cst_205 = arith.constant dense<0.000000e+00> : vector<16x4xf32>
    %435 = tpu.matmul %342, %428, %cst_205 {dimension_numbers = #tpu.dot_dimension_numbers<[1], [1], [0], [0], [0, 0, 1, 0], [], []>} : vector<16x8xf32>, vector<4x8xf32>, vector<16x4xf32> -> vector<16x4xf32>
    "tpu.trace_stop"() : () -> ()
    %436 = tpu.transpose %434, [1, 0] : vector<4x1xf32> -> vector<1x4xf32>
    %437 = vector.broadcast %431 : vector<16x1xf32> to vector<16x4xf32>
    %438 = vector.broadcast %436 : vector<1x4xf32> to vector<16x4xf32>
    %439 = arith.addf %437, %438 : vector<16x4xf32>
    %cst_206 = arith.constant 2.000000e+00 : f32
    %440 = vector.broadcast %cst_206 : f32 to vector<16x4xf32>
    %441 = arith.mulf %440, %435 : vector<16x4xf32>
    %442 = arith.subf %439, %441 : vector<16x4xf32>
    %cst_207 = arith.constant 0.000000e+00 : f32
    %443 = vector.broadcast %cst_207 : f32 to vector<16x4xf32>
    %444 = arith.maximumf %442, %443 : vector<16x4xf32>
    %cst_208 = arith.constant -5.000000e-01 : f32
    %445 = vector.broadcast %cst_208 : f32 to vector<16x4xf32>
    %446 = arith.mulf %445, %444 : vector<16x4xf32>
    %447 = math.exp %446 : vector<16x4xf32>
    "tpu.trace_start"() <{level = 10 : i32, message = "md,ld->ml"}> : () -> ()
    %cst_209 = arith.constant dense<0.000000e+00> : vector<4x4xf32>
    %448 = tpu.matmul %428, %428, %cst_209 {dimension_numbers = #tpu.dot_dimension_numbers<[1], [1], [0], [0], [0, 0, 1, 0], [], []>} : vector<4x8xf32>, vector<4x8xf32>, vector<4x4xf32> -> vector<4x4xf32>
    "tpu.trace_stop"() : () -> ()
    %449 = tpu.transpose %434, [1, 0] : vector<4x1xf32> -> vector<1x4xf32>
    %450 = vector.broadcast %434 : vector<4x1xf32> to vector<4x4xf32>
    %451 = vector.broadcast %449 : vector<1x4xf32> to vector<4x4xf32>
    %452 = arith.addf %450, %451 : vector<4x4xf32>
    %cst_210 = arith.constant 2.000000e+00 : f32
    %453 = vector.broadcast %cst_210 : f32 to vector<4x4xf32>
    %454 = arith.mulf %453, %448 : vector<4x4xf32>
    %455 = arith.subf %452, %454 : vector<4x4xf32>
    %cst_211 = arith.constant 0.000000e+00 : f32
    %456 = vector.broadcast %cst_211 : f32 to vector<4x4xf32>
    %457 = arith.maximumf %455, %456 : vector<4x4xf32>
    %cst_212 = arith.constant -5.000000e-01 : f32
    %458 = vector.broadcast %cst_212 : f32 to vector<4x4xf32>
    %459 = arith.mulf %458, %457 : vector<4x4xf32>
    %460 = math.exp %459 : vector<4x4xf32>
    "tpu.trace_start"() <{level = 10 : i32, message = "nm,nd->md"}> : () -> ()
    %cst_213 = arith.constant dense<0.000000e+00> : vector<4x8xf32>
    %461 = tpu.matmul %447, %343, %cst_213 {dimension_numbers = #tpu.dot_dimension_numbers<[0], [0], [1], [1], [0, 1, 1, 1], [], []>} : vector<16x4xf32>, vector<16x8xf32>, vector<4x8xf32> -> vector<4x8xf32>
    "tpu.trace_stop"() : () -> ()
    %c0_214 = arith.constant 0 : index
    %c0_215 = arith.constant 0 : index
    %c8_216 = arith.constant 8 : index
    %462 = vector.load %arg11[%c0_214, %c0_215, %c8_216] : memref<1x16x16xf32, #tpu.memory_space<vmem>>, vector<1x16x4xf32>
    %463 = vector.shape_cast %462 : vector<1x16x4xf32> to vector<16x4xf32>
    %464 = vector.shape_cast %447 : vector<16x4xf32> to vector<1x16x4xf32>
    tpu.vector_store %arg11[%c0_214, %c0_215, %c8_216], %464 {strides = array<i32>} : memref<1x16x16xf32, #tpu.memory_space<vmem>>, vector<1x16x4xf32>,
    %c0_217 = arith.constant 0 : index
    %c2_218 = arith.constant 2 : index
    %c0_219 = arith.constant 0 : index
    %c0_220 = arith.constant 0 : index
    %465 = vector.load %arg12[%c0_217, %c2_218, %c0_219, %c0_220] : memref<1x4x4x4xf32, #tpu.memory_space<vmem>>, vector<1x1x4x4xf32>
    %466 = vector.shape_cast %465 : vector<1x1x4x4xf32> to vector<4x4xf32>
    %467 = vector.shape_cast %460 : vector<4x4xf32> to vector<1x1x4x4xf32>
    tpu.vector_store %arg12[%c0_217, %c2_218, %c0_219, %c0_220], %467 {strides = array<i32>} : memref<1x4x4x4xf32, #tpu.memory_space<vmem>>, vector<1x1x4x4xf32>,
    %c0_221 = arith.constant 0 : index
    %c0_222 = arith.constant 0 : index
    %c16 = arith.constant 16 : index
    %468 = vector.load %arg13[%c0_221, %c0_222, %c16] : memref<1x4x32xf32, #tpu.memory_space<vmem>>, vector<1x4x8xf32>
    %469 = vector.shape_cast %468 : vector<1x4x8xf32> to vector<4x8xf32>
    %470 = vector.shape_cast %461 : vector<4x8xf32> to vector<1x4x8xf32>
    tpu.vector_store %arg13[%c0_221, %c0_222, %c16], %470 {strides = array<i32>} : memref<1x4x32xf32, #tpu.memory_space<vmem>>, vector<1x4x8xf32>,
    %471 = vector.extract_strided_slice %19 {offsets = [0, 24], sizes = [16, 8], strides = [1, 1]} : vector<16x32xf32> to vector<16x8xf32>
    %472 = vector.extract_strided_slice %17 {offsets = [0, 24], sizes = [16, 8], strides = [1, 1]} : vector<16x32xf32> to vector<16x8xf32>
    %cst_223 = arith.constant 0.000000e+00 : f32
    %473 = vector.broadcast %cst_223 : f32 to vector<4x8xf32>
    %474 = vector.extract_strided_slice %80 {offsets = [0, 24], sizes = [4, 8], strides = [1, 1]} : vector<4x32xf32> to vector<4x8xf32>
    %c0_224 = arith.constant 0 : index
    %c0_225 = arith.constant 0 : index
    %c0_226 = arith.constant 0 : index
    %475 = vector.load %arg7[%c0_224, %c0_225, %c0_226] : memref<4x8x8xf32, #tpu.memory_space<vmem>>, vector<1x8x8xf32>
    %476 = vector.shape_cast %475 : vector<1x8x8xf32> to vector<8x8xf32>
    %cst_227 = arith.constant dense<0.000000e+00> : vector<4x8xf32>
    %477 = tpu.matmul %474, %476, %cst_227 {dimension_numbers = #tpu.dot_dimension_numbers<[1], [0], [0], [1], [0, 0, 1, 1], [], []>} : vector<4x8xf32>, vector<8x8xf32>, vector<4x8xf32> -> vector<4x8xf32>
    %478 = arith.addf %473, %477 : vector<4x8xf32>
    %479 = vector.extract_strided_slice %81 {offsets = [0, 24], sizes = [4, 8], strides = [1, 1]} : vector<4x32xf32> to vector<4x8xf32>
    %c1_228 = arith.constant 1 : index
    %c0_229 = arith.constant 0 : index
    %c0_230 = arith.constant 0 : index
    %480 = vector.load %arg7[%c1_228, %c0_229, %c0_230] : memref<4x8x8xf32, #tpu.memory_space<vmem>>, vector<1x8x8xf32>
    %481 = vector.shape_cast %480 : vector<1x8x8xf32> to vector<8x8xf32>
    %cst_231 = arith.constant dense<0.000000e+00> : vector<4x8xf32>
    %482 = tpu.matmul %479, %481, %cst_231 {dimension_numbers = #tpu.dot_dimension_numbers<[1], [0], [0], [1], [0, 0, 1, 1], [], []>} : vector<4x8xf32>, vector<8x8xf32>, vector<4x8xf32> -> vector<4x8xf32>
    %483 = arith.addf %478, %482 : vector<4x8xf32>
    %484 = vector.extract_strided_slice %82 {offsets = [0, 24], sizes = [4, 8], strides = [1, 1]} : vector<4x32xf32> to vector<4x8xf32>
    %c2_232 = arith.constant 2 : index
    %c0_233 = arith.constant 0 : index
    %c0_234 = arith.constant 0 : index
    %485 = vector.load %arg7[%c2_232, %c0_233, %c0_234] : memref<4x8x8xf32, #tpu.memory_space<vmem>>, vector<1x8x8xf32>
    %486 = vector.shape_cast %485 : vector<1x8x8xf32> to vector<8x8xf32>
    %cst_235 = arith.constant dense<0.000000e+00> : vector<4x8xf32>
    %487 = tpu.matmul %484, %486, %cst_235 {dimension_numbers = #tpu.dot_dimension_numbers<[1], [0], [0], [1], [0, 0, 1, 1], [], []>} : vector<4x8xf32>, vector<8x8xf32>, vector<4x8xf32> -> vector<4x8xf32>
    %488 = arith.addf %483, %487 : vector<4x8xf32>
    %489 = vector.extract_strided_slice %83 {offsets = [0, 24], sizes = [4, 8], strides = [1, 1]} : vector<4x32xf32> to vector<4x8xf32>
    %c3_236 = arith.constant 3 : index
    %c0_237 = arith.constant 0 : index
    %c0_238 = arith.constant 0 : index
    %490 = vector.load %arg7[%c3_236, %c0_237, %c0_238] : memref<4x8x8xf32, #tpu.memory_space<vmem>>, vector<1x8x8xf32>
    %491 = vector.shape_cast %490 : vector<1x8x8xf32> to vector<8x8xf32>
    %cst_239 = arith.constant dense<0.000000e+00> : vector<4x8xf32>
    %492 = tpu.matmul %489, %491, %cst_239 {dimension_numbers = #tpu.dot_dimension_numbers<[1], [0], [0], [1], [0, 0, 1, 1], [], []>} : vector<4x8xf32>, vector<8x8xf32>, vector<4x8xf32> -> vector<4x8xf32>
    %493 = arith.addf %488, %492 : vector<4x8xf32>
    %cst_240 = arith.constant dense<0.000000e+00> : vector<4xf32>
    %494 = vector.multi_reduction <add>, %493, %cst_240 [1] : vector<4x8xf32> to vector<4xf32>
    %495 = vector.shape_cast %494 : vector<4xf32> to vector<4x1xf32>
    %cst_241 = arith.constant 8.000000e+00 : f32
    %496 = vector.broadcast %cst_241 : f32 to vector<4x1xf32>
    %497 = arith.divf %495, %496 : vector<4x1xf32>
    %498 = vector.broadcast %497 : vector<4x1xf32> to vector<4x8xf32>
    %499 = arith.subf %493, %498 : vector<4x8xf32>
    %500 = arith.mulf %499, %499 : vector<4x8xf32>
    %cst_242 = arith.constant dense<0.000000e+00> : vector<4xf32>
    %501 = vector.multi_reduction <add>, %500, %cst_242 [1] : vector<4x8xf32> to vector<4xf32>
    %502 = vector.shape_cast %501 : vector<4xf32> to vector<4x1xf32>
    %cst_243 = arith.constant 8.000000e+00 : f32
    %503 = vector.broadcast %cst_243 : f32 to vector<4x1xf32>
    %504 = arith.divf %502, %503 : vector<4x1xf32>
    %505 = vector.broadcast %497 : vector<4x1xf32> to vector<4x8xf32>
    %506 = arith.subf %493, %505 : vector<4x8xf32>
    %cst_244 = arith.constant 9.99999974E-6 : f32
    %507 = vector.broadcast %cst_244 : f32 to vector<4x1xf32>
    %508 = arith.addf %504, %507 : vector<4x1xf32>
    %509 = math.rsqrt %508 : vector<4x1xf32>
    %510 = vector.broadcast %509 : vector<4x1xf32> to vector<4x8xf32>
    %511 = arith.mulf %506, %510 : vector<4x8xf32>
    %c0_245 = arith.constant 0 : index
    %c0_246 = arith.constant 0 : index
    %512 = vector.load %arg8[%c0_245, %c0_246] : memref<1x8xf32, #tpu.memory_space<vmem>>, vector<1x8xf32>
    %513 = vector.broadcast %512 : vector<1x8xf32> to vector<4x8xf32>
    %514 = arith.mulf %511, %513 : vector<4x8xf32>
    %c0_247 = arith.constant 0 : index
    %c0_248 = arith.constant 0 : index
    %515 = vector.load %arg9[%c0_247, %c0_248] : memref<1x8xf32, #tpu.memory_space<vmem>>, vector<1x8xf32>
    %516 = vector.broadcast %515 : vector<1x8xf32> to vector<4x8xf32>
    %517 = arith.addf %514, %516 : vector<4x8xf32>
    %cst_249 = arith.constant 0.707106769 : f32
    %518 = vector.broadcast %cst_249 : f32 to vector<4x8xf32>
    %519 = arith.mulf %517, %518 : vector<4x8xf32>
    %520 = math.absf %519 : vector<4x8xf32>
    %cst_250 = arith.constant 0.327591091 : f32
    %521 = vector.broadcast %cst_250 : f32 to vector<4x8xf32>
    %522 = arith.mulf %521, %520 : vector<4x8xf32>
    %cst_251 = arith.constant 1.000000e+00 : f32
    %523 = vector.broadcast %cst_251 : f32 to vector<4x8xf32>
    %524 = arith.addf %523, %522 : vector<4x8xf32>
    %cst_252 = arith.constant 1.000000e+00 : f32
    %525 = vector.broadcast %cst_252 : f32 to vector<4x8xf32>
    %526 = arith.divf %525, %524 : vector<4x8xf32>
    %cst_253 = arith.constant 1.06140542 : f32
    %527 = vector.broadcast %cst_253 : f32 to vector<4x8xf32>
    %528 = arith.mulf %526, %527 : vector<4x8xf32>
    %cst_254 = arith.constant -1.45315206 : f32
    %529 = vector.broadcast %cst_254 : f32 to vector<4x8xf32>
    %530 = arith.addf %529, %528 : vector<4x8xf32>
    %531 = arith.mulf %526, %530 : vector<4x8xf32>
    %cst_255 = arith.constant 1.42141378 : f32
    %532 = vector.broadcast %cst_255 : f32 to vector<4x8xf32>
    %533 = arith.addf %532, %531 : vector<4x8xf32>
    %534 = arith.mulf %526, %533 : vector<4x8xf32>
    %cst_256 = arith.constant -0.284496725 : f32
    %535 = vector.broadcast %cst_256 : f32 to vector<4x8xf32>
    %536 = arith.addf %535, %534 : vector<4x8xf32>
    %537 = arith.mulf %526, %536 : vector<4x8xf32>
    %cst_257 = arith.constant 0.254829586 : f32
    %538 = vector.broadcast %cst_257 : f32 to vector<4x8xf32>
    %539 = arith.addf %538, %537 : vector<4x8xf32>
    %540 = arith.mulf %526, %539 : vector<4x8xf32>
    %cst_258 = arith.constant 0.000000e+00 : f32
    %541 = vector.broadcast %cst_258 : f32 to vector<4x8xf32>
    %542 = arith.subf %541, %520 : vector<4x8xf32>
    %543 = arith.mulf %542, %520 : vector<4x8xf32>
    %544 = math.exp %543 : vector<4x8xf32>
    %545 = arith.mulf %540, %544 : vector<4x8xf32>
    %cst_259 = arith.constant 1.000000e+00 : f32
    %546 = vector.broadcast %cst_259 : f32 to vector<4x8xf32>
    %547 = arith.subf %546, %545 : vector<4x8xf32>
    %cst_260 = arith.constant 0.000000e+00 : f32
    %548 = vector.broadcast %cst_260 : f32 to vector<4x8xf32>
    %549 = arith.cmpf olt, %519, %548 : vector<4x8xf32>
    %cst_261 = arith.constant 0.000000e+00 : f32
    %550 = vector.broadcast %cst_261 : f32 to vector<4x8xf32>
    %551 = arith.subf %550, %547 : vector<4x8xf32>
    %552 = arith.select %549, %551, %547 : vector<4x8xi1>, vector<4x8xf32>
    %cst_262 = arith.constant 5.000000e-01 : f32
    %553 = vector.broadcast %cst_262 : f32 to vector<4x8xf32>
    %554 = arith.mulf %553, %517 : vector<4x8xf32>
    %cst_263 = arith.constant 1.000000e+00 : f32
    %555 = vector.broadcast %cst_263 : f32 to vector<4x8xf32>
    %556 = arith.addf %555, %552 : vector<4x8xf32>
    %557 = arith.mulf %554, %556 : vector<4x8xf32>
    %558 = arith.mulf %471, %471 : vector<16x8xf32>
    %cst_264 = arith.constant dense<0.000000e+00> : vector<16xf32>
    %559 = vector.multi_reduction <add>, %558, %cst_264 [1] : vector<16x8xf32> to vector<16xf32>
    %560 = vector.shape_cast %559 : vector<16xf32> to vector<16x1xf32>
    %561 = arith.mulf %557, %557 : vector<4x8xf32>
    %cst_265 = arith.constant dense<0.000000e+00> : vector<4xf32>
    %562 = vector.multi_reduction <add>, %561, %cst_265 [1] : vector<4x8xf32> to vector<4xf32>
    %563 = vector.shape_cast %562 : vector<4xf32> to vector<4x1xf32>
    "tpu.trace_start"() <{level = 10 : i32, message = "nd,md->nm"}> : () -> ()
    %cst_266 = arith.constant dense<0.000000e+00> : vector<16x4xf32>
    %564 = tpu.matmul %471, %557, %cst_266 {dimension_numbers = #tpu.dot_dimension_numbers<[1], [1], [0], [0], [0, 0, 1, 0], [], []>} : vector<16x8xf32>, vector<4x8xf32>, vector<16x4xf32> -> vector<16x4xf32>
    "tpu.trace_stop"() : () -> ()
    %565 = tpu.transpose %563, [1, 0] : vector<4x1xf32> -> vector<1x4xf32>
    %566 = vector.broadcast %560 : vector<16x1xf32> to vector<16x4xf32>
    %567 = vector.broadcast %565 : vector<1x4xf32> to vector<16x4xf32>
    %568 = arith.addf %566, %567 : vector<16x4xf32>
    %cst_267 = arith.constant 2.000000e+00 : f32
    %569 = vector.broadcast %cst_267 : f32 to vector<16x4xf32>
    %570 = arith.mulf %569, %564 : vector<16x4xf32>
    %571 = arith.subf %568, %570 : vector<16x4xf32>
    %cst_268 = arith.constant 0.000000e+00 : f32
    %572 = vector.broadcast %cst_268 : f32 to vector<16x4xf32>
    %573 = arith.maximumf %571, %572 : vector<16x4xf32>
    %cst_269 = arith.constant -5.000000e-01 : f32
    %574 = vector.broadcast %cst_269 : f32 to vector<16x4xf32>
    %575 = arith.mulf %574, %573 : vector<16x4xf32>
    %576 = math.exp %575 : vector<16x4xf32>
    "tpu.trace_start"() <{level = 10 : i32, message = "md,ld->ml"}> : () -> ()
    %cst_270 = arith.constant dense<0.000000e+00> : vector<4x4xf32>
    %577 = tpu.matmul %557, %557, %cst_270 {dimension_numbers = #tpu.dot_dimension_numbers<[1], [1], [0], [0], [0, 0, 1, 0], [], []>} : vector<4x8xf32>, vector<4x8xf32>, vector<4x4xf32> -> vector<4x4xf32>
    "tpu.trace_stop"() : () -> ()
    %578 = tpu.transpose %563, [1, 0] : vector<4x1xf32> -> vector<1x4xf32>
    %579 = vector.broadcast %563 : vector<4x1xf32> to vector<4x4xf32>
    %580 = vector.broadcast %578 : vector<1x4xf32> to vector<4x4xf32>
    %581 = arith.addf %579, %580 : vector<4x4xf32>
    %cst_271 = arith.constant 2.000000e+00 : f32
    %582 = vector.broadcast %cst_271 : f32 to vector<4x4xf32>
    %583 = arith.mulf %582, %577 : vector<4x4xf32>
    %584 = arith.subf %581, %583 : vector<4x4xf32>
    %cst_272 = arith.constant 0.000000e+00 : f32
    %585 = vector.broadcast %cst_272 : f32 to vector<4x4xf32>
    %586 = arith.maximumf %584, %585 : vector<4x4xf32>
    %cst_273 = arith.constant -5.000000e-01 : f32
    %587 = vector.broadcast %cst_273 : f32 to vector<4x4xf32>
    %588 = arith.mulf %587, %586 : vector<4x4xf32>
    %589 = math.exp %588 : vector<4x4xf32>
    "tpu.trace_start"() <{level = 10 : i32, message = "nm,nd->md"}> : () -> ()
    %cst_274 = arith.constant dense<0.000000e+00> : vector<4x8xf32>
    %590 = tpu.matmul %576, %472, %cst_274 {dimension_numbers = #tpu.dot_dimension_numbers<[0], [0], [1], [1], [0, 1, 1, 1], [], []>} : vector<16x4xf32>, vector<16x8xf32>, vector<4x8xf32> -> vector<4x8xf32>
    "tpu.trace_stop"() : () -> ()
    %c0_275 = arith.constant 0 : index
    %c0_276 = arith.constant 0 : index
    %c12 = arith.constant 12 : index
    %591 = vector.load %arg11[%c0_275, %c0_276, %c12] : memref<1x16x16xf32, #tpu.memory_space<vmem>>, vector<1x16x4xf32>
    %592 = vector.shape_cast %591 : vector<1x16x4xf32> to vector<16x4xf32>
    %593 = vector.shape_cast %576 : vector<16x4xf32> to vector<1x16x4xf32>
    tpu.vector_store %arg11[%c0_275, %c0_276, %c12], %593 {strides = array<i32>} : memref<1x16x16xf32, #tpu.memory_space<vmem>>, vector<1x16x4xf32>,
    %c0_277 = arith.constant 0 : index
    %c3_278 = arith.constant 3 : index
    %c0_279 = arith.constant 0 : index
    %c0_280 = arith.constant 0 : index
    %594 = vector.load %arg12[%c0_277, %c3_278, %c0_279, %c0_280] : memref<1x4x4x4xf32, #tpu.memory_space<vmem>>, vector<1x1x4x4xf32>
    %595 = vector.shape_cast %594 : vector<1x1x4x4xf32> to vector<4x4xf32>
    %596 = vector.shape_cast %589 : vector<4x4xf32> to vector<1x1x4x4xf32>
    tpu.vector_store %arg12[%c0_277, %c3_278, %c0_279, %c0_280], %596 {strides = array<i32>} : memref<1x4x4x4xf32, #tpu.memory_space<vmem>>, vector<1x1x4x4xf32>,
    %c0_281 = arith.constant 0 : index
    %c0_282 = arith.constant 0 : index
    %c24 = arith.constant 24 : index
    %597 = vector.load %arg13[%c0_281, %c0_282, %c24] : memref<1x4x32xf32, #tpu.memory_space<vmem>>, vector<1x4x8xf32>
    %598 = vector.shape_cast %597 : vector<1x4x8xf32> to vector<4x8xf32>
    %599 = vector.shape_cast %590 : vector<4x8xf32> to vector<1x4x8xf32>
    tpu.vector_store %arg13[%c0_281, %c0_282, %c24], %599 {strides = array<i32>} : memref<1x4x32xf32, #tpu.memory_space<vmem>>, vector<1x4x8xf32>,
    return
  }
  func.func @transform_0(%arg0: i32) -> (i32, i32, i32) {
    %c0_i32 = arith.constant 0 : i32
    %c0_i32_0 = arith.constant 0 : i32
    %c0_i32_1 = arith.constant 0 : i32
    return %arg0, %c0_i32, %c0_i32_0 : i32, i32, i32
  }
  func.func @transform_1(%arg0: i32) -> (i32, i32, i32) {
    %c0_i32 = arith.constant 0 : i32
    %c0_i32_0 = arith.constant 0 : i32
    %c0_i32_1 = arith.constant 0 : i32
    return %arg0, %c0_i32, %c0_i32_0 : i32, i32, i32
  }
  func.func @transform_2(%arg0: i32) -> (i32, i32) {
    %c0_i32 = arith.constant 0 : i32
    %c0_i32_0 = arith.constant 0 : i32
    %c0_i32_1 = arith.constant 0 : i32
    return %c0_i32, %c0_i32_0 : i32, i32
  }
  func.func @transform_3(%arg0: i32) -> (i32, i32) {
    %c0_i32 = arith.constant 0 : i32
    %c0_i32_0 = arith.constant 0 : i32
    %c0_i32_1 = arith.constant 0 : i32
    return %c0_i32, %c0_i32_0 : i32, i32
  }
  func.func @transform_4(%arg0: i32) -> (i32, i32) {
    %c0_i32 = arith.constant 0 : i32
    %c0_i32_0 = arith.constant 0 : i32
    %c0_i32_1 = arith.constant 0 : i32
    return %c0_i32, %c0_i32_0 : i32, i32
  }
  func.func @transform_5(%arg0: i32) -> (i32, i32) {
    %c0_i32 = arith.constant 0 : i32
    %c0_i32_0 = arith.constant 0 : i32
    %c0_i32_1 = arith.constant 0 : i32
    return %c0_i32, %c0_i32_0 : i32, i32
  }
  func.func @transform_6(%arg0: i32) -> (i32, i32, i32) {
    %c0_i32 = arith.constant 0 : i32
    %c0_i32_0 = arith.constant 0 : i32
    %c0_i32_1 = arith.constant 0 : i32
    %c0_i32_2 = arith.constant 0 : i32
    return %c0_i32, %c0_i32_0, %c0_i32_1 : i32, i32, i32
  }
  func.func @transform_7(%arg0: i32) -> (i32, i32) {
    %c0_i32 = arith.constant 0 : i32
    %c0_i32_0 = arith.constant 0 : i32
    %c0_i32_1 = arith.constant 0 : i32
    return %c0_i32, %c0_i32_0 : i32, i32
  }
  func.func @transform_8(%arg0: i32) -> (i32, i32) {
    %c0_i32 = arith.constant 0 : i32
    %c0_i32_0 = arith.constant 0 : i32
    %c0_i32_1 = arith.constant 0 : i32
    return %c0_i32, %c0_i32_0 : i32, i32
  }
  func.func @transform_9(%arg0: i32) -> (i32, i32) {
    %c0_i32 = arith.constant 0 : i32
    %c0_i32_0 = arith.constant 0 : i32
    %c0_i32_1 = arith.constant 0 : i32
    return %c0_i32, %c0_i32_0 : i32, i32
  }
  func.func @transform_10(%arg0: i32) -> (i32, i32, i32) {
    %c0_i32 = arith.constant 0 : i32
    %c0_i32_0 = arith.constant 0 : i32
    %c0_i32_1 = arith.constant 0 : i32
    return %arg0, %c0_i32, %c0_i32_0 : i32, i32, i32
  }
  func.func @transform_11(%arg0: i32) -> (i32, i32, i32, i32) {
    %c0_i32 = arith.constant 0 : i32
    %c0_i32_0 = arith.constant 0 : i32
    %c0_i32_1 = arith.constant 0 : i32
    %c0_i32_2 = arith.constant 0 : i32
    return %arg0, %c0_i32, %c0_i32_0, %c0_i32_1 : i32, i32, i32, i32
  }
  func.func @transform_12(%arg0: i32) -> (i32, i32, i32) {
    %c0_i32 = arith.constant 0 : i32
    %c0_i32_0 = arith.constant 0 : i32
    %c0_i32_1 = arith.constant 0 : i32
    return %arg0, %c0_i32, %c0_i32_0 : i32, i32, i32
  }
  func.func @transform_13(%arg0: i32) -> (i32, i32, i32) {
    %c0_i32 = arith.constant 0 : i32
    %c0_i32_0 = arith.constant 0 : i32
    %c0_i32_1 = arith.constant 0 : i32
    return %arg0, %c0_i32, %c0_i32_0 : i32, i32, i32
  }
}

</mosaic_0001>

<llo_original>
// kernel: tpu_custom_call.1
$region0: #{tpu_custom_call.1}
  #allocation0 [shape = 'u32[]', space=smem, size = 0x4, offset = 0x4, fixed_abs, tag = 'smem constant byte address 0x4 - core index']
  #allocation1 [shape = 'u32[144,128]{1,0:T(1,128)}', space=vmem, size = 0x12000, scoped, tag = 'internal scratch']
  #allocation2 [shape = 'f32[16,32]{1,0:T(8,128)}', space=vmem, size = 0x2000, scoped, tag = 'scratch operand']
  %s0 = inlined_call_operand.vmem [shape: f32[2,16,32], index: 0, kind: input, shape index: {}]
  %s1 = inlined_call_operand.vmem [shape: f32[2,16,1], index: 1, kind: input, shape index: {}]
  %s2 = inlined_call_operand.hbm [shape: f32[32,32], index: 2, kind: input, shape index: {}]
  %s3 = inlined_call_operand.vmem [shape: f32[1,32], index: 3, kind: input, shape index: {}]
  %s4 = inlined_call_operand.hbm [shape: f32[32,32], index: 4, kind: input, shape index: {}]
  %s5 = inlined_call_operand.vmem [shape: f32[1,32], index: 5, kind: input, shape index: {}]
  %s6 = inlined_call_operand.hbm [shape: f32[4,8,8], index: 6, kind: input, shape index: {}]
  %s7 = inlined_call_operand.vmem [shape: f32[1,8], index: 7, kind: input, shape index: {}]
  %s8 = inlined_call_operand.vmem [shape: f32[1,8], index: 8, kind: input, shape index: {}]
  %s9 = inlined_call_operand.vmem [shape: f32[3,32], index: 9, kind: input, shape index: {}]
  %s10 = inlined_call_operand.hbm [shape: f32[2,16,16], index: 10, kind: output, shape index: {0}]
  %s11 = inlined_call_operand.hbm [shape: f32[2,4,4,4], index: 11, kind: output, shape index: {1}]
  %s12 = inlined_call_operand.hbm [shape: f32[2,4,32], index: 12, kind: output, shape index: {2}]
  %s13 = inlined_call_operand.hbm [shape: f32[2,16,32], index: 13, kind: output, shape index: {3}]
  %14 = xla_tuple %s10, %s11, %s12, %s13
  %s15 = sld [smem:[#allocation0]]
  $region109: #{tpu_custom_call.1} parent=0
    _
  %s17 = ssub.s32 1, %s15
  %s18 = scalar_select 0, %s17, %s15
  $region1: #{tpu_custom_call.1} parent=0
    #allocation3 [shape = 'u8[16384]{0}', space=vmem, size = 0x4000, scoped, tag = 'input window, operand 2, single buffered']
    #allocation4 [shape = 's32[2]{0}', space=sflag, size = 0x8, scoped, tag = 'scoped memory for tpu_custom_call.1']
    #allocation5 [shape = 's32[2]{0}', space=sflag, size = 0x8, scoped, tag = 'scoped memory for tpu_custom_call.1']
    #allocation6 [shape = 'u8[16384]{0}', space=vmem, size = 0x4000, scoped, tag = 'input window, operand 4, single buffered']
    #allocation7 [shape = 's32[1]{0}', space=sflag, size = 0x4, scoped, tag = 'scoped memory for tpu_custom_call.1']
    #allocation8 [shape = 'u8[16384]{0}', space=vmem, size = 0x4000, scoped, tag = 'input window, operand 6, single buffered']
    #allocation9 [shape = 'u8[16384]{0}', space=vmem, size = 0x4000, scoped, tag = 'output window, operand 0']
    #allocation10 [shape = 'u8[16384]{0}', space=vmem, size = 0x4000, scoped, tag = 'output window, operand 1']
    #allocation11 [shape = 's32[2]{0}', space=sflag, size = 0x8, scoped, tag = 'scoped memory for tpu_custom_call.1']
    #allocation12 [shape = 'u8[4096]{0}', space=vmem, size = 0x1000, scoped, tag = 'output window, operand 2']
    #allocation13 [shape = 'u8[16384]{0}', space=vmem, size = 0x4000, scoped, tag = 'output window, operand 3']
    #allocation14 [shape = 's32[2]{0}', space=sflag, size = 0x8, scoped, tag = 'scoped memory for tpu_custom_call.1']
    %19 = vsyncpa [#allocation4], 0
    %20 = vsyncpa [#allocation7], 0
    %21 = vsyncpa [#allocation5], 0
    %s22 = scalar_lea.sflag [#allocation5], 1
    %23 = vsyncpa %s22, 0
    %24 = vsyncpa [#allocation11], 0
    %s25 = scalar_lea.sflag [#allocation11], 1
    %26 = vsyncpa %s25, 0
    %27 = vsyncpa [#allocation14], 0
    %s28 = scalar_lea.sflag [#allocation14], 1
    %29 = vsyncpa %s28, 0
    loop: start=0, step=1, limit=4
    $region2: #{tpu_custom_call.1} parent=1 // loop_pre_header
      _
    $region3: #{tpu_custom_call.1} parent=1 // loop_header
      %s31 = sphi 0, %s35
      %p32 = scmp.ge.s32.totalorder %s31, 4
      %s41 = sphi 0, %s43
      %s44 = sphi 0, %s41
      %s45 = sphi 0, %s44
      %s61 = sphi 0, %s45
      %s67 = sphi 0, %s69
      %s70 = sphi 0, %s67
      %s71 = sphi 0, %s70
      %s87 = sphi 0, %s71
      %s91 = sphi 0, %s91
      %s93 = sphi 0, %s91
      %s94 = sphi 0, %s93
      %s108 = sphi 0, %s94
      %s112 = sphi 0, %s112
      %s114 = sphi 0, %s112
      %s115 = sphi 0, %s114
      %s129 = sphi 0, %s115
      %s133 = sphi 0, %s133
      %s135 = sphi 0, %s133
      %s136 = sphi 0, %s135
      %s150 = sphi 0, %s136
      %s154 = sphi 0, %s154
      %s156 = sphi 0, %s154
      %s157 = sphi 0, %s156
      %s171 = sphi 0, %s157
      %s175 = sphi 0, %s175
      %s177 = sphi 0, %s175
      %s178 = sphi 0, %s177
      %s192 = sphi 0, %s178
      %s196 = sphi 0, %s196
      %s198 = sphi 0, %s196
      %s199 = sphi 0, %s198
      %s213 = sphi 0, %s199
      %s217 = sphi 0, %s217
      %s219 = sphi 0, %s217
      %s220 = sphi 0, %s219
      %s234 = sphi 0, %s220
      %s238 = sphi 0, %s238
      %s240 = sphi 0, %s238
      %s241 = sphi 0, %s240
      %s255 = sphi 0, %s241
      %s261 = sphi 0, %s263
      %s264 = sphi 0, %s261
      %s265 = sphi 0, %s264
      %s281 = sphi 0, %s265
      %s287 = sphi 0, %s289
      %s290 = sphi 0, %s287
      %s291 = sphi 0, %s290
      %s307 = sphi 0, %s291
      %s313 = sphi 0, %s315
      %s316 = sphi 0, %s313
      %s317 = sphi 0, %s316
      %s333 = sphi 0, %s317
      %s339 = sphi 0, %s341
      %s342 = sphi 0, %s339
      %s343 = sphi 0, %s342
      %s359 = sphi 0, %s343
    $region4: #{tpu_custom_call.1} parent=1 // loop_header_branch
      %34 = sbr.rel (%p32) target = $region8
    $region5: #{tpu_custom_call.1} parent=1 // loop_body
      %s36 = ssub.s32 %s31, 1
      %s37 = ssub.s32 %s31, 2
      %s38 = sadd.s32 %s31, 1
      %s39 = ssub.s32 %s31, %s38
      %p40 = scmp.eq.s32.totalorder %s39, 0
      %s42 = sadd.s32 %s41, 1
      %s43 = scalar_select %p40, %s41, %s42
      %p46 = pneg %p40
      %p47 = scmp.eq.s32.totalorder %s31, 1
      %p48 = por %p46, %p47
      %p49 = scmp.ne.s32.totalorder %s41, %s44
      %p50 = scmp.eq.s32.totalorder %s31, 0
      %p51 = por %p49, %p50
      %p52 = scmp.ne.s32.totalorder %s41, %s44
      %p53 = scmp.eq.s32.totalorder %s36, 1
      %p54 = por %p52, %p53
      %p55 = scmp.ne.s32.totalorder %s44, %s45
      %p56 = scmp.eq.s32.totalorder %s36, 0
      %p57 = por %p55, %p56
      %p58 = scmp.ne.s32.totalorder %s44, %s45
      %p59 = scmp.eq.s32.totalorder %s37, 1
      %p60 = por %p58, %p59
      %p62 = scmp.ne.s32.totalorder %s45, %s61
      %p63 = scmp.eq.s32.totalorder %s37, 0
      %p64 = por %p62, %p63
      %s65 = ssub.s32 %s31, %s38
      %p66 = scmp.eq.s32.totalorder %s65, 0
      %s68 = sadd.s32 %s67, 1
      %s69 = scalar_select %p66, %s67, %s68
      %p72 = pneg %p66
      %p73 = scmp.eq.s32.totalorder %s31, 1
      %p74 = por %p72, %p73
      %p75 = scmp.ne.s32.totalorder %s67, %s70
      %p76 = scmp.eq.s32.totalorder %s31, 0
      %p77 = por %p75, %p76
      %p78 = scmp.ne.s32.totalorder %s67, %s70
      %p79 = scmp.eq.s32.totalorder %s36, 1
      %p80 = por %p78, %p79
      %p81 = scmp.ne.s32.totalorder %s70, %s71
      %p82 = scmp.eq.s32.totalorder %s36, 0
      %p83 = por %p81, %p82
      %p84 = scmp.ne.s32.totalorder %s70, %s71
      %p85 = scmp.eq.s32.totalorder %s37, 1
      %p86 = por %p84, %p85
      %p88 = scmp.ne.s32.totalorder %s71, %s87
      %p89 = scmp.eq.s32.totalorder %s37, 0
      %p90 = por %p88, %p89
      %s92 = sadd.s32 %s91, 1
      %p95 = scmp.eq.s32.totalorder %s31, 1
      %p96 = scmp.ne.s32.totalorder %s91, %s93
      %p97 = scmp.eq.s32.totalorder %s31, 0
      %p98 = por %p96, %p97
      %p99 = scmp.ne.s32.totalorder %s91, %s93
      %p100 = scmp.eq.s32.totalorder %s36, 1
      %p101 = por %p99, %p100
      %p102 = scmp.ne.s32.totalorder %s93, %s94
      %p103 = scmp.eq.s32.totalorder %s36, 0
      %p104 = por %p102, %p103
      %p105 = scmp.ne.s32.totalorder %s93, %s94
      %p106 = scmp.eq.s32.totalorder %s37, 1
      %p107 = por %p105, %p106
      %p109 = scmp.ne.s32.totalorder %s94, %s108
      %p110 = scmp.eq.s32.totalorder %s37, 0
      %p111 = por %p109, %p110
      %s113 = sadd.s32 %s112, 1
      %p116 = scmp.eq.s32.totalorder %s31, 1
      %p117 = scmp.ne.s32.totalorder %s112, %s114
      %p118 = scmp.eq.s32.totalorder %s31, 0
      %p119 = por %p117, %p118
      %p120 = scmp.ne.s32.totalorder %s112, %s114
      %p121 = scmp.eq.s32.totalorder %s36, 1
      %p122 = por %p120, %p121
      %p123 = scmp.ne.s32.totalorder %s114, %s115
      %p124 = scmp.eq.s32.totalorder %s36, 0
      %p125 = por %p123, %p124
      %p126 = scmp.ne.s32.totalorder %s114, %s115
      %p127 = scmp.eq.s32.totalorder %s37, 1
      %p128 = por %p126, %p127
      %p130 = scmp.ne.s32.totalorder %s115, %s129
      %p131 = scmp.eq.s32.totalorder %s37, 0
      %p132 = por %p130, %p131
      %s134 = sadd.s32 %s133, 1
      %p137 = scmp.eq.s32.totalorder %s31, 1
      %p138 = scmp.ne.s32.totalorder %s133, %s135
      %p139 = scmp.eq.s32.totalorder %s31, 0
      %p140 = por %p138, %p139
      %p141 = scmp.ne.s32.totalorder %s133, %s135
      %p142 = scmp.eq.s32.totalorder %s36, 1
      %p143 = por %p141, %p142
      %p144 = scmp.ne.s32.totalorder %s135, %s136
      %p145 = scmp.eq.s32.totalorder %s36, 0
      %p146 = por %p144, %p145
      %p147 = scmp.ne.s32.totalorder %s135, %s136
      %p148 = scmp.eq.s32.totalorder %s37, 1
      %p149 = por %p147, %p148
      %p151 = scmp.ne.s32.totalorder %s136, %s150
      %p152 = scmp.eq.s32.totalorder %s37, 0
      %p153 = por %p151, %p152
      %s155 = sadd.s32 %s154, 1
      %p158 = scmp.eq.s32.totalorder %s31, 1
      %p159 = scmp.ne.s32.totalorder %s154, %s156
      %p160 = scmp.eq.s32.totalorder %s31, 0
      %p161 = por %p159, %p160
      %p162 = scmp.ne.s32.totalorder %s154, %s156
      %p163 = scmp.eq.s32.totalorder %s36, 1
      %p164 = por %p162, %p163
      %p165 = scmp.ne.s32.totalorder %s156, %s157
      %p166 = scmp.eq.s32.totalorder %s36, 0
      %p167 = por %p165, %p166
      %p168 = scmp.ne.s32.totalorder %s156, %s157
      %p169 = scmp.eq.s32.totalorder %s37, 1
      %p170 = por %p168, %p169
      %p172 = scmp.ne.s32.totalorder %s157, %s171
      %p173 = scmp.eq.s32.totalorder %s37, 0
      %p174 = por %p172, %p173
      %s176 = sadd.s32 %s175, 1
      %p179 = scmp.eq.s32.totalorder %s31, 1
      %p180 = scmp.ne.s32.totalorder %s175, %s177
      %p181 = scmp.eq.s32.totalorder %s31, 0
      %p182 = por %p180, %p181
      %p183 = scmp.ne.s32.totalorder %s175, %s177
      %p184 = scmp.eq.s32.totalorder %s36, 1
      %p185 = por %p183, %p184
      %p186 = scmp.ne.s32.totalorder %s177, %s178
      %p187 = scmp.eq.s32.totalorder %s36, 0
      %p188 = por %p186, %p187
      %p189 = scmp.ne.s32.totalorder %s177, %s178
      %p190 = scmp.eq.s32.totalorder %s37, 1
      %p191 = por %p189, %p190
      %p193 = scmp.ne.s32.totalorder %s178, %s192
      %p194 = scmp.eq.s32.totalorder %s37, 0
      %p195 = por %p193, %p194
      %s197 = sadd.s32 %s196, 1
      %p200 = scmp.eq.s32.totalorder %s31, 1
      %p201 = scmp.ne.s32.totalorder %s196, %s198
      %p202 = scmp.eq.s32.totalorder %s31, 0
      %p203 = por %p201, %p202
      %p204 = scmp.ne.s32.totalorder %s196, %s198
      %p205 = scmp.eq.s32.totalorder %s36, 1
      %p206 = por %p204, %p205
      %p207 = scmp.ne.s32.totalorder %s198, %s199
      %p208 = scmp.eq.s32.totalorder %s36, 0
      %p209 = por %p207, %p208
      %p210 = scmp.ne.s32.totalorder %s198, %s199
      %p211 = scmp.eq.s32.totalorder %s37, 1
      %p212 = por %p210, %p211
      %p214 = scmp.ne.s32.totalorder %s199, %s213
      %p215 = scmp.eq.s32.totalorder %s37, 0
      %p216 = por %p214, %p215
      %s218 = sadd.s32 %s217, 1
      %p221 = scmp.eq.s32.totalorder %s31, 1
      %p222 = scmp.ne.s32.totalorder %s217, %s219
      %p223 = scmp.eq.s32.totalorder %s31, 0
      %p224 = por %p222, %p223
      %p225 = scmp.ne.s32.totalorder %s217, %s219
      %p226 = scmp.eq.s32.totalorder %s36, 1
      %p227 = por %p225, %p226
      %p228 = scmp.ne.s32.totalorder %s219, %s220
      %p229 = scmp.eq.s32.totalorder %s36, 0
      %p230 = por %p228, %p229
      %p231 = scmp.ne.s32.totalorder %s219, %s220
      %p232 = scmp.eq.s32.totalorder %s37, 1
      %p233 = por %p231, %p232
      %p235 = scmp.ne.s32.totalorder %s220, %s234
      %p236 = scmp.eq.s32.totalorder %s37, 0
      %p237 = por %p235, %p236
      %s239 = sadd.s32 %s238, 1
      %p242 = scmp.eq.s32.totalorder %s31, 1
      %p243 = scmp.ne.s32.totalorder %s238, %s240
      %p244 = scmp.eq.s32.totalorder %s31, 0
      %p245 = por %p243, %p244
      %p246 = scmp.ne.s32.totalorder %s238, %s240
      %p247 = scmp.eq.s32.totalorder %s36, 1
      %p248 = por %p246, %p247
      %p249 = scmp.ne.s32.totalorder %s240, %s241
      %p250 = scmp.eq.s32.totalorder %s36, 0
      %p251 = por %p249, %p250
      %p252 = scmp.ne.s32.totalorder %s240, %s241
      %p253 = scmp.eq.s32.totalorder %s37, 1
      %p254 = por %p252, %p253
      %p256 = scmp.ne.s32.totalorder %s241, %s255
      %p257 = scmp.eq.s32.totalorder %s37, 0
      %p258 = por %p256, %p257
      %s259 = ssub.s32 %s31, %s38
      %p260 = scmp.eq.s32.totalorder %s259, 0
      %s262 = sadd.s32 %s261, 1
      %s263 = scalar_select %p260, %s261, %s262
      %p266 = pneg %p260
      %p267 = scmp.eq.s32.totalorder %s31, 1
      %p268 = por %p266, %p267
      %p269 = scmp.ne.s32.totalorder %s261, %s264
      %p270 = scmp.eq.s32.totalorder %s31, 0
      %p271 = por %p269, %p270
      %p272 = scmp.ne.s32.totalorder %s261, %s264
      %p273 = scmp.eq.s32.totalorder %s36, 1
      %p274 = por %p272, %p273
      %p275 = scmp.ne.s32.totalorder %s264, %s265
      %p276 = scmp.eq.s32.totalorder %s36, 0
      %p277 = por %p275, %p276
      %p278 = scmp.ne.s32.totalorder %s264, %s265
      %p279 = scmp.eq.s32.totalorder %s37, 1
      %p280 = por %p278, %p279
      %p282 = scmp.ne.s32.totalorder %s265, %s281
      %p283 = scmp.eq.s32.totalorder %s37, 0
      %p284 = por %p282, %p283
      %s285 = ssub.s32 %s31, %s38
      %p286 = scmp.eq.s32.totalorder %s285, 0
      %s288 = sadd.s32 %s287, 1
      %s289 = scalar_select %p286, %s287, %s288
      %p292 = pneg %p286
      %p293 = scmp.eq.s32.totalorder %s31, 1
      %p294 = por %p292, %p293
      %p295 = scmp.ne.s32.totalorder %s287, %s290
      %p296 = scmp.eq.s32.totalorder %s31, 0
      %p297 = por %p295, %p296
      %p298 = scmp.ne.s32.totalorder %s287, %s290
      %p299 = scmp.eq.s32.totalorder %s36, 1
      %p300 = por %p298, %p299
      %p301 = scmp.ne.s32.totalorder %s290, %s291
      %p302 = scmp.eq.s32.totalorder %s36, 0
      %p303 = por %p301, %p302
      %p304 = scmp.ne.s32.totalorder %s290, %s291
      %p305 = scmp.eq.s32.totalorder %s37, 1
      %p306 = por %p304, %p305
      %p308 = scmp.ne.s32.totalorder %s291, %s307
      %p309 = scmp.eq.s32.totalorder %s37, 0
      %p310 = por %p308, %p309
      %s311 = ssub.s32 %s31, %s38
      %p312 = scmp.eq.s32.totalorder %s311, 0
      %s314 = sadd.s32 %s313, 1
      %s315 = scalar_select %p312, %s313, %s314
      %p318 = pneg %p312
      %p319 = scmp.eq.s32.totalorder %s31, 1
      %p320 = por %p318, %p319
      %p321 = scmp.ne.s32.totalorder %s313, %s316
      %p322 = scmp.eq.s32.totalorder %s31, 0
      %p323 = por %p321, %p322
      %p324 = scmp.ne.s32.totalorder %s313, %s316
      %p325 = scmp.eq.s32.totalorder %s36, 1
      %p326 = por %p324, %p325
      %p327 = scmp.ne.s32.totalorder %s316, %s317
      %p328 = scmp.eq.s32.totalorder %s36, 0
      %p329 = por %p327, %p328
      %p330 = scmp.ne.s32.totalorder %s316, %s317
      %p331 = scmp.eq.s32.totalorder %s37, 1
      %p332 = por %p330, %p331
      %p334 = scmp.ne.s32.totalorder %s317, %s333
      %p335 = scmp.eq.s32.totalorder %s37, 0
      %p336 = por %p334, %p335
      %s337 = ssub.s32 %s31, %s38
      %p338 = scmp.eq.s32.totalorder %s337, 0
      %s340 = sadd.s32 %s339, 1
      %s341 = scalar_select %p338, %s339, %s340
      %p344 = pneg %p338
      %p345 = scmp.eq.s32.totalorder %s31, 1
      %p346 = por %p344, %p345
      %p347 = scmp.ne.s32.totalorder %s339, %s342
      %p348 = scmp.eq.s32.totalorder %s31, 0
      %p349 = por %p347, %p348
      %p350 = scmp.ne.s32.totalorder %s339, %s342
      %p351 = scmp.eq.s32.totalorder %s36, 1
      %p352 = por %p350, %p351
      %p353 = scmp.ne.s32.totalorder %s342, %s343
      %p354 = scmp.eq.s32.totalorder %s36, 0
      %p355 = por %p353, %p354
      %p356 = scmp.ne.s32.totalorder %s342, %s343
      %p357 = scmp.eq.s32.totalorder %s37, 1
      %p358 = por %p356, %p357
      %p360 = scmp.ne.s32.totalorder %s343, %s359
      %p361 = scmp.eq.s32.totalorder %s37, 0
      %p362 = por %p360, %p361
      %p363 = scmp.le.s32.totalorder 1, %s31
      %p364 = scmp.lt.s32.totalorder %s31, 3
      %p365 = pnand %p363, %p364
      %p366 = pneg %p365
      // Predicated region
      $region9: #{tpu_custom_call.1} parent=5 // pred_check
        _
      $region10: #{tpu_custom_call.1} parent=5 // pred_check_branch
        %368 = sbr.rel (%p365) target = $region12
      $region11: #{tpu_custom_call.1} parent=5 // pred_region
        %s369 = ssub.s32 %s31, 1
        // Predicated region
        $region13: #{tpu_custom_call.1} parent=11 // pred_check
          %p370 = pneg %p104
        $region14: #{tpu_custom_call.1} parent=11 // pred_check_branch
          %372 = sbr.rel (%p370) target = $region16
        $region15: #{tpu_custom_call.1} parent=11 // pred_region
          %s374 = ssub.s32 512, 512
          %375 = vsyncadd [#allocation4], %s374
          %s376 = sshll.u32 [#allocation3], 4
          %s377 = int_to_ptr.vmem [resolvable:$true] %s376
          %382 = dma.hbm_to_vmem [thread:$0]  %s2, 512, %s377, [#allocation4], 128, 128, 8
        $region16: #{tpu_custom_call.1} parent=11 // pred_fallthru
          _
        // Predicated region
        $region17: #{tpu_custom_call.1} parent=11 // pred_check
          %p383 = pneg %p125
        $region18: #{tpu_custom_call.1} parent=11 // pred_check_branch
          %385 = sbr.rel (%p383) target = $region20
        $region19: #{tpu_custom_call.1} parent=11 // pred_region
          _
        $region20: #{tpu_custom_call.1} parent=11 // pred_fallthru
          _
        // Predicated region
        $region21: #{tpu_custom_call.1} parent=11 // pred_check
          %p386 = pneg %p146
        $region22: #{tpu_custom_call.1} parent=11 // pred_check_branch
          %388 = sbr.rel (%p386) target = $region24
        $region23: #{tpu_custom_call.1} parent=11 // pred_region
          %s390 = ssub.s32 512, 512
          %391 = vsyncadd [#allocation7], %s390
          %s392 = sshll.u32 [#allocation6], 4
          %s393 = int_to_ptr.vmem [resolvable:$true] %s392
          %398 = dma.hbm_to_vmem [thread:$0]  %s4, 512, %s393, [#allocation7], 128, 128, 8
        $region24: #{tpu_custom_call.1} parent=11 // pred_fallthru
          _
        // Predicated region
        $region25: #{tpu_custom_call.1} parent=11 // pred_check
          %p399 = pneg %p167
        $region26: #{tpu_custom_call.1} parent=11 // pred_check_branch
          %401 = sbr.rel (%p399) target = $region28
        $region27: #{tpu_custom_call.1} parent=11 // pred_region
          _
        $region28: #{tpu_custom_call.1} parent=11 // pred_fallthru
          _
        // Predicated region
        $region29: #{tpu_custom_call.1} parent=11 // pred_check
          %p402 = pneg %p188
        $region30: #{tpu_custom_call.1} parent=11 // pred_check_branch
          %404 = sbr.rel (%p402) target = $region32
        $region31: #{tpu_custom_call.1} parent=11 // pred_region
          %s406 = ssub.s32 512, 512
          %407 = vsyncadd [#allocation7], %s406
          %s408 = sshll.u32 [#allocation8], 4
          %s409 = int_to_ptr.vmem [resolvable:$true] %s408
          %414 = dma.hbm_to_vmem [thread:$0]  %s6, 512, %s409, [#allocation7], 128, 128, 8
        $region32: #{tpu_custom_call.1} parent=11 // pred_fallthru
          _
        // Predicated region
        $region33: #{tpu_custom_call.1} parent=11 // pred_check
          %p415 = pneg %p209
        $region34: #{tpu_custom_call.1} parent=11 // pred_check_branch
          %417 = sbr.rel (%p415) target = $region36
        $region35: #{tpu_custom_call.1} parent=11 // pred_region
          _
        $region36: #{tpu_custom_call.1} parent=11 // pred_fallthru
          _
        // Predicated region
        $region37: #{tpu_custom_call.1} parent=11 // pred_check
          %p418 = pneg %p230
        $region38: #{tpu_custom_call.1} parent=11 // pred_check_branch
          %420 = sbr.rel (%p418) target = $region40
        $region39: #{tpu_custom_call.1} parent=11 // pred_region
          _
        $region40: #{tpu_custom_call.1} parent=11 // pred_fallthru
          _
        // Predicated region
        $region41: #{tpu_custom_call.1} parent=11 // pred_check
          %p421 = pneg %p251
        $region42: #{tpu_custom_call.1} parent=11 // pred_check_branch
          %423 = sbr.rel (%p421) target = $region44
        $region43: #{tpu_custom_call.1} parent=11 // pred_region
          _
        $region44: #{tpu_custom_call.1} parent=11 // pred_fallthru
          _
      $region12: #{tpu_custom_call.1} parent=5 // pred_fallthru
        _
      %p424 = scmp.lt.s32.totalorder %s31, 2
      // Predicated region
      $region45: #{tpu_custom_call.1} parent=5 // pred_check
        %p425 = pneg %p424
      $region46: #{tpu_custom_call.1} parent=5 // pred_check_branch
        %427 = sbr.rel (%p425) target = $region48
      $region47: #{tpu_custom_call.1} parent=5 // pred_region
        // Predicated region
        $region49: #{tpu_custom_call.1} parent=47 // pred_check
          %p428 = pneg %p51
        $region50: #{tpu_custom_call.1} parent=47 // pred_check_branch
          %430 = sbr.rel (%p428) target = $region52
        $region51: #{tpu_custom_call.1} parent=47 // pred_region
          %p431 = scmp.lt.s32.totalorder %s31, 1
          %s432 = scalar_select %p431, %s31, 1
          %s433 = smul.addr %s432, 2
          %s434 = smul.addr %s433, 8
          %s435 = scalar_lea.vmem %s0, %s434
        $region52: #{tpu_custom_call.1} parent=47 // pred_fallthru
          _
        // Predicated region
        $region53: #{tpu_custom_call.1} parent=47 // pred_check
          %p436 = pneg %p77
        $region54: #{tpu_custom_call.1} parent=47 // pred_check_branch
          %438 = sbr.rel (%p436) target = $region56
        $region55: #{tpu_custom_call.1} parent=47 // pred_region
          %p439 = scmp.lt.s32.totalorder %s31, 1
          %s440 = scalar_select %p439, %s31, 1
          %s441 = smul.addr %s440, 2
          %s442 = smul.addr %s441, 8
          %s443 = scalar_lea.vmem %s1, %s442
        $region56: #{tpu_custom_call.1} parent=47 // pred_fallthru
          _
      $region48: #{tpu_custom_call.1} parent=5 // pred_fallthru
        _
      %p444 = scmp.le.s32.totalorder 1, %s31
      %p445 = scmp.lt.s32.totalorder %s31, 3
      %p446 = pnand %p444, %p445
      %p447 = pneg %p446
      // Predicated region
      $region57: #{tpu_custom_call.1} parent=5 // pred_check
        _
      $region58: #{tpu_custom_call.1} parent=5 // pred_check_branch
        %449 = sbr.rel (%p446) target = $region60
      $region59: #{tpu_custom_call.1} parent=5 // pred_region
        %s450 = ssub.s32 %s31, 1
        // Predicated region
        $region61: #{tpu_custom_call.1} parent=59 // pred_check
          %p451 = pneg %p104
        $region62: #{tpu_custom_call.1} parent=59 // pred_check_branch
          %453 = sbr.rel (%p451) target = $region64
        $region63: #{tpu_custom_call.1} parent=59 // pred_region
          %454 = dma.done [#allocation4], 512
        $region64: #{tpu_custom_call.1} parent=59 // pred_fallthru
          _
        // Predicated region
        $region65: #{tpu_custom_call.1} parent=59 // pred_check
          %p455 = pneg %p146
        $region66: #{tpu_custom_call.1} parent=59 // pred_check_branch
          %457 = sbr.rel (%p455) target = $region68
        $region67: #{tpu_custom_call.1} parent=59 // pred_region
          %458 = dma.done [#allocation7], 512
        $region68: #{tpu_custom_call.1} parent=59 // pred_fallthru
          _
        // Predicated region
        $region69: #{tpu_custom_call.1} parent=59 // pred_check
          %p459 = pneg %p188
        $region70: #{tpu_custom_call.1} parent=59 // pred_check_branch
          %461 = sbr.rel (%p459) target = $region72
        $region71: #{tpu_custom_call.1} parent=59 // pred_region
          %462 = dma.done [#allocation7], 512
        $region72: #{tpu_custom_call.1} parent=59 // pred_fallthru
          _
        %p463 = scmp.lt.s32.totalorder %s36, 1
        %s464 = scalar_select %p463, %s36, 1
        %s465 = smul.addr %s464, 2
        %s466 = smul.addr %s465, 8
        %s467 = scalar_lea.vmem %s0, %s466
        %p468 = pneg %p57
        %p469 = pneg %p54
        %p470 = scmp.lt.s32.totalorder %s36, 1
        %s471 = scalar_select %p470, %s36, 1
        %s472 = smul.addr %s471, 2
        %s473 = smul.addr %s472, 8
        %s474 = scalar_lea.vmem %s1, %s473
        %p475 = pneg %p83
        %p476 = pneg %p80
        %p477 = pneg %p104
        %p478 = pneg %p101
        %p479 = pneg %p125
        %p480 = pneg %p122
        %p481 = pneg %p146
        %p482 = pneg %p143
        %p483 = pneg %p167
        %p484 = pneg %p164
        %p485 = pneg %p188
        %p486 = pneg %p185
        %p487 = pneg %p209
        %p488 = pneg %p206
        %p489 = pneg %p230
        %p490 = pneg %p227
        %p491 = pneg %p251
        %p492 = pneg %p248
        %p493 = pneg %p277
        %p494 = pneg %p274
        %s495 = sand.u32 %s264, 1
        %s496 = scalar_lea.sflag [#allocation5], %s495
        %s497 = sand.u32 %s264, 1
        %s498 = smul.addr %s497, 16
        %s499 = scalar_lea.vmem [#allocation9], %s498
        %p500 = pneg %p303
        %p501 = pneg %p300
        %s502 = sand.u32 %s36, 1
        %s503 = scalar_lea.sflag [#allocation11], %s502
        %s504 = sand.u32 %s290, 1
        %s505 = smul.addr %s504, 16
        %s506 = scalar_lea.vmem [#allocation10], %s505
        %p507 = pneg %p329
        %p508 = pneg %p326
        %s509 = sand.u32 %s36, 1
        %s510 = scalar_lea.sflag [#allocation11], %s509
        %s511 = sand.u32 %s316, 1
        %s512 = smul.addr %s511, 4
        %s513 = scalar_lea.vmem [#allocation12], %s512
        %p514 = pneg %p355
        %p515 = pneg %p352
        %s516 = sand.u32 %s342, 1
        %s517 = scalar_lea.sflag [#allocation14], %s516
        %s518 = sand.u32 %s342, 1
        %s519 = smul.addr %s518, 16
        %s520 = scalar_lea.vmem [#allocation13], %s519
        %p521 = scmp.lt.s32.totalorder %s36, 1
        %s522 = scalar_select %p521, %s36, 1
        %s523 = smul.addr %s522, 2
        %s524 = smul.addr %s523, 8
        %s525 = scalar_lea.vmem %s0, %s524
        %p526 = scmp.lt.s32.totalorder %s36, 1
        %s527 = scalar_select %p526, %s36, 1
        %s528 = smul.addr %s527, 2
        %s529 = smul.addr %s528, 8
        %s530 = scalar_lea.vmem %s1, %s529
        %v531 = vld [vmem:[%s525] sm:$0xff]
        %v532 = vld [vmem:[%s525 + $0x8] sm:$0xff]
        %v533 = vld [vmem:[%s530] sm:$0xff]
        %v534 = vld [vmem:[%s530 + $0x8] sm:$0xff]
        %v535 = vld [vmem:[#allocation3] sm:$0xff]
        %v536 = vld [vmem:[#allocation3 + $0x8] sm:$0xff]
        %v537 = vld [vmem:[#allocation3 + $0x10] sm:$0xff]
        %v538 = vld [vmem:[#allocation3 + $0x18] sm:$0xff]
        %v539 = vld [vmem:[%s3] sm:$0x1]
        %v541 = vlaneseq
        %v542 = vshrl.u32 %v541, 7
        %v543 = vsub.s32 0, %v542
        %v544 = vrot.slane %v539, %v543
        %vm546 = vcmask 261120
        %v548 = vsel %vm546, %v531, 0
        %v551 = vsel %vm546, %v532, 0
        %553 = vmatprep.subr.mxu0 0.0
        %554 = vmatpush1.msra.mxu0 0.0
        %555 = vmatprep.subr.mxu0 0.0
        %556 = vmatpush1.msra.mxu0 0.0
        %557 = vmatprep.subr.mxu0 0.0
        %558 = vmatpush1.msra.mxu0 0.0
        %559 = vmatprep.subr.mxu0 0.0
        %560 = vmatpush1.msra.mxu0 0.0
        %561 = vmatprep.subr.mxu0 0.0
        %562 = vmatpush1.msra.mxu0 0.0
        %563 = vmatprep.subr.mxu0 0.0
        %564 = vmatpush1.msra.mxu0 0.0
        %565 = vmatprep.subr.mxu0 0.0
        %566 = vmatpush1.msra.mxu0 0.0
        %567 = vmatprep.subr.mxu0 0.0
        %568 = vmatpush1.msra.mxu0 0.0
        %569 = vmatprep.subr.mxu0 0.0
        %570 = vmatpush1.msra.mxu0 0.0
        %571 = vmatprep.subr.mxu0 0.0
        %572 = vmatpush1.msra.mxu0 0.0
        %573 = vmatprep.subr.mxu0 0.0
        %574 = vmatpush1.msra.mxu0 0.0
        %575 = vmatprep.subr.mxu0 0.0
        %576 = vmatpush1.msra.mxu0 0.0
        %577 = vmatprep.subr.mxu0 0.0
        %578 = vmatpush1.msra.mxu0 %v538
        %579 = vmatprep.subr.mxu0 0.0
        %580 = vmatpush1.msra.mxu0 %v537
        %581 = vmatprep.subr.mxu0 0.0
        %582 = vmatpush1.msra.mxu0 %v536
        %583 = vmatprep.subr.mxu0 0.0
        %584 = vmatpush1.msra.mxu0 %v535
        %585 = vmatprep.subr.mxu0 0.0
        %586 = vmatpush2.msra.mxu0 0.0
        %587 = vmatprep.subr.mxu0 0.0
        %588 = vmatpush2.msra.mxu0 0.0
        %589 = vmatprep.subr.mxu0 0.0
        %590 = vmatpush2.msra.mxu0 0.0
        %591 = vmatprep.subr.mxu0 0.0
        %592 = vmatpush2.msra.mxu0 0.0
        %593 = vmatprep.subr.mxu0 0.0
        %594 = vmatpush2.msra.mxu0 0.0
        %595 = vmatprep.subr.mxu0 0.0
        %596 = vmatpush2.msra.mxu0 0.0
        %597 = vmatprep.subr.mxu0 0.0
        %598 = vmatpush2.msra.mxu0 0.0
        %599 = vmatprep.subr.mxu0 0.0
        %600 = vmatpush2.msra.mxu0 0.0
        %601 = vmatprep.subr.mxu0 0.0
        %602 = vmatpush2.msra.mxu0 0.0
        %603 = vmatprep.subr.mxu0 0.0
        %604 = vmatpush2.msra.mxu0 0.0
        %605 = vmatprep.subr.mxu0 0.0
        %606 = vmatpush2.msra.mxu0 0.0
        %607 = vmatprep.subr.mxu0 0.0
        %608 = vmatpush2.msra.mxu0 0.0
        %609 = vmatprep.subr.mxu0 0.0
        %610 = vmatpush2.msra.mxu0 0.0
        %611 = vmatprep.subr.mxu0 0.0
        %612 = vmatpush2.msra.mxu0 0.0
        %613 = vmatprep.subr.mxu0 0.0
        %614 = vmatpush2.msra.mxu0 0.0
        %615 = vmatprep.subr.mxu0 0.0
        %616 = vmatpush2.msra.mxu0 0.0
        %617 = vmatprep.mubr.f32.mxu0 0.0
        %618 = vmatmul.mubr.f32.gmra.mxu0 %v548
        %v619 = vpop.f32.mrf.mxu0
        %v620 = vadd.f32 %v544, %v619
        %v621 = vpop.f32.mrf.mxu0
        %622 = vmatprep.mubr.f32.mxu0 0.0
        %623 = vmatmul.mubr.f32.gmra.mxu0 %v551
        %v624 = vpop.f32.mrf.mxu0
        %v625 = vadd.f32 %v544, %v624
        %v626 = vpop.f32.mrf.mxu0
        %627 = vdwg.mxu0
        %629 = vset.pattern.permute.xlu0 0
        %630 = vperm.xlu0 %629, %v533
        %v631 = vpop.permute.xlu0 %630
        %634 = vset.pattern.permute.xlu0 0
        %635 = vperm.xlu0 %634, %v534
        %v636 = vpop.permute.xlu0 %635
        %v638 = vmul.f32 %v620, %v631
        %v639 = vmul.f32 %v625, %v636
        %v640 = vld [vmem:[#allocation6] sm:$0xff]
        %v641 = vld [vmem:[#allocation6 + $0x8] sm:$0xff]
        %v642 = vld [vmem:[#allocation6 + $0x10] sm:$0xff]
        %v643 = vld [vmem:[#allocation6 + $0x18] sm:$0xff]
        %v644 = vld [vmem:[%s5] sm:$0x1]
        %v646 = vlaneseq
        %v647 = vshrl.u32 %v646, 7
        %v648 = vsub.s32 0, %v647
        %v649 = vrot.slane %v644, %v648
        %651 = vmatprep.subr.mxu0 0.0
        %652 = vmatpush1.msra.mxu0 0.0
        %653 = vmatprep.subr.mxu0 0.0
        %654 = vmatpush1.msra.mxu0 0.0
        %655 = vmatprep.subr.mxu0 0.0
        %656 = vmatpush1.msra.mxu0 0.0
        %657 = vmatprep.subr.mxu0 0.0
        %658 = vmatpush1.msra.mxu0 0.0
        %659 = vmatprep.subr.mxu0 0.0
        %660 = vmatpush1.msra.mxu0 0.0
        %661 = vmatprep.subr.mxu0 0.0
        %662 = vmatpush1.msra.mxu0 0.0
        %663 = vmatprep.subr.mxu0 0.0
        %664 = vmatpush1.msra.mxu0 0.0
        %665 = vmatprep.subr.mxu0 0.0
        %666 = vmatpush1.msra.mxu0 0.0
        %667 = vmatprep.subr.mxu0 0.0
        %668 = vmatpush1.msra.mxu0 0.0
        %669 = vmatprep.subr.mxu0 0.0
        %670 = vmatpush1.msra.mxu0 0.0
        %671 = vmatprep.subr.mxu0 0.0
        %672 = vmatpush1.msra.mxu0 0.0
        %673 = vmatprep.subr.mxu0 0.0
        %674 = vmatpush1.msra.mxu0 0.0
        %675 = vmatprep.subr.mxu0 0.0
        %676 = vmatpush1.msra.mxu0 %v643
        %677 = vmatprep.subr.mxu0 0.0
        %678 = vmatpush1.msra.mxu0 %v642
        %679 = vmatprep.subr.mxu0 0.0
        %680 = vmatpush1.msra.mxu0 %v641
        %681 = vmatprep.subr.mxu0 0.0
        %682 = vmatpush1.msra.mxu0 %v640
        %683 = vmatprep.subr.mxu0 0.0
        %684 = vmatpush2.msra.mxu0 0.0
        %685 = vmatprep.subr.mxu0 0.0
        %686 = vmatpush2.msra.mxu0 0.0
        %687 = vmatprep.subr.mxu0 0.0
        %688 = vmatpush2.msra.mxu0 0.0
        %689 = vmatprep.subr.mxu0 0.0
        %690 = vmatpush2.msra.mxu0 0.0
        %691 = vmatprep.subr.mxu0 0.0
        %692 = vmatpush2.msra.mxu0 0.0
        %693 = vmatprep.subr.mxu0 0.0
        %694 = vmatpush2.msra.mxu0 0.0
        %695 = vmatprep.subr.mxu0 0.0
        %696 = vmatpush2.msra.mxu0 0.0
        %697 = vmatprep.subr.mxu0 0.0
        %698 = vmatpush2.msra.mxu0 0.0
        %699 = vmatprep.subr.mxu0 0.0
        %700 = vmatpush2.msra.mxu0 0.0
        %701 = vmatprep.subr.mxu0 0.0
        %702 = vmatpush2.msra.mxu0 0.0
        %703 = vmatprep.subr.mxu0 0.0
        %704 = vmatpush2.msra.mxu0 0.0
        %705 = vmatprep.subr.mxu0 0.0
        %706 = vmatpush2.msra.mxu0 0.0
        %707 = vmatprep.subr.mxu0 0.0
        %708 = vmatpush2.msra.mxu0 0.0
        %709 = vmatprep.subr.mxu0 0.0
        %710 = vmatpush2.msra.mxu0 0.0
        %711 = vmatprep.subr.mxu0 0.0
        %712 = vmatpush2.msra.mxu0 0.0
        %713 = vmatprep.subr.mxu0 0.0
        %714 = vmatpush2.msra.mxu0 0.0
        %715 = vmatprep.mubr.f32.mxu0 0.0
        %716 = vmatmul.mubr.f32.gmra.mxu0 %v548
        %v717 = vpop.f32.mrf.mxu0
        %v718 = vadd.f32 %v649, %v717
        %v719 = vpop.f32.mrf.mxu0
        %720 = vmatprep.mubr.f32.mxu0 0.0
        %721 = vmatmul.mubr.f32.gmra.mxu0 %v551
        %v722 = vpop.f32.mrf.mxu0
        %v723 = vadd.f32 %v649, %v722
        %v724 = vpop.f32.mrf.mxu0
        %725 = vdwg.mxu0
        %v726 = vmul.f32 %v718, %v631
        %v727 = vmul.f32 %v723, %v636
        %v728 = vmul.f32 %v638, 0.59460354
        %v729 = vmul.f32 %v639, 0.59460354
        %730 = vst.msk [vmem:[#allocation2] sm:$0xff] %vm546, %v728
        %731 = vst.msk [vmem:[#allocation2 + $0x8] sm:$0xff] %vm546, %v729
        %v732 = vld [vmem:[%s9] sm:$0x7]
        %v733 = vlaneseq
        %v734 = vshrl.u32 %v733, 7
        %v735 = vadd.s32 %v734, 8
        %v736 = vrot.slane %v726, 7
        %v737 = vrot.slane %v727, 7
        %vm738 = vcmp.lt.s32.totalorder %v734, 1
        %v739 = vsel %vm738, %v736, %v737
        %v740 = vsel %vm738, %v737, %v736
        %v741 = vadd.s32 %v734, 4294967295
        %v742 = vadd.s32 %v735, 4294967295
        %vm743 = vcmp.ge.s32.totalorder %v741, 0
        %vm744 = vcmp.ge.s32.totalorder %v742, 0
        %vm745 = vcmp.lt.s32.totalorder %v741, 16
        %vm746 = vcmp.lt.s32.totalorder %v742, 16
        %vm747 = vmand %vm743, %vm745
        %vm748 = vmand %vm744, %vm746
        %v749 = vsel %vm747, 1, 0
        %v750 = vsel %vm748, 1, 0
        %vm751 = vcmp.eq.s32.totalorder %v749, 1
        %vm752 = vcmp.eq.s32.totalorder %v750, 1
        %v753 = vsel %vm751, %v740, 0.0
        %v754 = vsel %vm752, %v739, 0.0
        %v755 = vlaneseq
        %v756 = vshrl.u32 %v755, 7
        %v757 = vsub.s32 0, %v756
        %v758 = vrot.slane %v732, %v757
        %v759 = vmul.f32 %v753, %v758
        %v760 = vmul.f32 %v754, %v758
        %v761 = vadd.f32 %v759, 0.0
        %v762 = vadd.f32 %v760, 0.0
        %vm763 = vcmp.ge.s32.totalorder %v734, 0
        %vm764 = vcmp.ge.s32.totalorder %v735, 0
        %vm765 = vcmp.lt.s32.totalorder %v734, 16
        %vm766 = vcmp.lt.s32.totalorder %v735, 16
        %vm767 = vmand %vm763, %vm765
        %vm768 = vmand %vm764, %vm766
        %v769 = vsel %vm767, 1, 0
        %v770 = vsel %vm768, 1, 0
        %vm771 = vcmp.eq.s32.totalorder %v769, 1
        %vm772 = vcmp.eq.s32.totalorder %v770, 1
        %v773 = vsel %vm771, %v726, 0.0
        %v774 = vsel %vm772, %v727, 0.0
        %v775 = vlaneseq
        %v776 = vshrl.u32 %v775, 7
        %v777 = vsub.s32 1, %v776
        %v778 = vrot.slane %v732, %v777
        %v779 = vmul.f32 %v773, %v778
        %v780 = vmul.f32 %v774, %v778
        %v781 = vadd.f32 %v761, %v779
        %v782 = vadd.f32 %v762, %v780
        %v783 = vrot.slane %v726, 1
        %v784 = vrot.slane %v727, 1
        %vm785 = vcmp.lt.s32.totalorder %v734, 7
        %v786 = vsel %vm785, %v783, %v784
        %v787 = vsel %vm785, %v784, %v783
        %v788 = vadd.s32 %v734, 1
        %v789 = vadd.s32 %v735, 1
        %vm790 = vcmp.ge.s32.totalorder %v788, 0
        %vm791 = vcmp.ge.s32.totalorder %v789, 0
        %vm792 = vcmp.lt.s32.totalorder %v788, 16
        %vm793 = vcmp.lt.s32.totalorder %v789, 16
        %vm794 = vmand %vm790, %vm792
        %vm795 = vmand %vm791, %vm793
        %v796 = vsel %vm794, 1, 0
        %v797 = vsel %vm795, 1, 0
        %vm798 = vcmp.eq.s32.totalorder %v796, 1
        %vm799 = vcmp.eq.s32.totalorder %v797, 1
        %v800 = vsel %vm798, %v786, 0.0
        %v801 = vsel %vm799, %v787, 0.0
        %v802 = vlaneseq
        %v803 = vshrl.u32 %v802, 7
        %v804 = vsub.s32 2, %v803
        %v805 = vrot.slane %v732, %v804
        %v806 = vmul.f32 %v800, %v805
        %v807 = vmul.f32 %v801, %v805
        %v808 = vadd.f32 %v781, %v806
        %v809 = vadd.f32 %v782, %v807
        %810 = vst.msk [vmem:[%s520] sm:$0xff] %vm546, %v808
        %811 = vst.msk [vmem:[%s520 + $0x8] sm:$0xff] %vm546, %v809
        %v812 = vld [vmem:[#allocation2] ss:$4 sm:$0xf]
        %s813 = scalar_lea.vmem [#allocation2], 1
        %v814 = vld [vmem:[%s813] ss:$4 sm:$0xf]
        %s815 = scalar_lea.vmem [#allocation2], 2
        %v816 = vld [vmem:[%s815] ss:$4 sm:$0xf]
        %s817 = scalar_lea.vmem [#allocation2], 3
        %v818 = vld [vmem:[%s817] ss:$4 sm:$0xf]
        %v819 = vld [vmem:[#allocation8] sm:$0xff]
        %s820 = scalar_lea.vmem [#allocation8], 8
        %v821 = vld [vmem:[%s820] sm:$0xff]
        %vm822 = vcmask 64512
        %v824 = vsel %vm822, %v814, 0
        %826 = vmatprep.subr.mxu0 0.0
        %827 = vmatpush1.msra.mxu0 0.0
        %828 = vmatprep.subr.mxu0 0.0
        %829 = vmatpush1.msra.mxu0 0.0
        %830 = vmatprep.subr.mxu0 0.0
        %831 = vmatpush1.msra.mxu0 0.0
        %832 = vmatprep.subr.mxu0 0.0
        %833 = vmatpush1.msra.mxu0 0.0
        %834 = vmatprep.subr.mxu0 0.0
        %835 = vmatpush1.msra.mxu0 0.0
        %836 = vmatprep.subr.mxu0 0.0
        %837 = vmatpush1.msra.mxu0 0.0
        %838 = vmatprep.subr.mxu0 0.0
        %839 = vmatpush1.msra.mxu0 0.0
        %840 = vmatprep.subr.mxu0 0.0
        %841 = vmatpush1.msra.mxu0 0.0
        %842 = vmatprep.subr.mxu0 0.0
        %843 = vmatpush1.msra.mxu0 0.0
        %844 = vmatprep.subr.mxu0 0.0
        %845 = vmatpush1.msra.mxu0 0.0
        %846 = vmatprep.subr.mxu0 0.0
        %847 = vmatpush1.msra.mxu0 0.0
        %848 = vmatprep.subr.mxu0 0.0
        %849 = vmatpush1.msra.mxu0 0.0
        %850 = vmatprep.subr.mxu0 0.0
        %851 = vmatpush1.msra.mxu0 0.0
        %852 = vmatprep.subr.mxu0 0.0
        %853 = vmatpush1.msra.mxu0 0.0
        %854 = vmatprep.subr.mxu0 0.0
        %855 = vmatpush1.msra.mxu0 0.0
        %856 = vmatprep.subr.mxu0 0.0
        %857 = vmatpush1.msra.mxu0 %v821
        %858 = vmatprep.subr.mxu0 0.0
        %859 = vmatpush2.msra.mxu0 0.0
        %860 = vmatprep.subr.mxu0 0.0
        %861 = vmatpush2.msra.mxu0 0.0
        %862 = vmatprep.subr.mxu0 0.0
        %863 = vmatpush2.msra.mxu0 0.0
        %864 = vmatprep.subr.mxu0 0.0
        %865 = vmatpush2.msra.mxu0 0.0
        %866 = vmatprep.subr.mxu0 0.0
        %867 = vmatpush2.msra.mxu0 0.0
        %868 = vmatprep.subr.mxu0 0.0
        %869 = vmatpush2.msra.mxu0 0.0
        %870 = vmatprep.subr.mxu0 0.0
        %871 = vmatpush2.msra.mxu0 0.0
        %872 = vmatprep.subr.mxu0 0.0
        %873 = vmatpush2.msra.mxu0 0.0
        %874 = vmatprep.subr.mxu0 0.0
        %875 = vmatpush2.msra.mxu0 0.0
        %876 = vmatprep.subr.mxu0 0.0
        %877 = vmatpush2.msra.mxu0 0.0
        %878 = vmatprep.subr.mxu0 0.0
        %879 = vmatpush2.msra.mxu0 0.0
        %880 = vmatprep.subr.mxu0 0.0
        %881 = vmatpush2.msra.mxu0 0.0
        %882 = vmatprep.subr.mxu0 0.0
        %883 = vmatpush2.msra.mxu0 0.0
        %884 = vmatprep.subr.mxu0 0.0
        %885 = vmatpush2.msra.mxu0 0.0
        %886 = vmatprep.subr.mxu0 0.0
        %887 = vmatpush2.msra.mxu0 0.0
        %888 = vmatprep.subr.mxu0 0.0
        %889 = vmatpush2.msra.mxu0 0.0
        %890 = vmatprep.mubr.f32.mxu0 0.0
        %891 = vmatmul.mubr.f32.gmra.mxu0 %v824
        %v892 = vpop.f32.mrf.mxu0
        %v893 = vadd.f32 0.0, %v892
        %v894 = vpop.f32.mrf.mxu0
        %895 = vdwg.mxu0
        %v897 = vsel %vm822, %v812, 0
        %899 = vmatprep.subr.mxu0 0.0
        %900 = vmatpush1.msra.mxu0 0.0
        %901 = vmatprep.subr.mxu0 0.0
        %902 = vmatpush1.msra.mxu0 0.0
        %903 = vmatprep.subr.mxu0 0.0
        %904 = vmatpush1.msra.mxu0 0.0
        %905 = vmatprep.subr.mxu0 0.0
        %906 = vmatpush1.msra.mxu0 0.0
        %907 = vmatprep.subr.mxu0 0.0
        %908 = vmatpush1.msra.mxu0 0.0
        %909 = vmatprep.subr.mxu0 0.0
        %910 = vmatpush1.msra.mxu0 0.0
        %911 = vmatprep.subr.mxu0 0.0
        %912 = vmatpush1.msra.mxu0 0.0
        %913 = vmatprep.subr.mxu0 0.0
        %914 = vmatpush1.msra.mxu0 0.0
        %915 = vmatprep.subr.mxu0 0.0
        %916 = vmatpush1.msra.mxu0 0.0
        %917 = vmatprep.subr.mxu0 0.0
        %918 = vmatpush1.msra.mxu0 0.0
        %919 = vmatprep.subr.mxu0 0.0
        %920 = vmatpush1.msra.mxu0 0.0
        %921 = vmatprep.subr.mxu0 0.0
        %922 = vmatpush1.msra.mxu0 0.0
        %923 = vmatprep.subr.mxu0 0.0
        %924 = vmatpush1.msra.mxu0 0.0
        %925 = vmatprep.subr.mxu0 0.0
        %926 = vmatpush1.msra.mxu0 0.0
        %927 = vmatprep.subr.mxu0 0.0
        %928 = vmatpush1.msra.mxu0 0.0
        %929 = vmatprep.subr.mxu0 0.0
        %930 = vmatpush1.msra.mxu0 %v819
        %931 = vmatprep.subr.mxu0 0.0
        %932 = vmatpush2.msra.mxu0 0.0
        %933 = vmatprep.subr.mxu0 0.0
        %934 = vmatpush2.msra.mxu0 0.0
        %935 = vmatprep.subr.mxu0 0.0
        %936 = vmatpush2.msra.mxu0 0.0
        %937 = vmatprep.subr.mxu0 0.0
        %938 = vmatpush2.msra.mxu0 0.0
        %939 = vmatprep.subr.mxu0 0.0
        %940 = vmatpush2.msra.mxu0 0.0
        %941 = vmatprep.subr.mxu0 0.0
        %942 = vmatpush2.msra.mxu0 0.0
        %943 = vmatprep.subr.mxu0 0.0
        %944 = vmatpush2.msra.mxu0 0.0
        %945 = vmatprep.subr.mxu0 0.0
        %946 = vmatpush2.msra.mxu0 0.0
        %947 = vmatprep.subr.mxu0 0.0
        %948 = vmatpush2.msra.mxu0 0.0
        %949 = vmatprep.subr.mxu0 0.0
        %950 = vmatpush2.msra.mxu0 0.0
        %951 = vmatprep.subr.mxu0 0.0
        %952 = vmatpush2.msra.mxu0 0.0
        %953 = vmatprep.subr.mxu0 0.0
        %954 = vmatpush2.msra.mxu0 0.0
        %955 = vmatprep.subr.mxu0 0.0
        %956 = vmatpush2.msra.mxu0 0.0
        %957 = vmatprep.subr.mxu0 0.0
        %958 = vmatpush2.msra.mxu0 0.0
        %959 = vmatprep.subr.mxu0 0.0
        %960 = vmatpush2.msra.mxu0 0.0
        %961 = vmatprep.subr.mxu0 0.0
        %962 = vmatpush2.msra.mxu0 0.0
        %963 = vmatprep.mubr.f32.mxu0 0.0
        %964 = vmatmul.mubr.f32.gmra.mxu0 %v897
        %v965 = vpop.f32.mrf.mxu0
        %v966 = vadd.f32 %v893, %v965
        %v967 = vpop.f32.mrf.mxu0
        %968 = vdwg.mxu0
        %s969 = scalar_lea.vmem [#allocation8], 16
        %v970 = vld [vmem:[%s969] sm:$0xff]
        %v972 = vsel %vm822, %v816, 0
        %974 = vmatprep.subr.mxu0 0.0
        %975 = vmatpush1.msra.mxu0 0.0
        %976 = vmatprep.subr.mxu0 0.0
        %977 = vmatpush1.msra.mxu0 0.0
        %978 = vmatprep.subr.mxu0 0.0
        %979 = vmatpush1.msra.mxu0 0.0
        %980 = vmatprep.subr.mxu0 0.0
        %981 = vmatpush1.msra.mxu0 0.0
        %982 = vmatprep.subr.mxu0 0.0
        %983 = vmatpush1.msra.mxu0 0.0
        %984 = vmatprep.subr.mxu0 0.0
        %985 = vmatpush1.msra.mxu0 0.0
        %986 = vmatprep.subr.mxu0 0.0
        %987 = vmatpush1.msra.mxu0 0.0
        %988 = vmatprep.subr.mxu0 0.0
        %989 = vmatpush1.msra.mxu0 0.0
        %990 = vmatprep.subr.mxu0 0.0
        %991 = vmatpush1.msra.mxu0 0.0
        %992 = vmatprep.subr.mxu0 0.0
        %993 = vmatpush1.msra.mxu0 0.0
        %994 = vmatprep.subr.mxu0 0.0
        %995 = vmatpush1.msra.mxu0 0.0
        %996 = vmatprep.subr.mxu0 0.0
        %997 = vmatpush1.msra.mxu0 0.0
        %998 = vmatprep.subr.mxu0 0.0
        %999 = vmatpush1.msra.mxu0 0.0
        %1000 = vmatprep.subr.mxu0 0.0
        %1001 = vmatpush1.msra.mxu0 0.0
        %1002 = vmatprep.subr.mxu0 0.0
        %1003 = vmatpush1.msra.mxu0 0.0
        %1004 = vmatprep.subr.mxu0 0.0
        %1005 = vmatpush1.msra.mxu0 %v970
        %1006 = vmatprep.subr.mxu0 0.0
        %1007 = vmatpush2.msra.mxu0 0.0
        %1008 = vmatprep.subr.mxu0 0.0
        %1009 = vmatpush2.msra.mxu0 0.0
        %1010 = vmatprep.subr.mxu0 0.0
        %1011 = vmatpush2.msra.mxu0 0.0
        %1012 = vmatprep.subr.mxu0 0.0
        %1013 = vmatpush2.msra.mxu0 0.0
        %1014 = vmatprep.subr.mxu0 0.0
        %1015 = vmatpush2.msra.mxu0 0.0
        %1016 = vmatprep.subr.mxu0 0.0
        %1017 = vmatpush2.msra.mxu0 0.0
        %1018 = vmatprep.subr.mxu0 0.0
        %1019 = vmatpush2.msra.mxu0 0.0
        %1020 = vmatprep.subr.mxu0 0.0
        %1021 = vmatpush2.msra.mxu0 0.0
        %1022 = vmatprep.subr.mxu0 0.0
        %1023 = vmatpush2.msra.mxu0 0.0
        %1024 = vmatprep.subr.mxu0 0.0
        %1025 = vmatpush2.msra.mxu0 0.0
        %1026 = vmatprep.subr.mxu0 0.0
        %1027 = vmatpush2.msra.mxu0 0.0
        %1028 = vmatprep.subr.mxu0 0.0
        %1029 = vmatpush2.msra.mxu0 0.0
        %1030 = vmatprep.subr.mxu0 0.0
        %1031 = vmatpush2.msra.mxu0 0.0
        %1032 = vmatprep.subr.mxu0 0.0
        %1033 = vmatpush2.msra.mxu0 0.0
        %1034 = vmatprep.subr.mxu0 0.0
        %1035 = vmatpush2.msra.mxu0 0.0
        %1036 = vmatprep.subr.mxu0 0.0
        %1037 = vmatpush2.msra.mxu0 0.0
        %1038 = vmatprep.mubr.f32.mxu0 0.0
        %1039 = vmatmul.mubr.f32.gmra.mxu0 %v972
        %v1040 = vpop.f32.mrf.mxu0
        %v1041 = vadd.f32 0.0, %v1040
        %v1042 = vpop.f32.mrf.mxu0
        %1043 = vdwg.mxu0
        %v1044 = vadd.f32 %v966, %v1041
        %s1045 = scalar_lea.vmem [#allocation8], 24
        %v1046 = vld [vmem:[%s1045] sm:$0xff]
        %v1048 = vsel %vm822, %v818, 0
        %1050 = vmatprep.subr.mxu0 0.0
        %1051 = vmatpush1.msra.mxu0 0.0
        %1052 = vmatprep.subr.mxu0 0.0
        %1053 = vmatpush1.msra.mxu0 0.0
        %1054 = vmatprep.subr.mxu0 0.0
        %1055 = vmatpush1.msra.mxu0 0.0
        %1056 = vmatprep.subr.mxu0 0.0
        %1057 = vmatpush1.msra.mxu0 0.0
        %1058 = vmatprep.subr.mxu0 0.0
        %1059 = vmatpush1.msra.mxu0 0.0
        %1060 = vmatprep.subr.mxu0 0.0
        %1061 = vmatpush1.msra.mxu0 0.0
        %1062 = vmatprep.subr.mxu0 0.0
        %1063 = vmatpush1.msra.mxu0 0.0
        %1064 = vmatprep.subr.mxu0 0.0
        %1065 = vmatpush1.msra.mxu0 0.0
        %1066 = vmatprep.subr.mxu0 0.0
        %1067 = vmatpush1.msra.mxu0 0.0
        %1068 = vmatprep.subr.mxu0 0.0
        %1069 = vmatpush1.msra.mxu0 0.0
        %1070 = vmatprep.subr.mxu0 0.0
        %1071 = vmatpush1.msra.mxu0 0.0
        %1072 = vmatprep.subr.mxu0 0.0
        %1073 = vmatpush1.msra.mxu0 0.0
        %1074 = vmatprep.subr.mxu0 0.0
        %1075 = vmatpush1.msra.mxu0 0.0
        %1076 = vmatprep.subr.mxu0 0.0
        %1077 = vmatpush1.msra.mxu0 0.0
        %1078 = vmatprep.subr.mxu0 0.0
        %1079 = vmatpush1.msra.mxu0 0.0
        %1080 = vmatprep.subr.mxu0 0.0
        %1081 = vmatpush1.msra.mxu0 %v1046
        %1082 = vmatprep.subr.mxu0 0.0
        %1083 = vmatpush2.msra.mxu0 0.0
        %1084 = vmatprep.subr.mxu0 0.0
        %1085 = vmatpush2.msra.mxu0 0.0
        %1086 = vmatprep.subr.mxu0 0.0
        %1087 = vmatpush2.msra.mxu0 0.0
        %1088 = vmatprep.subr.mxu0 0.0
        %1089 = vmatpush2.msra.mxu0 0.0
        %1090 = vmatprep.subr.mxu0 0.0
        %1091 = vmatpush2.msra.mxu0 0.0
        %1092 = vmatprep.subr.mxu0 0.0
        %1093 = vmatpush2.msra.mxu0 0.0
        %1094 = vmatprep.subr.mxu0 0.0
        %1095 = vmatpush2.msra.mxu0 0.0
        %1096 = vmatprep.subr.mxu0 0.0
        %1097 = vmatpush2.msra.mxu0 0.0
        %1098 = vmatprep.subr.mxu0 0.0
        %1099 = vmatpush2.msra.mxu0 0.0
        %1100 = vmatprep.subr.mxu0 0.0
        %1101 = vmatpush2.msra.mxu0 0.0
        %1102 = vmatprep.subr.mxu0 0.0
        %1103 = vmatpush2.msra.mxu0 0.0
        %1104 = vmatprep.subr.mxu0 0.0
        %1105 = vmatpush2.msra.mxu0 0.0
        %1106 = vmatprep.subr.mxu0 0.0
        %1107 = vmatpush2.msra.mxu0 0.0
        %1108 = vmatprep.subr.mxu0 0.0
        %1109 = vmatpush2.msra.mxu0 0.0
        %1110 = vmatprep.subr.mxu0 0.0
        %1111 = vmatpush2.msra.mxu0 0.0
        %1112 = vmatprep.subr.mxu0 0.0
        %1113 = vmatpush2.msra.mxu0 0.0
        %1114 = vmatprep.mubr.f32.mxu0 0.0
        %1115 = vmatmul.mubr.f32.gmra.mxu0 %v1048
        %v1116 = vpop.f32.mrf.mxu0
        %v1117 = vadd.f32 0.0, %v1116
        %v1118 = vpop.f32.mrf.mxu0
        %1119 = vdwg.mxu0
        %v1120 = vadd.f32 %v1044, %v1117
        %vm1121 = vcmask 60416
        %v1122 = vsel %vm1121, %v1120, 0.0
        %1123 = vadd.xlane.f32.xlu0 %v1122
        %v1124 = vpop.xlane.xlu0 %1123
        %v1125 = vrcp.pop 8.0
        %v1126 = vmul.f32 %v1124, %v1125
        %v1127 = vsub.f32 %v1120, %v1126
        %v1128 = vmul.f32 %v1127, %v1127
        %v1129 = vsel %vm1121, %v1128, 0.0
        %1130 = vadd.xlane.f32.xlu0 %v1129
        %v1131 = vpop.xlane.xlu0 %1130
        %v1132 = vmul.f32 %v1131, %v1125
        %v1133 = vadd.f32 %v1132, 1e-05
        %v1134 = vrsqrt.pop %v1133
        %v1135 = vmul.f32 %v1127, %v1134
        %v1136 = vld [vmem:[%s7] sm:$0x1]
        %v1138 = vlaneseq
        %v1139 = vshrl.u32 %v1138, 7
        %v1140 = vsub.s32 0, %v1139
        %v1141 = vrot.slane %v1136, %v1140
        %v1143 = vmul.f32 %v1135, %v1141
        %v1144 = vld [vmem:[%s8] sm:$0x1]
        %v1146 = vlaneseq
        %v1147 = vshrl.u32 %v1146, 7
        %v1148 = vsub.s32 0, %v1147
        %v1149 = vrot.slane %v1144, %v1148
        %v1151 = vadd.f32 %v1143, %v1149
        %v1152 = vmul.f32 %v1151, 0.70710677
        %v1153 = vand.u32 2147483647, %v1152
        %v1154 = vmul.f32 %v1153, 0.3275911
        %v1155 = vadd.f32 %v1154, 1.0
        %v1156 = vrcp.pop %v1155
        %v1157 = vmul.f32 1.0, %v1156
        %v1158 = vmul.f32 %v1157, 1.0614054
        %v1159 = vadd.f32 %v1158, -1.4531521
        %v1160 = vmul.f32 %v1157, %v1159
        %v1161 = vadd.f32 %v1160, 1.4214138
        %v1162 = vmul.f32 %v1157, %v1161
        %v1163 = vadd.f32 %v1162, -0.28449672
        %v1164 = vmul.f32 %v1157, %v1163
        %v1165 = vadd.f32 %v1164, 0.2548296
        %v1166 = vmul.f32 %v1157, %v1165
        %v1167 = vsub.f32 0.0, %v1153
        %v1168 = vmul.f32 %v1167, %v1153
        %v1169 = vmul.f32 %v1168, 1.442695
        %v1170 = vpow.pop %v1169
        %v1171 = vmul.f32 %v1166, %v1170
        %v1172 = vsub.f32 1.0, %v1171
        %vm1173 = vcmp.lt.f32.partialorder %v1152, 0.0
        %v1174 = vsub.f32 0.0, %v1172
        %v1175 = vsel %vm1173, %v1174, %v1172
        %v1176 = vmul.f32 %v1151, 0.5
        %v1177 = vadd.f32 %v1175, 1.0
        %v1178 = vmul.f32 %v1176, %v1177
        %v1179 = vmul.f32 %v728, %v728
        %v1180 = vmul.f32 %v729, %v729
        %v1181 = vsel %vm822, %v1179, 0.0
        %1182 = vadd.xlane.f32.xlu0 %v1181
        %v1183 = vpop.xlane.xlu0 %1182
        %v1184 = vsel %vm822, %v1180, 0.0
        %1185 = vadd.xlane.f32.xlu0 %v1184
        %v1186 = vpop.xlane.xlu0 %1185
        %v1187 = vmul.f32 %v1178, %v1178
        %v1188 = vsel %vm1121, %v1187, 0.0
        %1189 = vadd.xlane.f32.xlu0 %v1188
        %v1190 = vpop.xlane.xlu0 %1189
        %v1192 = vsel %vm822, %v728, 0
        %v1195 = vsel %vm822, %v729, 0
        %v1198 = vsel %vm822, %v1178, 0
        %1200 = vmatprep.subr.mxu0 0.0
        %1201 = vmatpush1.xpose.msra.mxu0 0.0
        %1202 = vmatprep.subr.mxu0 0.0
        %1203 = vmatpush1.xpose.msra.mxu0 0.0
        %1204 = vmatprep.subr.mxu0 0.0
        %1205 = vmatpush1.xpose.msra.mxu0 0.0
        %1206 = vmatprep.subr.mxu0 0.0
        %1207 = vmatpush1.xpose.msra.mxu0 0.0
        %1208 = vmatprep.subr.mxu0 0.0
        %1209 = vmatpush1.xpose.msra.mxu0 0.0
        %1210 = vmatprep.subr.mxu0 0.0
        %1211 = vmatpush1.xpose.msra.mxu0 0.0
        %1212 = vmatprep.subr.mxu0 0.0
        %1213 = vmatpush1.xpose.msra.mxu0 0.0
        %1214 = vmatprep.subr.mxu0 0.0
        %1215 = vmatpush1.xpose.msra.mxu0 0.0
        %1216 = vmatprep.subr.mxu0 0.0
        %1217 = vmatpush1.xpose.msra.mxu0 0.0
        %1218 = vmatprep.subr.mxu0 0.0
        %1219 = vmatpush1.xpose.msra.mxu0 0.0
        %1220 = vmatprep.subr.mxu0 0.0
        %1221 = vmatpush1.xpose.msra.mxu0 0.0
        %1222 = vmatprep.subr.mxu0 0.0
        %1223 = vmatpush1.xpose.msra.mxu0 0.0
        %1224 = vmatprep.subr.mxu0 0.0
        %1225 = vmatpush1.xpose.msra.mxu0 0.0
        %1226 = vmatprep.subr.mxu0 0.0
        %1227 = vmatpush1.xpose.msra.mxu0 0.0
        %1228 = vmatprep.subr.mxu0 0.0
        %1229 = vmatpush1.xpose.msra.mxu0 0.0
        %1230 = vmatprep.subr.mxu0 0.0
        %1231 = vmatpush1.xpose.msra.mxu0 %v1198
        %1232 = vmatprep.subr.mxu0 0.0
        %1233 = vmatpush2.xpose.msra.mxu0 0.0
        %1234 = vmatprep.subr.mxu0 0.0
        %1235 = vmatpush2.xpose.msra.mxu0 0.0
        %1236 = vmatprep.subr.mxu0 0.0
        %1237 = vmatpush2.xpose.msra.mxu0 0.0
        %1238 = vmatprep.subr.mxu0 0.0
        %1239 = vmatpush2.xpose.msra.mxu0 0.0
        %1240 = vmatprep.subr.mxu0 0.0
        %1241 = vmatpush2.xpose.msra.mxu0 0.0
        %1242 = vmatprep.subr.mxu0 0.0
        %1243 = vmatpush2.xpose.msra.mxu0 0.0
        %1244 = vmatprep.subr.mxu0 0.0
        %1245 = vmatpush2.xpose.msra.mxu0 0.0
        %1246 = vmatprep.subr.mxu0 0.0
        %1247 = vmatpush2.xpose.msra.mxu0 0.0
        %1248 = vmatprep.subr.mxu0 0.0
        %1249 = vmatpush2.xpose.msra.mxu0 0.0
        %1250 = vmatprep.subr.mxu0 0.0
        %1251 = vmatpush2.xpose.msra.mxu0 0.0
        %1252 = vmatprep.subr.mxu0 0.0
        %1253 = vmatpush2.xpose.msra.mxu0 0.0
        %1254 = vmatprep.subr.mxu0 0.0
        %1255 = vmatpush2.xpose.msra.mxu0 0.0
        %1256 = vmatprep.subr.mxu0 0.0
        %1257 = vmatpush2.xpose.msra.mxu0 0.0
        %1258 = vmatprep.subr.mxu0 0.0
        %1259 = vmatpush2.xpose.msra.mxu0 0.0
        %1260 = vmatprep.subr.mxu0 0.0
        %1261 = vmatpush2.xpose.msra.mxu0 0.0
        %1262 = vmatprep.subr.mxu0 0.0
        %1263 = vmatpush2.xpose.msra.mxu0 0.0
        %1264 = vmatprep.mubr.f32.mxu0 0.0
        %1265 = vmatmul.mubr.f32.gmra.mxu0 %v1192
        %v1266 = vpop.f32.mrf.mxu0
        %v1267 = vadd.f32 0.0, %v1266
        %v1268 = vpop.f32.mrf.mxu0
        %1269 = vmatprep.mubr.f32.mxu0 0.0
        %1270 = vmatmul.mubr.f32.gmra.mxu0 %v1195
        %v1271 = vpop.f32.mrf.mxu0
        %v1272 = vadd.f32 0.0, %v1271
        %v1273 = vpop.f32.mrf.mxu0
        %1274 = vdwg.mxu0
        %1275 = vxpose.xlu0.b32.start [1/16] %v1190, 128
        %1276 = vxpose.xlu0.b32.cont [2/16] 0.0, 128
        %1277 = vxpose.xlu0.b32.cont [3/16] 0.0, 128
        %1278 = vxpose.xlu0.b32.cont [4/16] 0.0, 128
        %1279 = vxpose.xlu0.b32.cont [5/16] 0.0, 128
        %1280 = vxpose.xlu0.b32.cont [6/16] 0.0, 128
        %1281 = vxpose.xlu0.b32.cont [7/16] 0.0, 128
        %1282 = vxpose.xlu0.b32.cont [8/16] 0.0, 128
        %1283 = vxpose.xlu0.b32.cont [9/16] 0.0, 128
        %1284 = vxpose.xlu0.b32.cont [10/16] 0.0, 128
        %1285 = vxpose.xlu0.b32.cont [11/16] 0.0, 128
        %1286 = vxpose.xlu0.b32.cont [12/16] 0.0, 128
        %1287 = vxpose.xlu0.b32.cont [13/16] 0.0, 128
        %1288 = vxpose.xlu0.b32.cont [14/16] 0.0, 128
        %1289 = vxpose.xlu0.b32.cont [15/16] 0.0, 128
        %1290 = vxpose.xlu0.b32.end [16/16] 0.0, 128
        %v1291 = vpop.trf.xlu0
        %v1292 = vpop.trf.xlu0
        %v1293 = vpop.trf.xlu0
        %v1294 = vpop.trf.xlu0
        %v1295 = vpop.trf.xlu0
        %v1296 = vpop.trf.xlu0
        %v1297 = vpop.trf.xlu0
        %v1298 = vpop.trf.xlu0
        %v1299 = vpop.trf.xlu0
        %v1300 = vpop.trf.xlu0
        %v1301 = vpop.trf.xlu0
        %v1302 = vpop.trf.xlu0
        %v1303 = vpop.trf.xlu0
        %v1304 = vpop.trf.xlu0
        %v1305 = vpop.trf.xlu0
        %v1306 = vpop.trf.xlu0
        %v1307 = vlaneseq
        %v1308 = vshrl.u32 %v1307, 7
        %v1309 = vsub.s32 0, %v1308
        %v1310 = vrot.slane %v1291, %v1309
        %v1311 = vadd.f32 %v1183, %v1310
        %v1312 = vadd.f32 %v1186, %v1310
        %v1313 = vmul.f32 %v1267, 2.0
        %v1314 = vmul.f32 %v1272, 2.0
        %v1315 = vsub.f32 %v1311, %v1313
        %v1316 = vsub.f32 %v1312, %v1314
        %v1317 = vmax.f32 %v1315, 0.0
        %v1318 = vmax.f32 %v1316, 0.0
        %v1319 = vmul.f32 %v1317, -0.5
        %v1320 = vmul.f32 %v1318, -0.5
        %v1321 = vmul.f32 %v1319, 1.442695
        %v1322 = vpow.pop %v1321
        %v1323 = vmul.f32 %v1320, 1.442695
        %v1324 = vpow.pop %v1323
        %1325 = vmatprep.subr.mxu0 0.0
        %1326 = vmatpush1.xpose.msra.mxu0 0.0
        %1327 = vmatprep.subr.mxu0 0.0
        %1328 = vmatpush1.xpose.msra.mxu0 0.0
        %1329 = vmatprep.subr.mxu0 0.0
        %1330 = vmatpush1.xpose.msra.mxu0 0.0
        %1331 = vmatprep.subr.mxu0 0.0
        %1332 = vmatpush1.xpose.msra.mxu0 0.0
        %1333 = vmatprep.subr.mxu0 0.0
        %1334 = vmatpush1.xpose.msra.mxu0 0.0
        %1335 = vmatprep.subr.mxu0 0.0
        %1336 = vmatpush1.xpose.msra.mxu0 0.0
        %1337 = vmatprep.subr.mxu0 0.0
        %1338 = vmatpush1.xpose.msra.mxu0 0.0
        %1339 = vmatprep.subr.mxu0 0.0
        %1340 = vmatpush1.xpose.msra.mxu0 0.0
        %1341 = vmatprep.subr.mxu0 0.0
        %1342 = vmatpush1.xpose.msra.mxu0 0.0
        %1343 = vmatprep.subr.mxu0 0.0
        %1344 = vmatpush1.xpose.msra.mxu0 0.0
        %1345 = vmatprep.subr.mxu0 0.0
        %1346 = vmatpush1.xpose.msra.mxu0 0.0
        %1347 = vmatprep.subr.mxu0 0.0
        %1348 = vmatpush1.xpose.msra.mxu0 0.0
        %1349 = vmatprep.subr.mxu0 0.0
        %1350 = vmatpush1.xpose.msra.mxu0 0.0
        %1351 = vmatprep.subr.mxu0 0.0
        %1352 = vmatpush1.xpose.msra.mxu0 0.0
        %1353 = vmatprep.subr.mxu0 0.0
        %1354 = vmatpush1.xpose.msra.mxu0 0.0
        %1355 = vmatprep.subr.mxu0 0.0
        %1356 = vmatpush1.xpose.msra.mxu0 %v1198
        %1357 = vmatprep.subr.mxu0 0.0
        %1358 = vmatpush2.xpose.msra.mxu0 0.0
        %1359 = vmatprep.subr.mxu0 0.0
        %1360 = vmatpush2.xpose.msra.mxu0 0.0
        %1361 = vmatprep.subr.mxu0 0.0
        %1362 = vmatpush2.xpose.msra.mxu0 0.0
        %1363 = vmatprep.subr.mxu0 0.0
        %1364 = vmatpush2.xpose.msra.mxu0 0.0
        %1365 = vmatprep.subr.mxu0 0.0
        %1366 = vmatpush2.xpose.msra.mxu0 0.0
        %1367 = vmatprep.subr.mxu0 0.0
        %1368 = vmatpush2.xpose.msra.mxu0 0.0
        %1369 = vmatprep.subr.mxu0 0.0
        %1370 = vmatpush2.xpose.msra.mxu0 0.0
        %1371 = vmatprep.subr.mxu0 0.0
        %1372 = vmatpush2.xpose.msra.mxu0 0.0
        %1373 = vmatprep.subr.mxu0 0.0
        %1374 = vmatpush2.xpose.msra.mxu0 0.0
        %1375 = vmatprep.subr.mxu0 0.0
        %1376 = vmatpush2.xpose.msra.mxu0 0.0
        %1377 = vmatprep.subr.mxu0 0.0
        %1378 = vmatpush2.xpose.msra.mxu0 0.0
        %1379 = vmatprep.subr.mxu0 0.0
        %1380 = vmatpush2.xpose.msra.mxu0 0.0
        %1381 = vmatprep.subr.mxu0 0.0
        %1382 = vmatpush2.xpose.msra.mxu0 0.0
        %1383 = vmatprep.subr.mxu0 0.0
        %1384 = vmatpush2.xpose.msra.mxu0 0.0
        %1385 = vmatprep.subr.mxu0 0.0
        %1386 = vmatpush2.xpose.msra.mxu0 0.0
        %1387 = vmatprep.subr.mxu0 0.0
        %1388 = vmatpush2.xpose.msra.mxu0 0.0
        %1389 = vmatprep.mubr.f32.mxu0 0.0
        %1390 = vmatmul.mubr.f32.gmra.mxu0 %v1198
        %v1391 = vpop.f32.mrf.mxu0
        %v1392 = vadd.f32 0.0, %v1391
        %v1393 = vpop.f32.mrf.mxu0
        %1394 = vdwg.mxu0
        %v1395 = vadd.f32 %v1190, %v1310
        %v1396 = vmul.f32 %v1392, 2.0
        %v1397 = vsub.f32 %v1395, %v1396
        %v1398 = vmax.f32 %v1397, 0.0
        %v1399 = vmul.f32 %v1398, -0.5
        %v1400 = vmul.f32 %v1399, 1.442695
        %v1401 = vpow.pop %v1400
        %1402 = vxpose.xlu0.b32.start [1/16] %v1322, 128
        %1403 = vxpose.xlu0.b32.cont [2/16] %v1324, 128
        %1404 = vxpose.xlu0.b32.cont [3/16] 0.0, 128
        %1405 = vxpose.xlu0.b32.cont [4/16] 0.0, 128
        %1406 = vxpose.xlu0.b32.cont [5/16] 0.0, 128
        %1407 = vxpose.xlu0.b32.cont [6/16] 0.0, 128
        %1408 = vxpose.xlu0.b32.cont [7/16] 0.0, 128
        %1409 = vxpose.xlu0.b32.cont [8/16] 0.0, 128
        %1410 = vxpose.xlu0.b32.cont [9/16] 0.0, 128
        %1411 = vxpose.xlu0.b32.cont [10/16] 0.0, 128
        %1412 = vxpose.xlu0.b32.cont [11/16] 0.0, 128
        %1413 = vxpose.xlu0.b32.cont [12/16] 0.0, 128
        %1414 = vxpose.xlu0.b32.cont [13/16] 0.0, 128
        %1415 = vxpose.xlu0.b32.cont [14/16] 0.0, 128
        %1416 = vxpose.xlu0.b32.cont [15/16] 0.0, 128
        %1417 = vxpose.xlu0.b32.end [16/16] 0.0, 128
        %v1418 = vpop.trf.xlu0
        %v1419 = vpop.trf.xlu0
        %v1420 = vpop.trf.xlu0
        %v1421 = vpop.trf.xlu0
        %v1422 = vpop.trf.xlu0
        %v1423 = vpop.trf.xlu0
        %v1424 = vpop.trf.xlu0
        %v1425 = vpop.trf.xlu0
        %v1426 = vpop.trf.xlu0
        %v1427 = vpop.trf.xlu0
        %v1428 = vpop.trf.xlu0
        %v1429 = vpop.trf.xlu0
        %v1430 = vpop.trf.xlu0
        %v1431 = vpop.trf.xlu0
        %v1432 = vpop.trf.xlu0
        %v1433 = vpop.trf.xlu0
        %vm1434 = vcmask 130048
        %v1436 = vsel %vm1434, %v1418, 0
        %1438 = vmatprep.subr.mxu0 0.0
        %1439 = vmatpush1.msra.mxu0 0.0
        %1440 = vmatprep.subr.mxu0 0.0
        %1441 = vmatpush1.msra.mxu0 0.0
        %1442 = vmatprep.subr.mxu0 0.0
        %1443 = vmatpush1.msra.mxu0 0.0
        %1444 = vmatprep.subr.mxu0 0.0
        %1445 = vmatpush1.msra.mxu0 0.0
        %1446 = vmatprep.subr.mxu0 0.0
        %1447 = vmatpush1.msra.mxu0 0.0
        %1448 = vmatprep.subr.mxu0 0.0
        %1449 = vmatpush1.msra.mxu0 0.0
        %1450 = vmatprep.subr.mxu0 0.0
        %1451 = vmatpush1.msra.mxu0 0.0
        %1452 = vmatprep.subr.mxu0 0.0
        %1453 = vmatpush1.msra.mxu0 0.0
        %1454 = vmatprep.subr.mxu0 0.0
        %1455 = vmatpush1.msra.mxu0 0.0
        %1456 = vmatprep.subr.mxu0 0.0
        %1457 = vmatpush1.msra.mxu0 0.0
        %1458 = vmatprep.subr.mxu0 0.0
        %1459 = vmatpush1.msra.mxu0 0.0
        %1460 = vmatprep.subr.mxu0 0.0
        %1461 = vmatpush1.msra.mxu0 0.0
        %1462 = vmatprep.subr.mxu0 0.0
        %1463 = vmatpush1.msra.mxu0 0.0
        %1464 = vmatprep.subr.mxu0 0.0
        %1465 = vmatpush1.msra.mxu0 0.0
        %1466 = vmatprep.subr.mxu0 0.0
        %1467 = vmatpush1.msra.mxu0 %v727
        %1468 = vmatprep.subr.mxu0 0.0
        %1469 = vmatpush1.msra.mxu0 %v726
        %1470 = vmatprep.subr.mxu0 0.0
        %1471 = vmatpush2.msra.mxu0 0.0
        %1472 = vmatprep.subr.mxu0 0.0
        %1473 = vmatpush2.msra.mxu0 0.0
        %1474 = vmatprep.subr.mxu0 0.0
        %1475 = vmatpush2.msra.mxu0 0.0
        %1476 = vmatprep.subr.mxu0 0.0
        %1477 = vmatpush2.msra.mxu0 0.0
        %1478 = vmatprep.subr.mxu0 0.0
        %1479 = vmatpush2.msra.mxu0 0.0
        %1480 = vmatprep.subr.mxu0 0.0
        %1481 = vmatpush2.msra.mxu0 0.0
        %1482 = vmatprep.subr.mxu0 0.0
        %1483 = vmatpush2.msra.mxu0 0.0
        %1484 = vmatprep.subr.mxu0 0.0
        %1485 = vmatpush2.msra.mxu0 0.0
        %1486 = vmatprep.subr.mxu0 0.0
        %1487 = vmatpush2.msra.mxu0 0.0
        %1488 = vmatprep.subr.mxu0 0.0
        %1489 = vmatpush2.msra.mxu0 0.0
        %1490 = vmatprep.subr.mxu0 0.0
        %1491 = vmatpush2.msra.mxu0 0.0
        %1492 = vmatprep.subr.mxu0 0.0
        %1493 = vmatpush2.msra.mxu0 0.0
        %1494 = vmatprep.subr.mxu0 0.0
        %1495 = vmatpush2.msra.mxu0 0.0
        %1496 = vmatprep.subr.mxu0 0.0
        %1497 = vmatpush2.msra.mxu0 0.0
        %1498 = vmatprep.subr.mxu0 0.0
        %1499 = vmatpush2.msra.mxu0 0.0
        %1500 = vmatprep.subr.mxu0 0.0
        %1501 = vmatpush2.msra.mxu0 0.0
        %1502 = vmatprep.mubr.f32.mxu0 0.0
        %1503 = vmatmul.mubr.f32.gmra.mxu0 %v1436
        %v1504 = vpop.f32.mrf.mxu0
        %v1505 = vadd.f32 0.0, %v1504
        %v1506 = vpop.f32.mrf.mxu0
        %1507 = vdwg.mxu0
        %vm1508 = vcmask 31744
        %1509 = vst.msk [vmem:[%s499] sm:$0xff] %vm1508, %v1322
        %1510 = vst.msk [vmem:[%s499 + $0x8] sm:$0xff] %vm1508, %v1324
        %vm1511 = vcmask 27648
        %1512 = vst.msk [vmem:[%s506] sm:$0xf] %vm1511, %v1401
        %1513 = vst.msk [vmem:[%s513] sm:$0xf] %vm1121, %v1505
        %v1514 = vld [vmem:[#allocation8] sm:$0xff]
        %v1515 = vld [vmem:[%s820] sm:$0xff]
        %1516 = vrot.lane.b32.xlu0 %v814, 120
        %v1517 = vpop.permute.xlu0 %1516
        %v1518 = vsel %vm822, %v1517, 0
        %1520 = vmatprep.subr.mxu0 0.0
        %1521 = vmatpush1.msra.mxu0 0.0
        %1522 = vmatprep.subr.mxu0 0.0
        %1523 = vmatpush1.msra.mxu0 0.0
        %1524 = vmatprep.subr.mxu0 0.0
        %1525 = vmatpush1.msra.mxu0 0.0
        %1526 = vmatprep.subr.mxu0 0.0
        %1527 = vmatpush1.msra.mxu0 0.0
        %1528 = vmatprep.subr.mxu0 0.0
        %1529 = vmatpush1.msra.mxu0 0.0
        %1530 = vmatprep.subr.mxu0 0.0
        %1531 = vmatpush1.msra.mxu0 0.0
        %1532 = vmatprep.subr.mxu0 0.0
        %1533 = vmatpush1.msra.mxu0 0.0
        %1534 = vmatprep.subr.mxu0 0.0
        %1535 = vmatpush1.msra.mxu0 0.0
        %1536 = vmatprep.subr.mxu0 0.0
        %1537 = vmatpush1.msra.mxu0 0.0
        %1538 = vmatprep.subr.mxu0 0.0
        %1539 = vmatpush1.msra.mxu0 0.0
        %1540 = vmatprep.subr.mxu0 0.0
        %1541 = vmatpush1.msra.mxu0 0.0
        %1542 = vmatprep.subr.mxu0 0.0
        %1543 = vmatpush1.msra.mxu0 0.0
        %1544 = vmatprep.subr.mxu0 0.0
        %1545 = vmatpush1.msra.mxu0 0.0
        %1546 = vmatprep.subr.mxu0 0.0
        %1547 = vmatpush1.msra.mxu0 0.0
        %1548 = vmatprep.subr.mxu0 0.0
        %1549 = vmatpush1.msra.mxu0 0.0
        %1550 = vmatprep.subr.mxu0 0.0
        %1551 = vmatpush1.msra.mxu0 %v1515
        %1552 = vmatprep.subr.mxu0 0.0
        %1553 = vmatpush2.msra.mxu0 0.0
        %1554 = vmatprep.subr.mxu0 0.0
        %1555 = vmatpush2.msra.mxu0 0.0
        %1556 = vmatprep.subr.mxu0 0.0
        %1557 = vmatpush2.msra.mxu0 0.0
        %1558 = vmatprep.subr.mxu0 0.0
        %1559 = vmatpush2.msra.mxu0 0.0
        %1560 = vmatprep.subr.mxu0 0.0
        %1561 = vmatpush2.msra.mxu0 0.0
        %1562 = vmatprep.subr.mxu0 0.0
        %1563 = vmatpush2.msra.mxu0 0.0
        %1564 = vmatprep.subr.mxu0 0.0
        %1565 = vmatpush2.msra.mxu0 0.0
        %1566 = vmatprep.subr.mxu0 0.0
        %1567 = vmatpush2.msra.mxu0 0.0
        %1568 = vmatprep.subr.mxu0 0.0
        %1569 = vmatpush2.msra.mxu0 0.0
        %1570 = vmatprep.subr.mxu0 0.0
        %1571 = vmatpush2.msra.mxu0 0.0
        %1572 = vmatprep.subr.mxu0 0.0
        %1573 = vmatpush2.msra.mxu0 0.0
        %1574 = vmatprep.subr.mxu0 0.0
        %1575 = vmatpush2.msra.mxu0 0.0
        %1576 = vmatprep.subr.mxu0 0.0
        %1577 = vmatpush2.msra.mxu0 0.0
        %1578 = vmatprep.subr.mxu0 0.0
        %1579 = vmatpush2.msra.mxu0 0.0
        %1580 = vmatprep.subr.mxu0 0.0
        %1581 = vmatpush2.msra.mxu0 0.0
        %1582 = vmatprep.subr.mxu0 0.0
        %1583 = vmatpush2.msra.mxu0 0.0
        %1584 = vmatprep.mubr.f32.mxu0 0.0
        %1585 = vmatmul.mubr.f32.gmra.mxu0 %v1518
        %v1586 = vpop.f32.mrf.mxu0
        %v1587 = vadd.f32 0.0, %v1586
        %v1588 = vpop.f32.mrf.mxu0
        %1589 = vdwg.mxu0
        %1590 = vrot.lane.b32.xlu0 %v812, 120
        %v1591 = vpop.permute.xlu0 %1590
        %v1592 = vsel %vm822, %v1591, 0
        %1594 = vmatprep.subr.mxu0 0.0
        %1595 = vmatpush1.msra.mxu0 0.0
        %1596 = vmatprep.subr.mxu0 0.0
        %1597 = vmatpush1.msra.mxu0 0.0
        %1598 = vmatprep.subr.mxu0 0.0
        %1599 = vmatpush1.msra.mxu0 0.0
        %1600 = vmatprep.subr.mxu0 0.0
        %1601 = vmatpush1.msra.mxu0 0.0
        %1602 = vmatprep.subr.mxu0 0.0
        %1603 = vmatpush1.msra.mxu0 0.0
        %1604 = vmatprep.subr.mxu0 0.0
        %1605 = vmatpush1.msra.mxu0 0.0
        %1606 = vmatprep.subr.mxu0 0.0
        %1607 = vmatpush1.msra.mxu0 0.0
        %1608 = vmatprep.subr.mxu0 0.0
        %1609 = vmatpush1.msra.mxu0 0.0
        %1610 = vmatprep.subr.mxu0 0.0
        %1611 = vmatpush1.msra.mxu0 0.0
        %1612 = vmatprep.subr.mxu0 0.0
        %1613 = vmatpush1.msra.mxu0 0.0
        %1614 = vmatprep.subr.mxu0 0.0
        %1615 = vmatpush1.msra.mxu0 0.0
        %1616 = vmatprep.subr.mxu0 0.0
        %1617 = vmatpush1.msra.mxu0 0.0
        %1618 = vmatprep.subr.mxu0 0.0
        %1619 = vmatpush1.msra.mxu0 0.0
        %1620 = vmatprep.subr.mxu0 0.0
        %1621 = vmatpush1.msra.mxu0 0.0
        %1622 = vmatprep.subr.mxu0 0.0
        %1623 = vmatpush1.msra.mxu0 0.0
        %1624 = vmatprep.subr.mxu0 0.0
        %1625 = vmatpush1.msra.mxu0 %v1514
        %1626 = vmatprep.subr.mxu0 0.0
        %1627 = vmatpush2.msra.mxu0 0.0
        %1628 = vmatprep.subr.mxu0 0.0
        %1629 = vmatpush2.msra.mxu0 0.0
        %1630 = vmatprep.subr.mxu0 0.0
        %1631 = vmatpush2.msra.mxu0 0.0
        %1632 = vmatprep.subr.mxu0 0.0
        %1633 = vmatpush2.msra.mxu0 0.0
        %1634 = vmatprep.subr.mxu0 0.0
        %1635 = vmatpush2.msra.mxu0 0.0
        %1636 = vmatprep.subr.mxu0 0.0
        %1637 = vmatpush2.msra.mxu0 0.0
        %1638 = vmatprep.subr.mxu0 0.0
        %1639 = vmatpush2.msra.mxu0 0.0
        %1640 = vmatprep.subr.mxu0 0.0
        %1641 = vmatpush2.msra.mxu0 0.0
        %1642 = vmatprep.subr.mxu0 0.0
        %1643 = vmatpush2.msra.mxu0 0.0
        %1644 = vmatprep.subr.mxu0 0.0
        %1645 = vmatpush2.msra.mxu0 0.0
        %1646 = vmatprep.subr.mxu0 0.0
        %1647 = vmatpush2.msra.mxu0 0.0
        %1648 = vmatprep.subr.mxu0 0.0
        %1649 = vmatpush2.msra.mxu0 0.0
        %1650 = vmatprep.subr.mxu0 0.0
        %1651 = vmatpush2.msra.mxu0 0.0
        %1652 = vmatprep.subr.mxu0 0.0
        %1653 = vmatpush2.msra.mxu0 0.0
        %1654 = vmatprep.subr.mxu0 0.0
        %1655 = vmatpush2.msra.mxu0 0.0
        %1656 = vmatprep.subr.mxu0 0.0
        %1657 = vmatpush2.msra.mxu0 0.0
        %1658 = vmatprep.mubr.f32.mxu0 0.0
        %1659 = vmatmul.mubr.f32.gmra.mxu0 %v1592
        %v1660 = vpop.f32.mrf.mxu0
        %v1661 = vadd.f32 %v1587, %v1660
        %v1662 = vpop.f32.mrf.mxu0
        %1663 = vdwg.mxu0
        %v1664 = vld [vmem:[%s969] sm:$0xff]
        %1665 = vrot.lane.b32.xlu0 %v816, 120
        %v1666 = vpop.permute.xlu0 %1665
        %v1667 = vsel %vm822, %v1666, 0
        %1669 = vmatprep.subr.mxu0 0.0
        %1670 = vmatpush1.msra.mxu0 0.0
        %1671 = vmatprep.subr.mxu0 0.0
        %1672 = vmatpush1.msra.mxu0 0.0
        %1673 = vmatprep.subr.mxu0 0.0
        %1674 = vmatpush1.msra.mxu0 0.0
        %1675 = vmatprep.subr.mxu0 0.0
        %1676 = vmatpush1.msra.mxu0 0.0
        %1677 = vmatprep.subr.mxu0 0.0
        %1678 = vmatpush1.msra.mxu0 0.0
        %1679 = vmatprep.subr.mxu0 0.0
        %1680 = vmatpush1.msra.mxu0 0.0
        %1681 = vmatprep.subr.mxu0 0.0
        %1682 = vmatpush1.msra.mxu0 0.0
        %1683 = vmatprep.subr.mxu0 0.0
        %1684 = vmatpush1.msra.mxu0 0.0
        %1685 = vmatprep.subr.mxu0 0.0
        %1686 = vmatpush1.msra.mxu0 0.0
        %1687 = vmatprep.subr.mxu0 0.0
        %1688 = vmatpush1.msra.mxu0 0.0
        %1689 = vmatprep.subr.mxu0 0.0
        %1690 = vmatpush1.msra.mxu0 0.0
        %1691 = vmatprep.subr.mxu0 0.0
        %1692 = vmatpush1.msra.mxu0 0.0
        %1693 = vmatprep.subr.mxu0 0.0
        %1694 = vmatpush1.msra.mxu0 0.0
        %1695 = vmatprep.subr.mxu0 0.0
        %1696 = vmatpush1.msra.mxu0 0.0
        %1697 = vmatprep.subr.mxu0 0.0
        %1698 = vmatpush1.msra.mxu0 0.0
        %1699 = vmatprep.subr.mxu0 0.0
        %1700 = vmatpush1.msra.mxu0 %v1664
        %1701 = vmatprep.subr.mxu0 0.0
        %1702 = vmatpush2.msra.mxu0 0.0
        %1703 = vmatprep.subr.mxu0 0.0
        %1704 = vmatpush2.msra.mxu0 0.0
        %1705 = vmatprep.subr.mxu0 0.0
        %1706 = vmatpush2.msra.mxu0 0.0
        %1707 = vmatprep.subr.mxu0 0.0
        %1708 = vmatpush2.msra.mxu0 0.0
        %1709 = vmatprep.subr.mxu0 0.0
        %1710 = vmatpush2.msra.mxu0 0.0
        %1711 = vmatprep.subr.mxu0 0.0
        %1712 = vmatpush2.msra.mxu0 0.0
        %1713 = vmatprep.subr.mxu0 0.0
        %1714 = vmatpush2.msra.mxu0 0.0
        %1715 = vmatprep.subr.mxu0 0.0
        %1716 = vmatpush2.msra.mxu0 0.0
        %1717 = vmatprep.subr.mxu0 0.0
        %1718 = vmatpush2.msra.mxu0 0.0
        %1719 = vmatprep.subr.mxu0 0.0
        %1720 = vmatpush2.msra.mxu0 0.0
        %1721 = vmatprep.subr.mxu0 0.0
        %1722 = vmatpush2.msra.mxu0 0.0
        %1723 = vmatprep.subr.mxu0 0.0
        %1724 = vmatpush2.msra.mxu0 0.0
        %1725 = vmatprep.subr.mxu0 0.0
        %1726 = vmatpush2.msra.mxu0 0.0
        %1727 = vmatprep.subr.mxu0 0.0
        %1728 = vmatpush2.msra.mxu0 0.0
        %1729 = vmatprep.subr.mxu0 0.0
        %1730 = vmatpush2.msra.mxu0 0.0
        %1731 = vmatprep.subr.mxu0 0.0
        %1732 = vmatpush2.msra.mxu0 0.0
        %1733 = vmatprep.mubr.f32.mxu0 0.0
        %1734 = vmatmul.mubr.f32.gmra.mxu0 %v1667
        %v1735 = vpop.f32.mrf.mxu0
        %v1736 = vadd.f32 0.0, %v1735
        %v1737 = vpop.f32.mrf.mxu0
        %1738 = vdwg.mxu0
        %v1739 = vadd.f32 %v1661, %v1736
        %v1740 = vld [vmem:[%s1045] sm:$0xff]
        %1741 = vrot.lane.b32.xlu0 %v818, 120
        %v1742 = vpop.permute.xlu0 %1741
        %v1743 = vsel %vm822, %v1742, 0
        %1745 = vmatprep.subr.mxu0 0.0
        %1746 = vmatpush1.msra.mxu0 0.0
        %1747 = vmatprep.subr.mxu0 0.0
        %1748 = vmatpush1.msra.mxu0 0.0
        %1749 = vmatprep.subr.mxu0 0.0
        %1750 = vmatpush1.msra.mxu0 0.0
        %1751 = vmatprep.subr.mxu0 0.0
        %1752 = vmatpush1.msra.mxu0 0.0
        %1753 = vmatprep.subr.mxu0 0.0
        %1754 = vmatpush1.msra.mxu0 0.0
        %1755 = vmatprep.subr.mxu0 0.0
        %1756 = vmatpush1.msra.mxu0 0.0
        %1757 = vmatprep.subr.mxu0 0.0
        %1758 = vmatpush1.msra.mxu0 0.0
        %1759 = vmatprep.subr.mxu0 0.0
        %1760 = vmatpush1.msra.mxu0 0.0
        %1761 = vmatprep.subr.mxu0 0.0
        %1762 = vmatpush1.msra.mxu0 0.0
        %1763 = vmatprep.subr.mxu0 0.0
        %1764 = vmatpush1.msra.mxu0 0.0
        %1765 = vmatprep.subr.mxu0 0.0
        %1766 = vmatpush1.msra.mxu0 0.0
        %1767 = vmatprep.subr.mxu0 0.0
        %1768 = vmatpush1.msra.mxu0 0.0
        %1769 = vmatprep.subr.mxu0 0.0
        %1770 = vmatpush1.msra.mxu0 0.0
        %1771 = vmatprep.subr.mxu0 0.0
        %1772 = vmatpush1.msra.mxu0 0.0
        %1773 = vmatprep.subr.mxu0 0.0
        %1774 = vmatpush1.msra.mxu0 0.0
        %1775 = vmatprep.subr.mxu0 0.0
        %1776 = vmatpush1.msra.mxu0 %v1740
        %1777 = vmatprep.subr.mxu0 0.0
        %1778 = vmatpush2.msra.mxu0 0.0
        %1779 = vmatprep.subr.mxu0 0.0
        %1780 = vmatpush2.msra.mxu0 0.0
        %1781 = vmatprep.subr.mxu0 0.0
        %1782 = vmatpush2.msra.mxu0 0.0
        %1783 = vmatprep.subr.mxu0 0.0
        %1784 = vmatpush2.msra.mxu0 0.0
        %1785 = vmatprep.subr.mxu0 0.0
        %1786 = vmatpush2.msra.mxu0 0.0
        %1787 = vmatprep.subr.mxu0 0.0
        %1788 = vmatpush2.msra.mxu0 0.0
        %1789 = vmatprep.subr.mxu0 0.0
        %1790 = vmatpush2.msra.mxu0 0.0
        %1791 = vmatprep.subr.mxu0 0.0
        %1792 = vmatpush2.msra.mxu0 0.0
        %1793 = vmatprep.subr.mxu0 0.0
        %1794 = vmatpush2.msra.mxu0 0.0
        %1795 = vmatprep.subr.mxu0 0.0
        %1796 = vmatpush2.msra.mxu0 0.0
        %1797 = vmatprep.subr.mxu0 0.0
        %1798 = vmatpush2.msra.mxu0 0.0
        %1799 = vmatprep.subr.mxu0 0.0
        %1800 = vmatpush2.msra.mxu0 0.0
        %1801 = vmatprep.subr.mxu0 0.0
        %1802 = vmatpush2.msra.mxu0 0.0
        %1803 = vmatprep.subr.mxu0 0.0
        %1804 = vmatpush2.msra.mxu0 0.0
        %1805 = vmatprep.subr.mxu0 0.0
        %1806 = vmatpush2.msra.mxu0 0.0
        %1807 = vmatprep.subr.mxu0 0.0
        %1808 = vmatpush2.msra.mxu0 0.0
        %1809 = vmatprep.mubr.f32.mxu0 0.0
        %1810 = vmatmul.mubr.f32.gmra.mxu0 %v1743
        %v1811 = vpop.f32.mrf.mxu0
        %v1812 = vadd.f32 0.0, %v1811
        %v1813 = vpop.f32.mrf.mxu0
        %1814 = vdwg.mxu0
        %v1815 = vadd.f32 %v1739, %v1812
        %v1816 = vsel %vm1121, %v1815, 0.0
        %1817 = vadd.xlane.f32.xlu0 %v1816
        %v1818 = vpop.xlane.xlu0 %1817
        %v1819 = vmul.f32 %v1818, %v1125
        %v1820 = vsub.f32 %v1815, %v1819
        %v1821 = vmul.f32 %v1820, %v1820
        %v1822 = vsel %vm1121, %v1821, 0.0
        %1823 = vadd.xlane.f32.xlu0 %v1822
        %v1824 = vpop.xlane.xlu0 %1823
        %v1825 = vmul.f32 %v1824, %v1125
        %v1826 = vadd.f32 %v1825, 1e-05
        %v1827 = vrsqrt.pop %v1826
        %v1828 = vmul.f32 %v1820, %v1827
        %v1829 = vld [vmem:[%s7] sm:$0x1]
        %v1831 = vlaneseq
        %v1832 = vshrl.u32 %v1831, 7
        %v1833 = vsub.s32 0, %v1832
        %v1834 = vrot.slane %v1829, %v1833
        %v1836 = vmul.f32 %v1828, %v1834
        %v1837 = vld [vmem:[%s8] sm:$0x1]
        %v1839 = vlaneseq
        %v1840 = vshrl.u32 %v1839, 7
        %v1841 = vsub.s32 0, %v1840
        %v1842 = vrot.slane %v1837, %v1841
        %v1844 = vadd.f32 %v1836, %v1842
        %v1845 = vmul.f32 %v1844, 0.70710677
        %v1846 = vand.u32 2147483647, %v1845
        %v1847 = vmul.f32 %v1846, 0.3275911
        %v1848 = vadd.f32 %v1847, 1.0
        %v1849 = vrcp.pop %v1848
        %v1850 = vmul.f32 1.0, %v1849
        %v1851 = vmul.f32 %v1850, 1.0614054
        %v1852 = vadd.f32 %v1851, -1.4531521
        %v1853 = vmul.f32 %v1850, %v1852
        %v1854 = vadd.f32 %v1853, 1.4214138
        %v1855 = vmul.f32 %v1850, %v1854
        %v1856 = vadd.f32 %v1855, -0.28449672
        %v1857 = vmul.f32 %v1850, %v1856
        %v1858 = vadd.f32 %v1857, 0.2548296
        %v1859 = vmul.f32 %v1850, %v1858
        %v1860 = vsub.f32 0.0, %v1846
        %v1861 = vmul.f32 %v1860, %v1846
        %v1862 = vmul.f32 %v1861, 1.442695
        %v1863 = vpow.pop %v1862
        %v1864 = vmul.f32 %v1859, %v1863
        %v1865 = vsub.f32 1.0, %v1864
        %vm1866 = vcmp.lt.f32.partialorder %v1845, 0.0
        %v1867 = vsub.f32 0.0, %v1865
        %v1868 = vsel %vm1866, %v1867, %v1865
        %v1869 = vmul.f32 %v1844, 0.5
        %v1870 = vadd.f32 %v1868, 1.0
        %v1871 = vmul.f32 %v1869, %v1870
        %1874 = vrot.lane.b32.xlu0 %v1179, 120
        %v1875 = vpop.permute.xlu0 %1874
        %1876 = vrot.lane.b32.xlu0 %v1180, 120
        %v1877 = vpop.permute.xlu0 %1876
        %v1880 = vsel %vm822, %v1875, 0.0
        %1881 = vadd.xlane.f32.xlu0 %v1880
        %v1882 = vpop.xlane.xlu0 %1881
        %v1883 = vsel %vm822, %v1877, 0.0
        %1884 = vadd.xlane.f32.xlu0 %v1883
        %v1885 = vpop.xlane.xlu0 %1884
        %v1886 = vmul.f32 %v1871, %v1871
        %v1887 = vsel %vm1121, %v1886, 0.0
        %1888 = vadd.xlane.f32.xlu0 %v1887
        %v1889 = vpop.xlane.xlu0 %1888
        %1890 = vrot.lane.b32.xlu0 %v728, 120
        %v1891 = vpop.permute.xlu0 %1890
        %1892 = vrot.lane.b32.xlu0 %v729, 120
        %v1893 = vpop.permute.xlu0 %1892
        %v1894 = vsel %vm822, %v1891, 0
        %v1896 = vsel %vm822, %v1893, 0
        %v1899 = vsel %vm822, %v1871, 0
        %1901 = vmatprep.subr.mxu0 0.0
        %1902 = vmatpush1.xpose.msra.mxu0 0.0
        %1903 = vmatprep.subr.mxu0 0.0
        %1904 = vmatpush1.xpose.msra.mxu0 0.0
        %1905 = vmatprep.subr.mxu0 0.0
        %1906 = vmatpush1.xpose.msra.mxu0 0.0
        %1907 = vmatprep.subr.mxu0 0.0
        %1908 = vmatpush1.xpose.msra.mxu0 0.0
        %1909 = vmatprep.subr.mxu0 0.0
        %1910 = vmatpush1.xpose.msra.mxu0 0.0
        %1911 = vmatprep.subr.mxu0 0.0
        %1912 = vmatpush1.xpose.msra.mxu0 0.0
        %1913 = vmatprep.subr.mxu0 0.0
        %1914 = vmatpush1.xpose.msra.mxu0 0.0
        %1915 = vmatprep.subr.mxu0 0.0
        %1916 = vmatpush1.xpose.msra.mxu0 0.0
        %1917 = vmatprep.subr.mxu0 0.0
        %1918 = vmatpush1.xpose.msra.mxu0 0.0
        %1919 = vmatprep.subr.mxu0 0.0
        %1920 = vmatpush1.xpose.msra.mxu0 0.0
        %1921 = vmatprep.subr.mxu0 0.0
        %1922 = vmatpush1.xpose.msra.mxu0 0.0
        %1923 = vmatprep.subr.mxu0 0.0
        %1924 = vmatpush1.xpose.msra.mxu0 0.0
        %1925 = vmatprep.subr.mxu0 0.0
        %1926 = vmatpush1.xpose.msra.mxu0 0.0
        %1927 = vmatprep.subr.mxu0 0.0
        %1928 = vmatpush1.xpose.msra.mxu0 0.0
        %1929 = vmatprep.subr.mxu0 0.0
        %1930 = vmatpush1.xpose.msra.mxu0 0.0
        %1931 = vmatprep.subr.mxu0 0.0
        %1932 = vmatpush1.xpose.msra.mxu0 %v1899
        %1933 = vmatprep.subr.mxu0 0.0
        %1934 = vmatpush2.xpose.msra.mxu0 0.0
        %1935 = vmatprep.subr.mxu0 0.0
        %1936 = vmatpush2.xpose.msra.mxu0 0.0
        %1937 = vmatprep.subr.mxu0 0.0
        %1938 = vmatpush2.xpose.msra.mxu0 0.0
        %1939 = vmatprep.subr.mxu0 0.0
        %1940 = vmatpush2.xpose.msra.mxu0 0.0
        %1941 = vmatprep.subr.mxu0 0.0
        %1942 = vmatpush2.xpose.msra.mxu0 0.0
        %1943 = vmatprep.subr.mxu0 0.0
        %1944 = vmatpush2.xpose.msra.mxu0 0.0
        %1945 = vmatprep.subr.mxu0 0.0
        %1946 = vmatpush2.xpose.msra.mxu0 0.0
        %1947 = vmatprep.subr.mxu0 0.0
        %1948 = vmatpush2.xpose.msra.mxu0 0.0
        %1949 = vmatprep.subr.mxu0 0.0
        %1950 = vmatpush2.xpose.msra.mxu0 0.0
        %1951 = vmatprep.subr.mxu0 0.0
        %1952 = vmatpush2.xpose.msra.mxu0 0.0
        %1953 = vmatprep.subr.mxu0 0.0
        %1954 = vmatpush2.xpose.msra.mxu0 0.0
        %1955 = vmatprep.subr.mxu0 0.0
        %1956 = vmatpush2.xpose.msra.mxu0 0.0
        %1957 = vmatprep.subr.mxu0 0.0
        %1958 = vmatpush2.xpose.msra.mxu0 0.0
        %1959 = vmatprep.subr.mxu0 0.0
        %1960 = vmatpush2.xpose.msra.mxu0 0.0
        %1961 = vmatprep.subr.mxu0 0.0
        %1962 = vmatpush2.xpose.msra.mxu0 0.0
        %1963 = vmatprep.subr.mxu0 0.0
        %1964 = vmatpush2.xpose.msra.mxu0 0.0
        %1965 = vmatprep.mubr.f32.mxu0 0.0
        %1966 = vmatmul.mubr.f32.gmra.mxu0 %v1894
        %v1967 = vpop.f32.mrf.mxu0
        %v1968 = vadd.f32 0.0, %v1967
        %v1969 = vpop.f32.mrf.mxu0
        %1970 = vmatprep.mubr.f32.mxu0 0.0
        %1971 = vmatmul.mubr.f32.gmra.mxu0 %v1896
        %v1972 = vpop.f32.mrf.mxu0
        %v1973 = vadd.f32 0.0, %v1972
        %v1974 = vpop.f32.mrf.mxu0
        %1975 = vdwg.mxu0
        %1976 = vxpose.xlu0.b32.start [1/16] %v1889, 128
        %1977 = vxpose.xlu0.b32.cont [2/16] 0.0, 128
        %1978 = vxpose.xlu0.b32.cont [3/16] 0.0, 128
        %1979 = vxpose.xlu0.b32.cont [4/16] 0.0, 128
        %1980 = vxpose.xlu0.b32.cont [5/16] 0.0, 128
        %1981 = vxpose.xlu0.b32.cont [6/16] 0.0, 128
        %1982 = vxpose.xlu0.b32.cont [7/16] 0.0, 128
        %1983 = vxpose.xlu0.b32.cont [8/16] 0.0, 128
        %1984 = vxpose.xlu0.b32.cont [9/16] 0.0, 128
        %1985 = vxpose.xlu0.b32.cont [10/16] 0.0, 128
        %1986 = vxpose.xlu0.b32.cont [11/16] 0.0, 128
        %1987 = vxpose.xlu0.b32.cont [12/16] 0.0, 128
        %1988 = vxpose.xlu0.b32.cont [13/16] 0.0, 128
        %1989 = vxpose.xlu0.b32.cont [14/16] 0.0, 128
        %1990 = vxpose.xlu0.b32.cont [15/16] 0.0, 128
        %1991 = vxpose.xlu0.b32.end [16/16] 0.0, 128
        %v1992 = vpop.trf.xlu0
        %v1993 = vpop.trf.xlu0
        %v1994 = vpop.trf.xlu0
        %v1995 = vpop.trf.xlu0
        %v1996 = vpop.trf.xlu0
        %v1997 = vpop.trf.xlu0
        %v1998 = vpop.trf.xlu0
        %v1999 = vpop.trf.xlu0
        %v2000 = vpop.trf.xlu0
        %v2001 = vpop.trf.xlu0
        %v2002 = vpop.trf.xlu0
        %v2003 = vpop.trf.xlu0
        %v2004 = vpop.trf.xlu0
        %v2005 = vpop.trf.xlu0
        %v2006 = vpop.trf.xlu0
        %v2007 = vpop.trf.xlu0
        %v2008 = vlaneseq
        %v2009 = vshrl.u32 %v2008, 7
        %v2010 = vsub.s32 0, %v2009
        %v2011 = vrot.slane %v1992, %v2010
        %v2012 = vadd.f32 %v1882, %v2011
        %v2013 = vadd.f32 %v1885, %v2011
        %v2014 = vmul.f32 %v1968, 2.0
        %v2015 = vmul.f32 %v1973, 2.0
        %v2016 = vsub.f32 %v2012, %v2014
        %v2017 = vsub.f32 %v2013, %v2015
        %v2018 = vmax.f32 %v2016, 0.0
        %v2019 = vmax.f32 %v2017, 0.0
        %v2020 = vmul.f32 %v2018, -0.5
        %v2021 = vmul.f32 %v2019, -0.5
        %v2022 = vmul.f32 %v2020, 1.442695
        %v2023 = vpow.pop %v2022
        %v2024 = vmul.f32 %v2021, 1.442695
        %v2025 = vpow.pop %v2024
        %2026 = vmatprep.subr.mxu0 0.0
        %2027 = vmatpush1.xpose.msra.mxu0 0.0
        %2028 = vmatprep.subr.mxu0 0.0
        %2029 = vmatpush1.xpose.msra.mxu0 0.0
        %2030 = vmatprep.subr.mxu0 0.0
        %2031 = vmatpush1.xpose.msra.mxu0 0.0
        %2032 = vmatprep.subr.mxu0 0.0
        %2033 = vmatpush1.xpose.msra.mxu0 0.0
        %2034 = vmatprep.subr.mxu0 0.0
        %2035 = vmatpush1.xpose.msra.mxu0 0.0
        %2036 = vmatprep.subr.mxu0 0.0
        %2037 = vmatpush1.xpose.msra.mxu0 0.0
        %2038 = vmatprep.subr.mxu0 0.0
        %2039 = vmatpush1.xpose.msra.mxu0 0.0
        %2040 = vmatprep.subr.mxu0 0.0
        %2041 = vmatpush1.xpose.msra.mxu0 0.0
        %2042 = vmatprep.subr.mxu0 0.0
        %2043 = vmatpush1.xpose.msra.mxu0 0.0
        %2044 = vmatprep.subr.mxu0 0.0
        %2045 = vmatpush1.xpose.msra.mxu0 0.0
        %2046 = vmatprep.subr.mxu0 0.0
        %2047 = vmatpush1.xpose.msra.mxu0 0.0
        %2048 = vmatprep.subr.mxu0 0.0
        %2049 = vmatpush1.xpose.msra.mxu0 0.0
        %2050 = vmatprep.subr.mxu0 0.0
        %2051 = vmatpush1.xpose.msra.mxu0 0.0
        %2052 = vmatprep.subr.mxu0 0.0
        %2053 = vmatpush1.xpose.msra.mxu0 0.0
        %2054 = vmatprep.subr.mxu0 0.0
        %2055 = vmatpush1.xpose.msra.mxu0 0.0
        %2056 = vmatprep.subr.mxu0 0.0
        %2057 = vmatpush1.xpose.msra.mxu0 %v1899
        %2058 = vmatprep.subr.mxu0 0.0
        %2059 = vmatpush2.xpose.msra.mxu0 0.0
        %2060 = vmatprep.subr.mxu0 0.0
        %2061 = vmatpush2.xpose.msra.mxu0 0.0
        %2062 = vmatprep.subr.mxu0 0.0
        %2063 = vmatpush2.xpose.msra.mxu0 0.0
        %2064 = vmatprep.subr.mxu0 0.0
        %2065 = vmatpush2.xpose.msra.mxu0 0.0
        %2066 = vmatprep.subr.mxu0 0.0
        %2067 = vmatpush2.xpose.msra.mxu0 0.0
        %2068 = vmatprep.subr.mxu0 0.0
        %2069 = vmatpush2.xpose.msra.mxu0 0.0
        %2070 = vmatprep.subr.mxu0 0.0
        %2071 = vmatpush2.xpose.msra.mxu0 0.0
        %2072 = vmatprep.subr.mxu0 0.0
        %2073 = vmatpush2.xpose.msra.mxu0 0.0
        %2074 = vmatprep.subr.mxu0 0.0
        %2075 = vmatpush2.xpose.msra.mxu0 0.0
        %2076 = vmatprep.subr.mxu0 0.0
        %2077 = vmatpush2.xpose.msra.mxu0 0.0
        %2078 = vmatprep.subr.mxu0 0.0
        %2079 = vmatpush2.xpose.msra.mxu0 0.0
        %2080 = vmatprep.subr.mxu0 0.0
        %2081 = vmatpush2.xpose.msra.mxu0 0.0
        %2082 = vmatprep.subr.mxu0 0.0
        %2083 = vmatpush2.xpose.msra.mxu0 0.0
        %2084 = vmatprep.subr.mxu0 0.0
        %2085 = vmatpush2.xpose.msra.mxu0 0.0
        %2086 = vmatprep.subr.mxu0 0.0
        %2087 = vmatpush2.xpose.msra.mxu0 0.0
        %2088 = vmatprep.subr.mxu0 0.0
        %2089 = vmatpush2.xpose.msra.mxu0 0.0
        %2090 = vmatprep.mubr.f32.mxu0 0.0
        %2091 = vmatmul.mubr.f32.gmra.mxu0 %v1899
        %v2092 = vpop.f32.mrf.mxu0
        %v2093 = vadd.f32 0.0, %v2092
        %v2094 = vpop.f32.mrf.mxu0
        %2095 = vdwg.mxu0
        %v2096 = vadd.f32 %v1889, %v2011
        %v2097 = vmul.f32 %v2093, 2.0
        %v2098 = vsub.f32 %v2096, %v2097
        %v2099 = vmax.f32 %v2098, 0.0
        %v2100 = vmul.f32 %v2099, -0.5
        %v2101 = vmul.f32 %v2100, 1.442695
        %v2102 = vpow.pop %v2101
        %2103 = vxpose.xlu0.b32.start [1/16] %v2023, 128
        %2104 = vxpose.xlu0.b32.cont [2/16] %v2025, 128
        %2105 = vxpose.xlu0.b32.cont [3/16] 0.0, 128
        %2106 = vxpose.xlu0.b32.cont [4/16] 0.0, 128
        %2107 = vxpose.xlu0.b32.cont [5/16] 0.0, 128
        %2108 = vxpose.xlu0.b32.cont [6/16] 0.0, 128
        %2109 = vxpose.xlu0.b32.cont [7/16] 0.0, 128
        %2110 = vxpose.xlu0.b32.cont [8/16] 0.0, 128
        %2111 = vxpose.xlu0.b32.cont [9/16] 0.0, 128
        %2112 = vxpose.xlu0.b32.cont [10/16] 0.0, 128
        %2113 = vxpose.xlu0.b32.cont [11/16] 0.0, 128
        %2114 = vxpose.xlu0.b32.cont [12/16] 0.0, 128
        %2115 = vxpose.xlu0.b32.cont [13/16] 0.0, 128
        %2116 = vxpose.xlu0.b32.cont [14/16] 0.0, 128
        %2117 = vxpose.xlu0.b32.cont [15/16] 0.0, 128
        %2118 = vxpose.xlu0.b32.end [16/16] 0.0, 128
        %v2119 = vpop.trf.xlu0
        %v2120 = vpop.trf.xlu0
        %v2121 = vpop.trf.xlu0
        %v2122 = vpop.trf.xlu0
        %v2123 = vpop.trf.xlu0
        %v2124 = vpop.trf.xlu0
        %v2125 = vpop.trf.xlu0
        %v2126 = vpop.trf.xlu0
        %v2127 = vpop.trf.xlu0
        %v2128 = vpop.trf.xlu0
        %v2129 = vpop.trf.xlu0
        %v2130 = vpop.trf.xlu0
        %v2131 = vpop.trf.xlu0
        %v2132 = vpop.trf.xlu0
        %v2133 = vpop.trf.xlu0
        %v2134 = vpop.trf.xlu0
        %2137 = vrot.lane.b32.xlu0 %v726, 120
        %v2138 = vpop.permute.xlu0 %2137
        %2139 = vrot.lane.b32.xlu0 %v727, 120
        %v2140 = vpop.permute.xlu0 %2139
        %v2144 = vsel %vm1434, %v2119, 0
        %2146 = vmatprep.subr.mxu0 0.0
        %2147 = vmatpush1.msra.mxu0 0.0
        %2148 = vmatprep.subr.mxu0 0.0
        %2149 = vmatpush1.msra.mxu0 0.0
        %2150 = vmatprep.subr.mxu0 0.0
        %2151 = vmatpush1.msra.mxu0 0.0
        %2152 = vmatprep.subr.mxu0 0.0
        %2153 = vmatpush1.msra.mxu0 0.0
        %2154 = vmatprep.subr.mxu0 0.0
        %2155 = vmatpush1.msra.mxu0 0.0
        %2156 = vmatprep.subr.mxu0 0.0
        %2157 = vmatpush1.msra.mxu0 0.0
        %2158 = vmatprep.subr.mxu0 0.0
        %2159 = vmatpush1.msra.mxu0 0.0
        %2160 = vmatprep.subr.mxu0 0.0
        %2161 = vmatpush1.msra.mxu0 0.0
        %2162 = vmatprep.subr.mxu0 0.0
        %2163 = vmatpush1.msra.mxu0 0.0
        %2164 = vmatprep.subr.mxu0 0.0
        %2165 = vmatpush1.msra.mxu0 0.0
        %2166 = vmatprep.subr.mxu0 0.0
        %2167 = vmatpush1.msra.mxu0 0.0
        %2168 = vmatprep.subr.mxu0 0.0
        %2169 = vmatpush1.msra.mxu0 0.0
        %2170 = vmatprep.subr.mxu0 0.0
        %2171 = vmatpush1.msra.mxu0 0.0
        %2172 = vmatprep.subr.mxu0 0.0
        %2173 = vmatpush1.msra.mxu0 0.0
        %2174 = vmatprep.subr.mxu0 0.0
        %2175 = vmatpush1.msra.mxu0 %v2140
        %2176 = vmatprep.subr.mxu0 0.0
        %2177 = vmatpush1.msra.mxu0 %v2138
        %2178 = vmatprep.subr.mxu0 0.0
        %2179 = vmatpush2.msra.mxu0 0.0
        %2180 = vmatprep.subr.mxu0 0.0
        %2181 = vmatpush2.msra.mxu0 0.0
        %2182 = vmatprep.subr.mxu0 0.0
        %2183 = vmatpush2.msra.mxu0 0.0
        %2184 = vmatprep.subr.mxu0 0.0
        %2185 = vmatpush2.msra.mxu0 0.0
        %2186 = vmatprep.subr.mxu0 0.0
        %2187 = vmatpush2.msra.mxu0 0.0
        %2188 = vmatprep.subr.mxu0 0.0
        %2189 = vmatpush2.msra.mxu0 0.0
        %2190 = vmatprep.subr.mxu0 0.0
        %2191 = vmatpush2.msra.mxu0 0.0
        %2192 = vmatprep.subr.mxu0 0.0
        %2193 = vmatpush2.msra.mxu0 0.0
        %2194 = vmatprep.subr.mxu0 0.0
        %2195 = vmatpush2.msra.mxu0 0.0
        %2196 = vmatprep.subr.mxu0 0.0
        %2197 = vmatpush2.msra.mxu0 0.0
        %2198 = vmatprep.subr.mxu0 0.0
        %2199 = vmatpush2.msra.mxu0 0.0
        %2200 = vmatprep.subr.mxu0 0.0
        %2201 = vmatpush2.msra.mxu0 0.0
        %2202 = vmatprep.subr.mxu0 0.0
        %2203 = vmatpush2.msra.mxu0 0.0
        %2204 = vmatprep.subr.mxu0 0.0
        %2205 = vmatpush2.msra.mxu0 0.0
        %2206 = vmatprep.subr.mxu0 0.0
        %2207 = vmatpush2.msra.mxu0 0.0
        %2208 = vmatprep.subr.mxu0 0.0
        %2209 = vmatpush2.msra.mxu0 0.0
        %2210 = vmatprep.mubr.f32.mxu0 0.0
        %2211 = vmatmul.mubr.f32.gmra.mxu0 %v2144
        %v2212 = vpop.f32.mrf.mxu0
        %v2213 = vadd.f32 0.0, %v2212
        %v2214 = vpop.f32.mrf.mxu0
        %2215 = vdwg.mxu0
        %2218 = vrot.lane.b32.xlu0 %v2023, 4
        %v2219 = vpop.permute.xlu0 %2218
        %2220 = vrot.lane.b32.xlu0 %v2025, 4
        %v2221 = vpop.permute.xlu0 %2220
        %vm2224 = vcmask 64544
        %2225 = vst.msk [vmem:[%s499] sm:$0xff] %vm2224, %v2219
        %2226 = vst.msk [vmem:[%s499 + $0x8] sm:$0xff] %vm2224, %v2221
        %s2227 = scalar_lea.vmem %s506, 4 [#allocation10]
        %2228 = vst.msk [vmem:[%s2227] sm:$0xf] %vm1511, %v2102
        %2230 = vrot.lane.b32.xlu0 %v2213, 8
        %v2231 = vpop.permute.xlu0 %2230
        %vm2233 = vcmask 126016
        %2234 = vst.msk [vmem:[%s513] sm:$0xf] %vm2233, %v2231
        %v2235 = vld [vmem:[#allocation8] sm:$0xff]
        %v2236 = vld [vmem:[%s820] sm:$0xff]
        %2237 = vrot.lane.b32.xlu0 %v814, 112
        %v2238 = vpop.permute.xlu0 %2237
        %v2239 = vsel %vm822, %v2238, 0
        %2241 = vmatprep.subr.mxu0 0.0
        %2242 = vmatpush1.msra.mxu0 0.0
        %2243 = vmatprep.subr.mxu0 0.0
        %2244 = vmatpush1.msra.mxu0 0.0
        %2245 = vmatprep.subr.mxu0 0.0
        %2246 = vmatpush1.msra.mxu0 0.0
        %2247 = vmatprep.subr.mxu0 0.0
        %2248 = vmatpush1.msra.mxu0 0.0
        %2249 = vmatprep.subr.mxu0 0.0
        %2250 = vmatpush1.msra.mxu0 0.0
        %2251 = vmatprep.subr.mxu0 0.0
        %2252 = vmatpush1.msra.mxu0 0.0
        %2253 = vmatprep.subr.mxu0 0.0
        %2254 = vmatpush1.msra.mxu0 0.0
        %2255 = vmatprep.subr.mxu0 0.0
        %2256 = vmatpush1.msra.mxu0 0.0
        %2257 = vmatprep.subr.mxu0 0.0
        %2258 = vmatpush1.msra.mxu0 0.0
        %2259 = vmatprep.subr.mxu0 0.0
        %2260 = vmatpush1.msra.mxu0 0.0
        %2261 = vmatprep.subr.mxu0 0.0
        %2262 = vmatpush1.msra.mxu0 0.0
        %2263 = vmatprep.subr.mxu0 0.0
        %2264 = vmatpush1.msra.mxu0 0.0
        %2265 = vmatprep.subr.mxu0 0.0
        %2266 = vmatpush1.msra.mxu0 0.0
        %2267 = vmatprep.subr.mxu0 0.0
        %2268 = vmatpush1.msra.mxu0 0.0
        %2269 = vmatprep.subr.mxu0 0.0
        %2270 = vmatpush1.msra.mxu0 0.0
        %2271 = vmatprep.subr.mxu0 0.0
        %2272 = vmatpush1.msra.mxu0 %v2236
        %2273 = vmatprep.subr.mxu0 0.0
        %2274 = vmatpush2.msra.mxu0 0.0
        %2275 = vmatprep.subr.mxu0 0.0
        %2276 = vmatpush2.msra.mxu0 0.0
        %2277 = vmatprep.subr.mxu0 0.0
        %2278 = vmatpush2.msra.mxu0 0.0
        %2279 = vmatprep.subr.mxu0 0.0
        %2280 = vmatpush2.msra.mxu0 0.0
        %2281 = vmatprep.subr.mxu0 0.0
        %2282 = vmatpush2.msra.mxu0 0.0
        %2283 = vmatprep.subr.mxu0 0.0
        %2284 = vmatpush2.msra.mxu0 0.0
        %2285 = vmatprep.subr.mxu0 0.0
        %2286 = vmatpush2.msra.mxu0 0.0
        %2287 = vmatprep.subr.mxu0 0.0
        %2288 = vmatpush2.msra.mxu0 0.0
        %2289 = vmatprep.subr.mxu0 0.0
        %2290 = vmatpush2.msra.mxu0 0.0
        %2291 = vmatprep.subr.mxu0 0.0
        %2292 = vmatpush2.msra.mxu0 0.0
        %2293 = vmatprep.subr.mxu0 0.0
        %2294 = vmatpush2.msra.mxu0 0.0
        %2295 = vmatprep.subr.mxu0 0.0
        %2296 = vmatpush2.msra.mxu0 0.0
        %2297 = vmatprep.subr.mxu0 0.0
        %2298 = vmatpush2.msra.mxu0 0.0
        %2299 = vmatprep.subr.mxu0 0.0
        %2300 = vmatpush2.msra.mxu0 0.0
        %2301 = vmatprep.subr.mxu0 0.0
        %2302 = vmatpush2.msra.mxu0 0.0
        %2303 = vmatprep.subr.mxu0 0.0
        %2304 = vmatpush2.msra.mxu0 0.0
        %2305 = vmatprep.mubr.f32.mxu0 0.0
        %2306 = vmatmul.mubr.f32.gmra.mxu0 %v2239
        %v2307 = vpop.f32.mrf.mxu0
        %v2308 = vadd.f32 0.0, %v2307
        %v2309 = vpop.f32.mrf.mxu0
        %2310 = vdwg.mxu0
        %2311 = vrot.lane.b32.xlu0 %v812, 112
        %v2312 = vpop.permute.xlu0 %2311
        %v2313 = vsel %vm822, %v2312, 0
        %2315 = vmatprep.subr.mxu0 0.0
        %2316 = vmatpush1.msra.mxu0 0.0
        %2317 = vmatprep.subr.mxu0 0.0
        %2318 = vmatpush1.msra.mxu0 0.0
        %2319 = vmatprep.subr.mxu0 0.0
        %2320 = vmatpush1.msra.mxu0 0.0
        %2321 = vmatprep.subr.mxu0 0.0
        %2322 = vmatpush1.msra.mxu0 0.0
        %2323 = vmatprep.subr.mxu0 0.0
        %2324 = vmatpush1.msra.mxu0 0.0
        %2325 = vmatprep.subr.mxu0 0.0
        %2326 = vmatpush1.msra.mxu0 0.0
        %2327 = vmatprep.subr.mxu0 0.0
        %2328 = vmatpush1.msra.mxu0 0.0
        %2329 = vmatprep.subr.mxu0 0.0
        %2330 = vmatpush1.msra.mxu0 0.0
        %2331 = vmatprep.subr.mxu0 0.0
        %2332 = vmatpush1.msra.mxu0 0.0
        %2333 = vmatprep.subr.mxu0 0.0
        %2334 = vmatpush1.msra.mxu0 0.0
        %2335 = vmatprep.subr.mxu0 0.0
        %2336 = vmatpush1.msra.mxu0 0.0
        %2337 = vmatprep.subr.mxu0 0.0
        %2338 = vmatpush1.msra.mxu0 0.0
        %2339 = vmatprep.subr.mxu0 0.0
        %2340 = vmatpush1.msra.mxu0 0.0
        %2341 = vmatprep.subr.mxu0 0.0
        %2342 = vmatpush1.msra.mxu0 0.0
        %2343 = vmatprep.subr.mxu0 0.0
        %2344 = vmatpush1.msra.mxu0 0.0
        %2345 = vmatprep.subr.mxu0 0.0
        %2346 = vmatpush1.msra.mxu0 %v2235
        %2347 = vmatprep.subr.mxu0 0.0
        %2348 = vmatpush2.msra.mxu0 0.0
        %2349 = vmatprep.subr.mxu0 0.0
        %2350 = vmatpush2.msra.mxu0 0.0
        %2351 = vmatprep.subr.mxu0 0.0
        %2352 = vmatpush2.msra.mxu0 0.0
        %2353 = vmatprep.subr.mxu0 0.0
        %2354 = vmatpush2.msra.mxu0 0.0
        %2355 = vmatprep.subr.mxu0 0.0
        %2356 = vmatpush2.msra.mxu0 0.0
        %2357 = vmatprep.subr.mxu0 0.0
        %2358 = vmatpush2.msra.mxu0 0.0
        %2359 = vmatprep.subr.mxu0 0.0
        %2360 = vmatpush2.msra.mxu0 0.0
        %2361 = vmatprep.subr.mxu0 0.0
        %2362 = vmatpush2.msra.mxu0 0.0
        %2363 = vmatprep.subr.mxu0 0.0
        %2364 = vmatpush2.msra.mxu0 0.0
        %2365 = vmatprep.subr.mxu0 0.0
        %2366 = vmatpush2.msra.mxu0 0.0
        %2367 = vmatprep.subr.mxu0 0.0
        %2368 = vmatpush2.msra.mxu0 0.0
        %2369 = vmatprep.subr.mxu0 0.0
        %2370 = vmatpush2.msra.mxu0 0.0
        %2371 = vmatprep.subr.mxu0 0.0
        %2372 = vmatpush2.msra.mxu0 0.0
        %2373 = vmatprep.subr.mxu0 0.0
        %2374 = vmatpush2.msra.mxu0 0.0
        %2375 = vmatprep.subr.mxu0 0.0
        %2376 = vmatpush2.msra.mxu0 0.0
        %2377 = vmatprep.subr.mxu0 0.0
        %2378 = vmatpush2.msra.mxu0 0.0
        %2379 = vmatprep.mubr.f32.mxu0 0.0
        %2380 = vmatmul.mubr.f32.gmra.mxu0 %v2313
        %v2381 = vpop.f32.mrf.mxu0
        %v2382 = vadd.f32 %v2308, %v2381
        %v2383 = vpop.f32.mrf.mxu0
        %2384 = vdwg.mxu0
        %v2385 = vld [vmem:[%s969] sm:$0xff]
        %2386 = vrot.lane.b32.xlu0 %v816, 112
        %v2387 = vpop.permute.xlu0 %2386
        %v2388 = vsel %vm822, %v2387, 0
        %2390 = vmatprep.subr.mxu0 0.0
        %2391 = vmatpush1.msra.mxu0 0.0
        %2392 = vmatprep.subr.mxu0 0.0
        %2393 = vmatpush1.msra.mxu0 0.0
        %2394 = vmatprep.subr.mxu0 0.0
        %2395 = vmatpush1.msra.mxu0 0.0
        %2396 = vmatprep.subr.mxu0 0.0
        %2397 = vmatpush1.msra.mxu0 0.0
        %2398 = vmatprep.subr.mxu0 0.0
        %2399 = vmatpush1.msra.mxu0 0.0
        %2400 = vmatprep.subr.mxu0 0.0
        %2401 = vmatpush1.msra.mxu0 0.0
        %2402 = vmatprep.subr.mxu0 0.0
        %2403 = vmatpush1.msra.mxu0 0.0
        %2404 = vmatprep.subr.mxu0 0.0
        %2405 = vmatpush1.msra.mxu0 0.0
        %2406 = vmatprep.subr.mxu0 0.0
        %2407 = vmatpush1.msra.mxu0 0.0
        %2408 = vmatprep.subr.mxu0 0.0
        %2409 = vmatpush1.msra.mxu0 0.0
        %2410 = vmatprep.subr.mxu0 0.0
        %2411 = vmatpush1.msra.mxu0 0.0
        %2412 = vmatprep.subr.mxu0 0.0
        %2413 = vmatpush1.msra.mxu0 0.0
        %2414 = vmatprep.subr.mxu0 0.0
        %2415 = vmatpush1.msra.mxu0 0.0
        %2416 = vmatprep.subr.mxu0 0.0
        %2417 = vmatpush1.msra.mxu0 0.0
        %2418 = vmatprep.subr.mxu0 0.0
        %2419 = vmatpush1.msra.mxu0 0.0
        %2420 = vmatprep.subr.mxu0 0.0
        %2421 = vmatpush1.msra.mxu0 %v2385
        %2422 = vmatprep.subr.mxu0 0.0
        %2423 = vmatpush2.msra.mxu0 0.0
        %2424 = vmatprep.subr.mxu0 0.0
        %2425 = vmatpush2.msra.mxu0 0.0
        %2426 = vmatprep.subr.mxu0 0.0
        %2427 = vmatpush2.msra.mxu0 0.0
        %2428 = vmatprep.subr.mxu0 0.0
        %2429 = vmatpush2.msra.mxu0 0.0
        %2430 = vmatprep.subr.mxu0 0.0
        %2431 = vmatpush2.msra.mxu0 0.0
        %2432 = vmatprep.subr.mxu0 0.0
        %2433 = vmatpush2.msra.mxu0 0.0
        %2434 = vmatprep.subr.mxu0 0.0
        %2435 = vmatpush2.msra.mxu0 0.0
        %2436 = vmatprep.subr.mxu0 0.0
        %2437 = vmatpush2.msra.mxu0 0.0
        %2438 = vmatprep.subr.mxu0 0.0
        %2439 = vmatpush2.msra.mxu0 0.0
        %2440 = vmatprep.subr.mxu0 0.0
        %2441 = vmatpush2.msra.mxu0 0.0
        %2442 = vmatprep.subr.mxu0 0.0
        %2443 = vmatpush2.msra.mxu0 0.0
        %2444 = vmatprep.subr.mxu0 0.0
        %2445 = vmatpush2.msra.mxu0 0.0
        %2446 = vmatprep.subr.mxu0 0.0
        %2447 = vmatpush2.msra.mxu0 0.0
        %2448 = vmatprep.subr.mxu0 0.0
        %2449 = vmatpush2.msra.mxu0 0.0
        %2450 = vmatprep.subr.mxu0 0.0
        %2451 = vmatpush2.msra.mxu0 0.0
        %2452 = vmatprep.subr.mxu0 0.0
        %2453 = vmatpush2.msra.mxu0 0.0
        %2454 = vmatprep.mubr.f32.mxu0 0.0
        %2455 = vmatmul.mubr.f32.gmra.mxu0 %v2388
        %v2456 = vpop.f32.mrf.mxu0
        %v2457 = vadd.f32 0.0, %v2456
        %v2458 = vpop.f32.mrf.mxu0
        %2459 = vdwg.mxu0
        %v2460 = vadd.f32 %v2382, %v2457
        %v2461 = vld [vmem:[%s1045] sm:$0xff]
        %2462 = vrot.lane.b32.xlu0 %v818, 112
        %v2463 = vpop.permute.xlu0 %2462
        %v2464 = vsel %vm822, %v2463, 0
        %2466 = vmatprep.subr.mxu0 0.0
        %2467 = vmatpush1.msra.mxu0 0.0
        %2468 = vmatprep.subr.mxu0 0.0
        %2469 = vmatpush1.msra.mxu0 0.0
        %2470 = vmatprep.subr.mxu0 0.0
        %2471 = vmatpush1.msra.mxu0 0.0
        %2472 = vmatprep.subr.mxu0 0.0
        %2473 = vmatpush1.msra.mxu0 0.0
        %2474 = vmatprep.subr.mxu0 0.0
        %2475 = vmatpush1.msra.mxu0 0.0
        %2476 = vmatprep.subr.mxu0 0.0
        %2477 = vmatpush1.msra.mxu0 0.0
        %2478 = vmatprep.subr.mxu0 0.0
        %2479 = vmatpush1.msra.mxu0 0.0
        %2480 = vmatprep.subr.mxu0 0.0
        %2481 = vmatpush1.msra.mxu0 0.0
        %2482 = vmatprep.subr.mxu0 0.0
        %2483 = vmatpush1.msra.mxu0 0.0
        %2484 = vmatprep.subr.mxu0 0.0
        %2485 = vmatpush1.msra.mxu0 0.0
        %2486 = vmatprep.subr.mxu0 0.0
        %2487 = vmatpush1.msra.mxu0 0.0
        %2488 = vmatprep.subr.mxu0 0.0
        %2489 = vmatpush1.msra.mxu0 0.0
        %2490 = vmatprep.subr.mxu0 0.0
        %2491 = vmatpush1.msra.mxu0 0.0
        %2492 = vmatprep.subr.mxu0 0.0
        %2493 = vmatpush1.msra.mxu0 0.0
        %2494 = vmatprep.subr.mxu0 0.0
        %2495 = vmatpush1.msra.mxu0 0.0
        %2496 = vmatprep.subr.mxu0 0.0
        %2497 = vmatpush1.msra.mxu0 %v2461
        %2498 = vmatprep.subr.mxu0 0.0
        %2499 = vmatpush2.msra.mxu0 0.0
        %2500 = vmatprep.subr.mxu0 0.0
        %2501 = vmatpush2.msra.mxu0 0.0
        %2502 = vmatprep.subr.mxu0 0.0
        %2503 = vmatpush2.msra.mxu0 0.0
        %2504 = vmatprep.subr.mxu0 0.0
        %2505 = vmatpush2.msra.mxu0 0.0
        %2506 = vmatprep.subr.mxu0 0.0
        %2507 = vmatpush2.msra.mxu0 0.0
        %2508 = vmatprep.subr.mxu0 0.0
        %2509 = vmatpush2.msra.mxu0 0.0
        %2510 = vmatprep.subr.mxu0 0.0
        %2511 = vmatpush2.msra.mxu0 0.0
        %2512 = vmatprep.subr.mxu0 0.0
        %2513 = vmatpush2.msra.mxu0 0.0
        %2514 = vmatprep.subr.mxu0 0.0
        %2515 = vmatpush2.msra.mxu0 0.0
        %2516 = vmatprep.subr.mxu0 0.0
        %2517 = vmatpush2.msra.mxu0 0.0
        %2518 = vmatprep.subr.mxu0 0.0
        %2519 = vmatpush2.msra.mxu0 0.0
        %2520 = vmatprep.subr.mxu0 0.0
        %2521 = vmatpush2.msra.mxu0 0.0
        %2522 = vmatprep.subr.mxu0 0.0
        %2523 = vmatpush2.msra.mxu0 0.0
        %2524 = vmatprep.subr.mxu0 0.0
        %2525 = vmatpush2.msra.mxu0 0.0
        %2526 = vmatprep.subr.mxu0 0.0
        %2527 = vmatpush2.msra.mxu0 0.0
        %2528 = vmatprep.subr.mxu0 0.0
        %2529 = vmatpush2.msra.mxu0 0.0
        %2530 = vmatprep.mubr.f32.mxu0 0.0
        %2531 = vmatmul.mubr.f32.gmra.mxu0 %v2464
        %v2532 = vpop.f32.mrf.mxu0
        %v2533 = vadd.f32 0.0, %v2532
        %v2534 = vpop.f32.mrf.mxu0
        %2535 = vdwg.mxu0
        %v2536 = vadd.f32 %v2460, %v2533
        %v2537 = vsel %vm1121, %v2536, 0.0
        %2538 = vadd.xlane.f32.xlu0 %v2537
        %v2539 = vpop.xlane.xlu0 %2538
        %v2540 = vmul.f32 %v2539, %v1125
        %v2541 = vsub.f32 %v2536, %v2540
        %v2542 = vmul.f32 %v2541, %v2541
        %v2543 = vsel %vm1121, %v2542, 0.0
        %2544 = vadd.xlane.f32.xlu0 %v2543
        %v2545 = vpop.xlane.xlu0 %2544
        %v2546 = vmul.f32 %v2545, %v1125
        %v2547 = vadd.f32 %v2546, 1e-05
        %v2548 = vrsqrt.pop %v2547
        %v2549 = vmul.f32 %v2541, %v2548
        %v2550 = vld [vmem:[%s7] sm:$0x1]
        %v2552 = vlaneseq
        %v2553 = vshrl.u32 %v2552, 7
        %v2554 = vsub.s32 0, %v2553
        %v2555 = vrot.slane %v2550, %v2554
        %v2557 = vmul.f32 %v2549, %v2555
        %v2558 = vld [vmem:[%s8] sm:$0x1]
        %v2560 = vlaneseq
        %v2561 = vshrl.u32 %v2560, 7
        %v2562 = vsub.s32 0, %v2561
        %v2563 = vrot.slane %v2558, %v2562
        %v2565 = vadd.f32 %v2557, %v2563
        %v2566 = vmul.f32 %v2565, 0.70710677
        %v2567 = vand.u32 2147483647, %v2566
        %v2568 = vmul.f32 %v2567, 0.3275911
        %v2569 = vadd.f32 %v2568, 1.0
        %v2570 = vrcp.pop %v2569
        %v2571 = vmul.f32 1.0, %v2570
        %v2572 = vmul.f32 %v2571, 1.0614054
        %v2573 = vadd.f32 %v2572, -1.4531521
        %v2574 = vmul.f32 %v2571, %v2573
        %v2575 = vadd.f32 %v2574, 1.4214138
        %v2576 = vmul.f32 %v2571, %v2575
        %v2577 = vadd.f32 %v2576, -0.28449672
        %v2578 = vmul.f32 %v2571, %v2577
        %v2579 = vadd.f32 %v2578, 0.2548296
        %v2580 = vmul.f32 %v2571, %v2579
        %v2581 = vsub.f32 0.0, %v2567
        %v2582 = vmul.f32 %v2581, %v2567
        %v2583 = vmul.f32 %v2582, 1.442695
        %v2584 = vpow.pop %v2583
        %v2585 = vmul.f32 %v2580, %v2584
        %v2586 = vsub.f32 1.0, %v2585
        %vm2587 = vcmp.lt.f32.partialorder %v2566, 0.0
        %v2588 = vsub.f32 0.0, %v2586
        %v2589 = vsel %vm2587, %v2588, %v2586
        %v2590 = vmul.f32 %v2565, 0.5
        %v2591 = vadd.f32 %v2589, 1.0
        %v2592 = vmul.f32 %v2590, %v2591
        %2593 = vrot.lane.b32.xlu0 %v1179, 112
        %v2594 = vpop.permute.xlu0 %2593
        %2595 = vrot.lane.b32.xlu0 %v1180, 112
        %v2596 = vpop.permute.xlu0 %2595
        %v2599 = vsel %vm822, %v2594, 0.0
        %2600 = vadd.xlane.f32.xlu0 %v2599
        %v2601 = vpop.xlane.xlu0 %2600
        %v2602 = vsel %vm822, %v2596, 0.0
        %2603 = vadd.xlane.f32.xlu0 %v2602
        %v2604 = vpop.xlane.xlu0 %2603
        %v2605 = vmul.f32 %v2592, %v2592
        %v2606 = vsel %vm1121, %v2605, 0.0
        %2607 = vadd.xlane.f32.xlu0 %v2606
        %v2608 = vpop.xlane.xlu0 %2607
        %2609 = vrot.lane.b32.xlu0 %v728, 112
        %v2610 = vpop.permute.xlu0 %2609
        %2611 = vrot.lane.b32.xlu0 %v729, 112
        %v2612 = vpop.permute.xlu0 %2611
        %v2613 = vsel %vm822, %v2610, 0
        %v2615 = vsel %vm822, %v2612, 0
        %v2618 = vsel %vm822, %v2592, 0
        %2620 = vmatprep.subr.mxu0 0.0
        %2621 = vmatpush1.xpose.msra.mxu0 0.0
        %2622 = vmatprep.subr.mxu0 0.0
        %2623 = vmatpush1.xpose.msra.mxu0 0.0
        %2624 = vmatprep.subr.mxu0 0.0
        %2625 = vmatpush1.xpose.msra.mxu0 0.0
        %2626 = vmatprep.subr.mxu0 0.0
        %2627 = vmatpush1.xpose.msra.mxu0 0.0
        %2628 = vmatprep.subr.mxu0 0.0
        %2629 = vmatpush1.xpose.msra.mxu0 0.0
        %2630 = vmatprep.subr.mxu0 0.0
        %2631 = vmatpush1.xpose.msra.mxu0 0.0
        %2632 = vmatprep.subr.mxu0 0.0
        %2633 = vmatpush1.xpose.msra.mxu0 0.0
        %2634 = vmatprep.subr.mxu0 0.0
        %2635 = vmatpush1.xpose.msra.mxu0 0.0
        %2636 = vmatprep.subr.mxu0 0.0
        %2637 = vmatpush1.xpose.msra.mxu0 0.0
        %2638 = vmatprep.subr.mxu0 0.0
        %2639 = vmatpush1.xpose.msra.mxu0 0.0
        %2640 = vmatprep.subr.mxu0 0.0
        %2641 = vmatpush1.xpose.msra.mxu0 0.0
        %2642 = vmatprep.subr.mxu0 0.0
        %2643 = vmatpush1.xpose.msra.mxu0 0.0
        %2644 = vmatprep.subr.mxu0 0.0
        %2645 = vmatpush1.xpose.msra.mxu0 0.0
        %2646 = vmatprep.subr.mxu0 0.0
        %2647 = vmatpush1.xpose.msra.mxu0 0.0
        %2648 = vmatprep.subr.mxu0 0.0
        %2649 = vmatpush1.xpose.msra.mxu0 0.0
        %2650 = vmatprep.subr.mxu0 0.0
        %2651 = vmatpush1.xpose.msra.mxu0 %v2618
        %2652 = vmatprep.subr.mxu0 0.0
        %2653 = vmatpush2.xpose.msra.mxu0 0.0
        %2654 = vmatprep.subr.mxu0 0.0
        %2655 = vmatpush2.xpose.msra.mxu0 0.0
        %2656 = vmatprep.subr.mxu0 0.0
        %2657 = vmatpush2.xpose.msra.mxu0 0.0
        %2658 = vmatprep.subr.mxu0 0.0
        %2659 = vmatpush2.xpose.msra.mxu0 0.0
        %2660 = vmatprep.subr.mxu0 0.0
        %2661 = vmatpush2.xpose.msra.mxu0 0.0
        %2662 = vmatprep.subr.mxu0 0.0
        %2663 = vmatpush2.xpose.msra.mxu0 0.0
        %2664 = vmatprep.subr.mxu0 0.0
        %2665 = vmatpush2.xpose.msra.mxu0 0.0
        %2666 = vmatprep.subr.mxu0 0.0
        %2667 = vmatpush2.xpose.msra.mxu0 0.0
        %2668 = vmatprep.subr.mxu0 0.0
        %2669 = vmatpush2.xpose.msra.mxu0 0.0
        %2670 = vmatprep.subr.mxu0 0.0
        %2671 = vmatpush2.xpose.msra.mxu0 0.0
        %2672 = vmatprep.subr.mxu0 0.0
        %2673 = vmatpush2.xpose.msra.mxu0 0.0
        %2674 = vmatprep.subr.mxu0 0.0
        %2675 = vmatpush2.xpose.msra.mxu0 0.0
        %2676 = vmatprep.subr.mxu0 0.0
        %2677 = vmatpush2.xpose.msra.mxu0 0.0
        %2678 = vmatprep.subr.mxu0 0.0
        %2679 = vmatpush2.xpose.msra.mxu0 0.0
        %2680 = vmatprep.subr.mxu0 0.0
        %2681 = vmatpush2.xpose.msra.mxu0 0.0
        %2682 = vmatprep.subr.mxu0 0.0
        %2683 = vmatpush2.xpose.msra.mxu0 0.0
        %2684 = vmatprep.mubr.f32.mxu0 0.0
        %2685 = vmatmul.mubr.f32.gmra.mxu0 %v2613
        %v2686 = vpop.f32.mrf.mxu0
        %v2687 = vadd.f32 0.0, %v2686
        %v2688 = vpop.f32.mrf.mxu0
        %2689 = vmatprep.mubr.f32.mxu0 0.0
        %2690 = vmatmul.mubr.f32.gmra.mxu0 %v2615
        %v2691 = vpop.f32.mrf.mxu0
        %v2692 = vadd.f32 0.0, %v2691
        %v2693 = vpop.f32.mrf.mxu0
        %2694 = vdwg.mxu0
        %2695 = vxpose.xlu0.b32.start [1/16] %v2608, 128
        %2696 = vxpose.xlu0.b32.cont [2/16] 0.0, 128
        %2697 = vxpose.xlu0.b32.cont [3/16] 0.0, 128
        %2698 = vxpose.xlu0.b32.cont [4/16] 0.0, 128
        %2699 = vxpose.xlu0.b32.cont [5/16] 0.0, 128
        %2700 = vxpose.xlu0.b32.cont [6/16] 0.0, 128
        %2701 = vxpose.xlu0.b32.cont [7/16] 0.0, 128
        %2702 = vxpose.xlu0.b32.cont [8/16] 0.0, 128
        %2703 = vxpose.xlu0.b32.cont [9/16] 0.0, 128
        %2704 = vxpose.xlu0.b32.cont [10/16] 0.0, 128
        %2705 = vxpose.xlu0.b32.cont [11/16] 0.0, 128
        %2706 = vxpose.xlu0.b32.cont [12/16] 0.0, 128
        %2707 = vxpose.xlu0.b32.cont [13/16] 0.0, 128
        %2708 = vxpose.xlu0.b32.cont [14/16] 0.0, 128
        %2709 = vxpose.xlu0.b32.cont [15/16] 0.0, 128
        %2710 = vxpose.xlu0.b32.end [16/16] 0.0, 128
        %v2711 = vpop.trf.xlu0
        %v2712 = vpop.trf.xlu0
        %v2713 = vpop.trf.xlu0
        %v2714 = vpop.trf.xlu0
        %v2715 = vpop.trf.xlu0
        %v2716 = vpop.trf.xlu0
        %v2717 = vpop.trf.xlu0
        %v2718 = vpop.trf.xlu0
        %v2719 = vpop.trf.xlu0
        %v2720 = vpop.trf.xlu0
        %v2721 = vpop.trf.xlu0
        %v2722 = vpop.trf.xlu0
        %v2723 = vpop.trf.xlu0
        %v2724 = vpop.trf.xlu0
        %v2725 = vpop.trf.xlu0
        %v2726 = vpop.trf.xlu0
        %v2727 = vlaneseq
        %v2728 = vshrl.u32 %v2727, 7
        %v2729 = vsub.s32 0, %v2728
        %v2730 = vrot.slane %v2711, %v2729
        %v2731 = vadd.f32 %v2601, %v2730
        %v2732 = vadd.f32 %v2604, %v2730
        %v2733 = vmul.f32 %v2687, 2.0
        %v2734 = vmul.f32 %v2692, 2.0
        %v2735 = vsub.f32 %v2731, %v2733
        %v2736 = vsub.f32 %v2732, %v2734
        %v2737 = vmax.f32 %v2735, 0.0
        %v2738 = vmax.f32 %v2736, 0.0
        %v2739 = vmul.f32 %v2737, -0.5
        %v2740 = vmul.f32 %v2738, -0.5
        %v2741 = vmul.f32 %v2739, 1.442695
        %v2742 = vpow.pop %v2741
        %v2743 = vmul.f32 %v2740, 1.442695
        %v2744 = vpow.pop %v2743
        %2745 = vmatprep.subr.mxu0 0.0
        %2746 = vmatpush1.xpose.msra.mxu0 0.0
        %2747 = vmatprep.subr.mxu0 0.0
        %2748 = vmatpush1.xpose.msra.mxu0 0.0
        %2749 = vmatprep.subr.mxu0 0.0
        %2750 = vmatpush1.xpose.msra.mxu0 0.0
        %2751 = vmatprep.subr.mxu0 0.0
        %2752 = vmatpush1.xpose.msra.mxu0 0.0
        %2753 = vmatprep.subr.mxu0 0.0
        %2754 = vmatpush1.xpose.msra.mxu0 0.0
        %2755 = vmatprep.subr.mxu0 0.0
        %2756 = vmatpush1.xpose.msra.mxu0 0.0
        %2757 = vmatprep.subr.mxu0 0.0
        %2758 = vmatpush1.xpose.msra.mxu0 0.0
        %2759 = vmatprep.subr.mxu0 0.0
        %2760 = vmatpush1.xpose.msra.mxu0 0.0
        %2761 = vmatprep.subr.mxu0 0.0
        %2762 = vmatpush1.xpose.msra.mxu0 0.0
        %2763 = vmatprep.subr.mxu0 0.0
        %2764 = vmatpush1.xpose.msra.mxu0 0.0
        %2765 = vmatprep.subr.mxu0 0.0
        %2766 = vmatpush1.xpose.msra.mxu0 0.0
        %2767 = vmatprep.subr.mxu0 0.0
        %2768 = vmatpush1.xpose.msra.mxu0 0.0
        %2769 = vmatprep.subr.mxu0 0.0
        %2770 = vmatpush1.xpose.msra.mxu0 0.0
        %2771 = vmatprep.subr.mxu0 0.0
        %2772 = vmatpush1.xpose.msra.mxu0 0.0
        %2773 = vmatprep.subr.mxu0 0.0
        %2774 = vmatpush1.xpose.msra.mxu0 0.0
        %2775 = vmatprep.subr.mxu0 0.0
        %2776 = vmatpush1.xpose.msra.mxu0 %v2618
        %2777 = vmatprep.subr.mxu0 0.0
        %2778 = vmatpush2.xpose.msra.mxu0 0.0
        %2779 = vmatprep.subr.mxu0 0.0
        %2780 = vmatpush2.xpose.msra.mxu0 0.0
        %2781 = vmatprep.subr.mxu0 0.0
        %2782 = vmatpush2.xpose.msra.mxu0 0.0
        %2783 = vmatprep.subr.mxu0 0.0
        %2784 = vmatpush2.xpose.msra.mxu0 0.0
        %2785 = vmatprep.subr.mxu0 0.0
        %2786 = vmatpush2.xpose.msra.mxu0 0.0
        %2787 = vmatprep.subr.mxu0 0.0
        %2788 = vmatpush2.xpose.msra.mxu0 0.0
        %2789 = vmatprep.subr.mxu0 0.0
        %2790 = vmatpush2.xpose.msra.mxu0 0.0
        %2791 = vmatprep.subr.mxu0 0.0
        %2792 = vmatpush2.xpose.msra.mxu0 0.0
        %2793 = vmatprep.subr.mxu0 0.0
        %2794 = vmatpush2.xpose.msra.mxu0 0.0
        %2795 = vmatprep.subr.mxu0 0.0
        %2796 = vmatpush2.xpose.msra.mxu0 0.0
        %2797 = vmatprep.subr.mxu0 0.0
        %2798 = vmatpush2.xpose.msra.mxu0 0.0
        %2799 = vmatprep.subr.mxu0 0.0
        %2800 = vmatpush2.xpose.msra.mxu0 0.0
        %2801 = vmatprep.subr.mxu0 0.0
        %2802 = vmatpush2.xpose.msra.mxu0 0.0
        %2803 = vmatprep.subr.mxu0 0.0
        %2804 = vmatpush2.xpose.msra.mxu0 0.0
        %2805 = vmatprep.subr.mxu0 0.0
        %2806 = vmatpush2.xpose.msra.mxu0 0.0
        %2807 = vmatprep.subr.mxu0 0.0
        %2808 = vmatpush2.xpose.msra.mxu0 0.0
        %2809 = vmatprep.mubr.f32.mxu0 0.0
        %2810 = vmatmul.mubr.f32.gmra.mxu0 %v2618
        %v2811 = vpop.f32.mrf.mxu0
        %v2812 = vadd.f32 0.0, %v2811
        %v2813 = vpop.f32.mrf.mxu0
        %2814 = vdwg.mxu0
        %v2815 = vadd.f32 %v2608, %v2730
        %v2816 = vmul.f32 %v2812, 2.0
        %v2817 = vsub.f32 %v2815, %v2816
        %v2818 = vmax.f32 %v2817, 0.0
        %v2819 = vmul.f32 %v2818, -0.5
        %v2820 = vmul.f32 %v2819, 1.442695
        %v2821 = vpow.pop %v2820
        %2822 = vxpose.xlu0.b32.start [1/16] %v2742, 128
        %2823 = vxpose.xlu0.b32.cont [2/16] %v2744, 128
        %2824 = vxpose.xlu0.b32.cont [3/16] 0.0, 128
        %2825 = vxpose.xlu0.b32.cont [4/16] 0.0, 128
        %2826 = vxpose.xlu0.b32.cont [5/16] 0.0, 128
        %2827 = vxpose.xlu0.b32.cont [6/16] 0.0, 128
        %2828 = vxpose.xlu0.b32.cont [7/16] 0.0, 128
        %2829 = vxpose.xlu0.b32.cont [8/16] 0.0, 128
        %2830 = vxpose.xlu0.b32.cont [9/16] 0.0, 128
        %2831 = vxpose.xlu0.b32.cont [10/16] 0.0, 128
        %2832 = vxpose.xlu0.b32.cont [11/16] 0.0, 128
        %2833 = vxpose.xlu0.b32.cont [12/16] 0.0, 128
        %2834 = vxpose.xlu0.b32.cont [13/16] 0.0, 128
        %2835 = vxpose.xlu0.b32.cont [14/16] 0.0, 128
        %2836 = vxpose.xlu0.b32.cont [15/16] 0.0, 128
        %2837 = vxpose.xlu0.b32.end [16/16] 0.0, 128
        %v2838 = vpop.trf.xlu0
        %v2839 = vpop.trf.xlu0
        %v2840 = vpop.trf.xlu0
        %v2841 = vpop.trf.xlu0
        %v2842 = vpop.trf.xlu0
        %v2843 = vpop.trf.xlu0
        %v2844 = vpop.trf.xlu0
        %v2845 = vpop.trf.xlu0
        %v2846 = vpop.trf.xlu0
        %v2847 = vpop.trf.xlu0
        %v2848 = vpop.trf.xlu0
        %v2849 = vpop.trf.xlu0
        %v2850 = vpop.trf.xlu0
        %v2851 = vpop.trf.xlu0
        %v2852 = vpop.trf.xlu0
        %v2853 = vpop.trf.xlu0
        %2854 = vrot.lane.b32.xlu0 %v726, 112
        %v2855 = vpop.permute.xlu0 %2854
        %2856 = vrot.lane.b32.xlu0 %v727, 112
        %v2857 = vpop.permute.xlu0 %2856
        %v2861 = vsel %vm1434, %v2838, 0
        %2863 = vmatprep.subr.mxu0 0.0
        %2864 = vmatpush1.msra.mxu0 0.0
        %2865 = vmatprep.subr.mxu0 0.0
        %2866 = vmatpush1.msra.mxu0 0.0
        %2867 = vmatprep.subr.mxu0 0.0
        %2868 = vmatpush1.msra.mxu0 0.0
        %2869 = vmatprep.subr.mxu0 0.0
        %2870 = vmatpush1.msra.mxu0 0.0
        %2871 = vmatprep.subr.mxu0 0.0
        %2872 = vmatpush1.msra.mxu0 0.0
        %2873 = vmatprep.subr.mxu0 0.0
        %2874 = vmatpush1.msra.mxu0 0.0
        %2875 = vmatprep.subr.mxu0 0.0
        %2876 = vmatpush1.msra.mxu0 0.0
        %2877 = vmatprep.subr.mxu0 0.0
        %2878 = vmatpush1.msra.mxu0 0.0
        %2879 = vmatprep.subr.mxu0 0.0
        %2880 = vmatpush1.msra.mxu0 0.0
        %2881 = vmatprep.subr.mxu0 0.0
        %2882 = vmatpush1.msra.mxu0 0.0
        %2883 = vmatprep.subr.mxu0 0.0
        %2884 = vmatpush1.msra.mxu0 0.0
        %2885 = vmatprep.subr.mxu0 0.0
        %2886 = vmatpush1.msra.mxu0 0.0
        %2887 = vmatprep.subr.mxu0 0.0
        %2888 = vmatpush1.msra.mxu0 0.0
        %2889 = vmatprep.subr.mxu0 0.0
        %2890 = vmatpush1.msra.mxu0 0.0
        %2891 = vmatprep.subr.mxu0 0.0
        %2892 = vmatpush1.msra.mxu0 %v2857
        %2893 = vmatprep.subr.mxu0 0.0
        %2894 = vmatpush1.msra.mxu0 %v2855
        %2895 = vmatprep.subr.mxu0 0.0
        %2896 = vmatpush2.msra.mxu0 0.0
        %2897 = vmatprep.subr.mxu0 0.0
        %2898 = vmatpush2.msra.mxu0 0.0
        %2899 = vmatprep.subr.mxu0 0.0
        %2900 = vmatpush2.msra.mxu0 0.0
        %2901 = vmatprep.subr.mxu0 0.0
        %2902 = vmatpush2.msra.mxu0 0.0
        %2903 = vmatprep.subr.mxu0 0.0
        %2904 = vmatpush2.msra.mxu0 0.0
        %2905 = vmatprep.subr.mxu0 0.0
        %2906 = vmatpush2.msra.mxu0 0.0
        %2907 = vmatprep.subr.mxu0 0.0
        %2908 = vmatpush2.msra.mxu0 0.0
        %2909 = vmatprep.subr.mxu0 0.0
        %2910 = vmatpush2.msra.mxu0 0.0
        %2911 = vmatprep.subr.mxu0 0.0
        %2912 = vmatpush2.msra.mxu0 0.0
        %2913 = vmatprep.subr.mxu0 0.0
        %2914 = vmatpush2.msra.mxu0 0.0
        %2915 = vmatprep.subr.mxu0 0.0
        %2916 = vmatpush2.msra.mxu0 0.0
        %2917 = vmatprep.subr.mxu0 0.0
        %2918 = vmatpush2.msra.mxu0 0.0
        %2919 = vmatprep.subr.mxu0 0.0
        %2920 = vmatpush2.msra.mxu0 0.0
        %2921 = vmatprep.subr.mxu0 0.0
        %2922 = vmatpush2.msra.mxu0 0.0
        %2923 = vmatprep.subr.mxu0 0.0
        %2924 = vmatpush2.msra.mxu0 0.0
        %2925 = vmatprep.subr.mxu0 0.0
        %2926 = vmatpush2.msra.mxu0 0.0
        %2927 = vmatprep.mubr.f32.mxu0 0.0
        %2928 = vmatmul.mubr.f32.gmra.mxu0 %v2861
        %v2929 = vpop.f32.mrf.mxu0
        %v2930 = vadd.f32 0.0, %v2929
        %v2931 = vpop.f32.mrf.mxu0
        %2932 = vdwg.mxu0
        %2935 = vrot.lane.b32.xlu0 %v2742, 8
        %v2936 = vpop.permute.xlu0 %2935
        %2937 = vrot.lane.b32.xlu0 %v2744, 8
        %v2938 = vpop.permute.xlu0 %2937
        %vm2941 = vcmask 97344
        %2942 = vst.msk [vmem:[%s499] sm:$0xff] %vm2941, %v2936
        %2943 = vst.msk [vmem:[%s499 + $0x8] sm:$0xff] %vm2941, %v2938
        %s2944 = scalar_lea.vmem %s506, 8 [#allocation10]
        %2945 = vst.msk [vmem:[%s2944] sm:$0xf] %vm1511, %v2821
        %2947 = vrot.lane.b32.xlu0 %v2930, 16
        %v2948 = vpop.permute.xlu0 %2947
        %vm2950 = vcmask 191616
        %2951 = vst.msk [vmem:[%s513] sm:$0xf] %vm2950, %v2948
        %v2952 = vld [vmem:[#allocation8] sm:$0xff]
        %v2953 = vld [vmem:[%s820] sm:$0xff]
        %2954 = vrot.lane.b32.xlu0 %v814, 104
        %v2955 = vpop.permute.xlu0 %2954
        %v2956 = vsel %vm822, %v2955, 0
        %2958 = vmatprep.subr.mxu0 0.0
        %2959 = vmatpush1.msra.mxu0 0.0
        %2960 = vmatprep.subr.mxu0 0.0
        %2961 = vmatpush1.msra.mxu0 0.0
        %2962 = vmatprep.subr.mxu0 0.0
        %2963 = vmatpush1.msra.mxu0 0.0
        %2964 = vmatprep.subr.mxu0 0.0
        %2965 = vmatpush1.msra.mxu0 0.0
        %2966 = vmatprep.subr.mxu0 0.0
        %2967 = vmatpush1.msra.mxu0 0.0
        %2968 = vmatprep.subr.mxu0 0.0
        %2969 = vmatpush1.msra.mxu0 0.0
        %2970 = vmatprep.subr.mxu0 0.0
        %2971 = vmatpush1.msra.mxu0 0.0
        %2972 = vmatprep.subr.mxu0 0.0
        %2973 = vmatpush1.msra.mxu0 0.0
        %2974 = vmatprep.subr.mxu0 0.0
        %2975 = vmatpush1.msra.mxu0 0.0
        %2976 = vmatprep.subr.mxu0 0.0
        %2977 = vmatpush1.msra.mxu0 0.0
        %2978 = vmatprep.subr.mxu0 0.0
        %2979 = vmatpush1.msra.mxu0 0.0
        %2980 = vmatprep.subr.mxu0 0.0
        %2981 = vmatpush1.msra.mxu0 0.0
        %2982 = vmatprep.subr.mxu0 0.0
        %2983 = vmatpush1.msra.mxu0 0.0
        %2984 = vmatprep.subr.mxu0 0.0
        %2985 = vmatpush1.msra.mxu0 0.0
        %2986 = vmatprep.subr.mxu0 0.0
        %2987 = vmatpush1.msra.mxu0 0.0
        %2988 = vmatprep.subr.mxu0 0.0
        %2989 = vmatpush1.msra.mxu0 %v2953
        %2990 = vmatprep.subr.mxu0 0.0
        %2991 = vmatpush2.msra.mxu0 0.0
        %2992 = vmatprep.subr.mxu0 0.0
        %2993 = vmatpush2.msra.mxu0 0.0
        %2994 = vmatprep.subr.mxu0 0.0
        %2995 = vmatpush2.msra.mxu0 0.0
        %2996 = vmatprep.subr.mxu0 0.0
        %2997 = vmatpush2.msra.mxu0 0.0
        %2998 = vmatprep.subr.mxu0 0.0
        %2999 = vmatpush2.msra.mxu0 0.0
        %3000 = vmatprep.subr.mxu0 0.0
        %3001 = vmatpush2.msra.mxu0 0.0
        %3002 = vmatprep.subr.mxu0 0.0
        %3003 = vmatpush2.msra.mxu0 0.0
        %3004 = vmatprep.subr.mxu0 0.0
        %3005 = vmatpush2.msra.mxu0 0.0
        %3006 = vmatprep.subr.mxu0 0.0
        %3007 = vmatpush2.msra.mxu0 0.0
        %3008 = vmatprep.subr.mxu0 0.0
        %3009 = vmatpush2.msra.mxu0 0.0
        %3010 = vmatprep.subr.mxu0 0.0
        %3011 = vmatpush2.msra.mxu0 0.0
        %3012 = vmatprep.subr.mxu0 0.0
        %3013 = vmatpush2.msra.mxu0 0.0
        %3014 = vmatprep.subr.mxu0 0.0
        %3015 = vmatpush2.msra.mxu0 0.0
        %3016 = vmatprep.subr.mxu0 0.0
        %3017 = vmatpush2.msra.mxu0 0.0
        %3018 = vmatprep.subr.mxu0 0.0
        %3019 = vmatpush2.msra.mxu0 0.0
        %3020 = vmatprep.subr.mxu0 0.0
        %3021 = vmatpush2.msra.mxu0 0.0
        %3022 = vmatprep.mubr.f32.mxu0 0.0
        %3023 = vmatmul.mubr.f32.gmra.mxu0 %v2956
        %v3024 = vpop.f32.mrf.mxu0
        %v3025 = vadd.f32 0.0, %v3024
        %v3026 = vpop.f32.mrf.mxu0
        %3027 = vdwg.mxu0
        %3028 = vrot.lane.b32.xlu0 %v812, 104
        %v3029 = vpop.permute.xlu0 %3028
        %v3030 = vsel %vm822, %v3029, 0
        %3032 = vmatprep.subr.mxu0 0.0
        %3033 = vmatpush1.msra.mxu0 0.0
        %3034 = vmatprep.subr.mxu0 0.0
        %3035 = vmatpush1.msra.mxu0 0.0
        %3036 = vmatprep.subr.mxu0 0.0
        %3037 = vmatpush1.msra.mxu0 0.0
        %3038 = vmatprep.subr.mxu0 0.0
        %3039 = vmatpush1.msra.mxu0 0.0
        %3040 = vmatprep.subr.mxu0 0.0
        %3041 = vmatpush1.msra.mxu0 0.0
        %3042 = vmatprep.subr.mxu0 0.0
        %3043 = vmatpush1.msra.mxu0 0.0
        %3044 = vmatprep.subr.mxu0 0.0
        %3045 = vmatpush1.msra.mxu0 0.0
        %3046 = vmatprep.subr.mxu0 0.0
        %3047 = vmatpush1.msra.mxu0 0.0
        %3048 = vmatprep.subr.mxu0 0.0
        %3049 = vmatpush1.msra.mxu0 0.0
        %3050 = vmatprep.subr.mxu0 0.0
        %3051 = vmatpush1.msra.mxu0 0.0
        %3052 = vmatprep.subr.mxu0 0.0
        %3053 = vmatpush1.msra.mxu0 0.0
        %3054 = vmatprep.subr.mxu0 0.0
        %3055 = vmatpush1.msra.mxu0 0.0
        %3056 = vmatprep.subr.mxu0 0.0
        %3057 = vmatpush1.msra.mxu0 0.0
        %3058 = vmatprep.subr.mxu0 0.0
        %3059 = vmatpush1.msra.mxu0 0.0
        %3060 = vmatprep.subr.mxu0 0.0
        %3061 = vmatpush1.msra.mxu0 0.0
        %3062 = vmatprep.subr.mxu0 0.0
        %3063 = vmatpush1.msra.mxu0 %v2952
        %3064 = vmatprep.subr.mxu0 0.0
        %3065 = vmatpush2.msra.mxu0 0.0
        %3066 = vmatprep.subr.mxu0 0.0
        %3067 = vmatpush2.msra.mxu0 0.0
        %3068 = vmatprep.subr.mxu0 0.0
        %3069 = vmatpush2.msra.mxu0 0.0
        %3070 = vmatprep.subr.mxu0 0.0
        %3071 = vmatpush2.msra.mxu0 0.0
        %3072 = vmatprep.subr.mxu0 0.0
        %3073 = vmatpush2.msra.mxu0 0.0
        %3074 = vmatprep.subr.mxu0 0.0
        %3075 = vmatpush2.msra.mxu0 0.0
        %3076 = vmatprep.subr.mxu0 0.0
        %3077 = vmatpush2.msra.mxu0 0.0
        %3078 = vmatprep.subr.mxu0 0.0
        %3079 = vmatpush2.msra.mxu0 0.0
        %3080 = vmatprep.subr.mxu0 0.0
        %3081 = vmatpush2.msra.mxu0 0.0
        %3082 = vmatprep.subr.mxu0 0.0
        %3083 = vmatpush2.msra.mxu0 0.0
        %3084 = vmatprep.subr.mxu0 0.0
        %3085 = vmatpush2.msra.mxu0 0.0
        %3086 = vmatprep.subr.mxu0 0.0
        %3087 = vmatpush2.msra.mxu0 0.0
        %3088 = vmatprep.subr.mxu0 0.0
        %3089 = vmatpush2.msra.mxu0 0.0
        %3090 = vmatprep.subr.mxu0 0.0
        %3091 = vmatpush2.msra.mxu0 0.0
        %3092 = vmatprep.subr.mxu0 0.0
        %3093 = vmatpush2.msra.mxu0 0.0
        %3094 = vmatprep.subr.mxu0 0.0
        %3095 = vmatpush2.msra.mxu0 0.0
        %3096 = vmatprep.mubr.f32.mxu0 0.0
        %3097 = vmatmul.mubr.f32.gmra.mxu0 %v3030
        %v3098 = vpop.f32.mrf.mxu0
        %v3099 = vadd.f32 %v3025, %v3098
        %v3100 = vpop.f32.mrf.mxu0
        %3101 = vdwg.mxu0
        %v3102 = vld [vmem:[%s969] sm:$0xff]
        %3103 = vrot.lane.b32.xlu0 %v816, 104
        %v3104 = vpop.permute.xlu0 %3103
        %v3105 = vsel %vm822, %v3104, 0
        %3107 = vmatprep.subr.mxu0 0.0
        %3108 = vmatpush1.msra.mxu0 0.0
        %3109 = vmatprep.subr.mxu0 0.0
        %3110 = vmatpush1.msra.mxu0 0.0
        %3111 = vmatprep.subr.mxu0 0.0
        %3112 = vmatpush1.msra.mxu0 0.0
        %3113 = vmatprep.subr.mxu0 0.0
        %3114 = vmatpush1.msra.mxu0 0.0
        %3115 = vmatprep.subr.mxu0 0.0
        %3116 = vmatpush1.msra.mxu0 0.0
        %3117 = vmatprep.subr.mxu0 0.0
        %3118 = vmatpush1.msra.mxu0 0.0
        %3119 = vmatprep.subr.mxu0 0.0
        %3120 = vmatpush1.msra.mxu0 0.0
        %3121 = vmatprep.subr.mxu0 0.0
        %3122 = vmatpush1.msra.mxu0 0.0
        %3123 = vmatprep.subr.mxu0 0.0
        %3124 = vmatpush1.msra.mxu0 0.0
        %3125 = vmatprep.subr.mxu0 0.0
        %3126 = vmatpush1.msra.mxu0 0.0
        %3127 = vmatprep.subr.mxu0 0.0
        %3128 = vmatpush1.msra.mxu0 0.0
        %3129 = vmatprep.subr.mxu0 0.0
        %3130 = vmatpush1.msra.mxu0 0.0
        %3131 = vmatprep.subr.mxu0 0.0
        %3132 = vmatpush1.msra.mxu0 0.0
        %3133 = vmatprep.subr.mxu0 0.0
        %3134 = vmatpush1.msra.mxu0 0.0
        %3135 = vmatprep.subr.mxu0 0.0
        %3136 = vmatpush1.msra.mxu0 0.0
        %3137 = vmatprep.subr.mxu0 0.0
        %3138 = vmatpush1.msra.mxu0 %v3102
        %3139 = vmatprep.subr.mxu0 0.0
        %3140 = vmatpush2.msra.mxu0 0.0
        %3141 = vmatprep.subr.mxu0 0.0
        %3142 = vmatpush2.msra.mxu0 0.0
        %3143 = vmatprep.subr.mxu0 0.0
        %3144 = vmatpush2.msra.mxu0 0.0
        %3145 = vmatprep.subr.mxu0 0.0
        %3146 = vmatpush2.msra.mxu0 0.0
        %3147 = vmatprep.subr.mxu0 0.0
        %3148 = vmatpush2.msra.mxu0 0.0
        %3149 = vmatprep.subr.mxu0 0.0
        %3150 = vmatpush2.msra.mxu0 0.0
        %3151 = vmatprep.subr.mxu0 0.0
        %3152 = vmatpush2.msra.mxu0 0.0
        %3153 = vmatprep.subr.mxu0 0.0
        %3154 = vmatpush2.msra.mxu0 0.0
        %3155 = vmatprep.subr.mxu0 0.0
        %3156 = vmatpush2.msra.mxu0 0.0
        %3157 = vmatprep.subr.mxu0 0.0
        %3158 = vmatpush2.msra.mxu0 0.0
        %3159 = vmatprep.subr.mxu0 0.0
        %3160 = vmatpush2.msra.mxu0 0.0
        %3161 = vmatprep.subr.mxu0 0.0
        %3162 = vmatpush2.msra.mxu0 0.0
        %3163 = vmatprep.subr.mxu0 0.0
        %3164 = vmatpush2.msra.mxu0 0.0
        %3165 = vmatprep.subr.mxu0 0.0
        %3166 = vmatpush2.msra.mxu0 0.0
        %3167 = vmatprep.subr.mxu0 0.0
        %3168 = vmatpush2.msra.mxu0 0.0
        %3169 = vmatprep.subr.mxu0 0.0
        %3170 = vmatpush2.msra.mxu0 0.0
        %3171 = vmatprep.mubr.f32.mxu0 0.0
        %3172 = vmatmul.mubr.f32.gmra.mxu0 %v3105
        %v3173 = vpop.f32.mrf.mxu0
        %v3174 = vadd.f32 0.0, %v3173
        %v3175 = vpop.f32.mrf.mxu0
        %3176 = vdwg.mxu0
        %v3177 = vadd.f32 %v3099, %v3174
        %v3178 = vld [vmem:[%s1045] sm:$0xff]
        %3179 = vrot.lane.b32.xlu0 %v818, 104
        %v3180 = vpop.permute.xlu0 %3179
        %v3181 = vsel %vm822, %v3180, 0
        %3183 = vmatprep.subr.mxu0 0.0
        %3184 = vmatpush1.msra.mxu0 0.0
        %3185 = vmatprep.subr.mxu0 0.0
        %3186 = vmatpush1.msra.mxu0 0.0
        %3187 = vmatprep.subr.mxu0 0.0
        %3188 = vmatpush1.msra.mxu0 0.0
        %3189 = vmatprep.subr.mxu0 0.0
        %3190 = vmatpush1.msra.mxu0 0.0
        %3191 = vmatprep.subr.mxu0 0.0
        %3192 = vmatpush1.msra.mxu0 0.0
        %3193 = vmatprep.subr.mxu0 0.0
        %3194 = vmatpush1.msra.mxu0 0.0
        %3195 = vmatprep.subr.mxu0 0.0
        %3196 = vmatpush1.msra.mxu0 0.0
        %3197 = vmatprep.subr.mxu0 0.0
        %3198 = vmatpush1.msra.mxu0 0.0
        %3199 = vmatprep.subr.mxu0 0.0
        %3200 = vmatpush1.msra.mxu0 0.0
        %3201 = vmatprep.subr.mxu0 0.0
        %3202 = vmatpush1.msra.mxu0 0.0
        %3203 = vmatprep.subr.mxu0 0.0
        %3204 = vmatpush1.msra.mxu0 0.0
        %3205 = vmatprep.subr.mxu0 0.0
        %3206 = vmatpush1.msra.mxu0 0.0
        %3207 = vmatprep.subr.mxu0 0.0
        %3208 = vmatpush1.msra.mxu0 0.0
        %3209 = vmatprep.subr.mxu0 0.0
        %3210 = vmatpush1.msra.mxu0 0.0
        %3211 = vmatprep.subr.mxu0 0.0
        %3212 = vmatpush1.msra.mxu0 0.0
        %3213 = vmatprep.subr.mxu0 0.0
        %3214 = vmatpush1.msra.mxu0 %v3178
        %3215 = vmatprep.subr.mxu0 0.0
        %3216 = vmatpush2.msra.mxu0 0.0
        %3217 = vmatprep.subr.mxu0 0.0
        %3218 = vmatpush2.msra.mxu0 0.0
        %3219 = vmatprep.subr.mxu0 0.0
        %3220 = vmatpush2.msra.mxu0 0.0
        %3221 = vmatprep.subr.mxu0 0.0
        %3222 = vmatpush2.msra.mxu0 0.0
        %3223 = vmatprep.subr.mxu0 0.0
        %3224 = vmatpush2.msra.mxu0 0.0
        %3225 = vmatprep.subr.mxu0 0.0
        %3226 = vmatpush2.msra.mxu0 0.0
        %3227 = vmatprep.subr.mxu0 0.0
        %3228 = vmatpush2.msra.mxu0 0.0
        %3229 = vmatprep.subr.mxu0 0.0
        %3230 = vmatpush2.msra.mxu0 0.0
        %3231 = vmatprep.subr.mxu0 0.0
        %3232 = vmatpush2.msra.mxu0 0.0
        %3233 = vmatprep.subr.mxu0 0.0
        %3234 = vmatpush2.msra.mxu0 0.0
        %3235 = vmatprep.subr.mxu0 0.0
        %3236 = vmatpush2.msra.mxu0 0.0
        %3237 = vmatprep.subr.mxu0 0.0
        %3238 = vmatpush2.msra.mxu0 0.0
        %3239 = vmatprep.subr.mxu0 0.0
        %3240 = vmatpush2.msra.mxu0 0.0
        %3241 = vmatprep.subr.mxu0 0.0
        %3242 = vmatpush2.msra.mxu0 0.0
        %3243 = vmatprep.subr.mxu0 0.0
        %3244 = vmatpush2.msra.mxu0 0.0
        %3245 = vmatprep.subr.mxu0 0.0
        %3246 = vmatpush2.msra.mxu0 0.0
        %3247 = vmatprep.mubr.f32.mxu0 0.0
        %3248 = vmatmul.mubr.f32.gmra.mxu0 %v3181
        %v3249 = vpop.f32.mrf.mxu0
        %v3250 = vadd.f32 0.0, %v3249
        %v3251 = vpop.f32.mrf.mxu0
        %3252 = vdwg.mxu0
        %v3253 = vadd.f32 %v3177, %v3250
        %v3254 = vsel %vm1121, %v3253, 0.0
        %3255 = vadd.xlane.f32.xlu0 %v3254
        %v3256 = vpop.xlane.xlu0 %3255
        %v3257 = vmul.f32 %v3256, %v1125
        %v3258 = vsub.f32 %v3253, %v3257
        %v3259 = vmul.f32 %v3258, %v3258
        %v3260 = vsel %vm1121, %v3259, 0.0
        %3261 = vadd.xlane.f32.xlu0 %v3260
        %v3262 = vpop.xlane.xlu0 %3261
        %v3263 = vmul.f32 %v3262, %v1125
        %v3264 = vadd.f32 %v3263, 1e-05
        %v3265 = vrsqrt.pop %v3264
        %v3266 = vmul.f32 %v3258, %v3265
        %v3267 = vld [vmem:[%s7] sm:$0x1]
        %v3269 = vlaneseq
        %v3270 = vshrl.u32 %v3269, 7
        %v3271 = vsub.s32 0, %v3270
        %v3272 = vrot.slane %v3267, %v3271
        %v3274 = vmul.f32 %v3266, %v3272
        %v3275 = vld [vmem:[%s8] sm:$0x1]
        %v3277 = vlaneseq
        %v3278 = vshrl.u32 %v3277, 7
        %v3279 = vsub.s32 0, %v3278
        %v3280 = vrot.slane %v3275, %v3279
        %v3282 = vadd.f32 %v3274, %v3280
        %v3283 = vmul.f32 %v3282, 0.70710677
        %v3284 = vand.u32 2147483647, %v3283
        %v3285 = vmul.f32 %v3284, 0.3275911
        %v3286 = vadd.f32 %v3285, 1.0
        %v3287 = vrcp.pop %v3286
        %v3288 = vmul.f32 1.0, %v3287
        %v3289 = vmul.f32 %v3288, 1.0614054
        %v3290 = vadd.f32 %v3289, -1.4531521
        %v3291 = vmul.f32 %v3288, %v3290
        %v3292 = vadd.f32 %v3291, 1.4214138
        %v3293 = vmul.f32 %v3288, %v3292
        %v3294 = vadd.f32 %v3293, -0.28449672
        %v3295 = vmul.f32 %v3288, %v3294
        %v3296 = vadd.f32 %v3295, 0.2548296
        %v3297 = vmul.f32 %v3288, %v3296
        %v3298 = vsub.f32 0.0, %v3284
        %v3299 = vmul.f32 %v3298, %v3284
        %v3300 = vmul.f32 %v3299, 1.442695
        %v3301 = vpow.pop %v3300
        %v3302 = vmul.f32 %v3297, %v3301
        %v3303 = vsub.f32 1.0, %v3302
        %vm3304 = vcmp.lt.f32.partialorder %v3283, 0.0
        %v3305 = vsub.f32 0.0, %v3303
        %v3306 = vsel %vm3304, %v3305, %v3303
        %v3307 = vmul.f32 %v3282, 0.5
        %v3308 = vadd.f32 %v3306, 1.0
        %v3309 = vmul.f32 %v3307, %v3308
        %3310 = vrot.lane.b32.xlu0 %v1179, 104
        %v3311 = vpop.permute.xlu0 %3310
        %3312 = vrot.lane.b32.xlu0 %v1180, 104
        %v3313 = vpop.permute.xlu0 %3312
        %v3316 = vsel %vm822, %v3311, 0.0
        %3317 = vadd.xlane.f32.xlu0 %v3316
        %v3318 = vpop.xlane.xlu0 %3317
        %v3319 = vsel %vm822, %v3313, 0.0
        %3320 = vadd.xlane.f32.xlu0 %v3319
        %v3321 = vpop.xlane.xlu0 %3320
        %v3322 = vmul.f32 %v3309, %v3309
        %v3323 = vsel %vm1121, %v3322, 0.0
        %3324 = vadd.xlane.f32.xlu0 %v3323
        %v3325 = vpop.xlane.xlu0 %3324
        %3326 = vrot.lane.b32.xlu0 %v728, 104
        %v3327 = vpop.permute.xlu0 %3326
        %3328 = vrot.lane.b32.xlu0 %v729, 104
        %v3329 = vpop.permute.xlu0 %3328
        %v3330 = vsel %vm822, %v3327, 0
        %v3332 = vsel %vm822, %v3329, 0
        %v3335 = vsel %vm822, %v3309, 0
        %3337 = vmatprep.subr.mxu0 0.0
        %3338 = vmatpush1.xpose.msra.mxu0 0.0
        %3339 = vmatprep.subr.mxu0 0.0
        %3340 = vmatpush1.xpose.msra.mxu0 0.0
        %3341 = vmatprep.subr.mxu0 0.0
        %3342 = vmatpush1.xpose.msra.mxu0 0.0
        %3343 = vmatprep.subr.mxu0 0.0
        %3344 = vmatpush1.xpose.msra.mxu0 0.0
        %3345 = vmatprep.subr.mxu0 0.0
        %3346 = vmatpush1.xpose.msra.mxu0 0.0
        %3347 = vmatprep.subr.mxu0 0.0
        %3348 = vmatpush1.xpose.msra.mxu0 0.0
        %3349 = vmatprep.subr.mxu0 0.0
        %3350 = vmatpush1.xpose.msra.mxu0 0.0
        %3351 = vmatprep.subr.mxu0 0.0
        %3352 = vmatpush1.xpose.msra.mxu0 0.0
        %3353 = vmatprep.subr.mxu0 0.0
        %3354 = vmatpush1.xpose.msra.mxu0 0.0
        %3355 = vmatprep.subr.mxu0 0.0
        %3356 = vmatpush1.xpose.msra.mxu0 0.0
        %3357 = vmatprep.subr.mxu0 0.0
        %3358 = vmatpush1.xpose.msra.mxu0 0.0
        %3359 = vmatprep.subr.mxu0 0.0
        %3360 = vmatpush1.xpose.msra.mxu0 0.0
        %3361 = vmatprep.subr.mxu0 0.0
        %3362 = vmatpush1.xpose.msra.mxu0 0.0
        %3363 = vmatprep.subr.mxu0 0.0
        %3364 = vmatpush1.xpose.msra.mxu0 0.0
        %3365 = vmatprep.subr.mxu0 0.0
        %3366 = vmatpush1.xpose.msra.mxu0 0.0
        %3367 = vmatprep.subr.mxu0 0.0
        %3368 = vmatpush1.xpose.msra.mxu0 %v3335
        %3369 = vmatprep.subr.mxu0 0.0
        %3370 = vmatpush2.xpose.msra.mxu0 0.0
        %3371 = vmatprep.subr.mxu0 0.0
        %3372 = vmatpush2.xpose.msra.mxu0 0.0
        %3373 = vmatprep.subr.mxu0 0.0
        %3374 = vmatpush2.xpose.msra.mxu0 0.0
        %3375 = vmatprep.subr.mxu0 0.0
        %3376 = vmatpush2.xpose.msra.mxu0 0.0
        %3377 = vmatprep.subr.mxu0 0.0
        %3378 = vmatpush2.xpose.msra.mxu0 0.0
        %3379 = vmatprep.subr.mxu0 0.0
        %3380 = vmatpush2.xpose.msra.mxu0 0.0
        %3381 = vmatprep.subr.mxu0 0.0
        %3382 = vmatpush2.xpose.msra.mxu0 0.0
        %3383 = vmatprep.subr.mxu0 0.0
        %3384 = vmatpush2.xpose.msra.mxu0 0.0
        %3385 = vmatprep.subr.mxu0 0.0
        %3386 = vmatpush2.xpose.msra.mxu0 0.0
        %3387 = vmatprep.subr.mxu0 0.0
        %3388 = vmatpush2.xpose.msra.mxu0 0.0
        %3389 = vmatprep.subr.mxu0 0.0
        %3390 = vmatpush2.xpose.msra.mxu0 0.0
        %3391 = vmatprep.subr.mxu0 0.0
        %3392 = vmatpush2.xpose.msra.mxu0 0.0
        %3393 = vmatprep.subr.mxu0 0.0
        %3394 = vmatpush2.xpose.msra.mxu0 0.0
        %3395 = vmatprep.subr.mxu0 0.0
        %3396 = vmatpush2.xpose.msra.mxu0 0.0
        %3397 = vmatprep.subr.mxu0 0.0
        %3398 = vmatpush2.xpose.msra.mxu0 0.0
        %3399 = vmatprep.subr.mxu0 0.0
        %3400 = vmatpush2.xpose.msra.mxu0 0.0
        %3401 = vmatprep.mubr.f32.mxu0 0.0
        %3402 = vmatmul.mubr.f32.gmra.mxu0 %v3330
        %v3403 = vpop.f32.mrf.mxu0
        %v3404 = vadd.f32 0.0, %v3403
        %v3405 = vpop.f32.mrf.mxu0
        %3406 = vmatprep.mubr.f32.mxu0 0.0
        %3407 = vmatmul.mubr.f32.gmra.mxu0 %v3332
        %v3408 = vpop.f32.mrf.mxu0
        %v3409 = vadd.f32 0.0, %v3408
        %v3410 = vpop.f32.mrf.mxu0
        %3411 = vdwg.mxu0
        %3412 = vxpose.xlu0.b32.start [1/16] %v3325, 128
        %3413 = vxpose.xlu0.b32.cont [2/16] 0.0, 128
        %3414 = vxpose.xlu0.b32.cont [3/16] 0.0, 128
        %3415 = vxpose.xlu0.b32.cont [4/16] 0.0, 128
        %3416 = vxpose.xlu0.b32.cont [5/16] 0.0, 128
        %3417 = vxpose.xlu0.b32.cont [6/16] 0.0, 128
        %3418 = vxpose.xlu0.b32.cont [7/16] 0.0, 128
        %3419 = vxpose.xlu0.b32.cont [8/16] 0.0, 128
        %3420 = vxpose.xlu0.b32.cont [9/16] 0.0, 128
        %3421 = vxpose.xlu0.b32.cont [10/16] 0.0, 128
        %3422 = vxpose.xlu0.b32.cont [11/16] 0.0, 128
        %3423 = vxpose.xlu0.b32.cont [12/16] 0.0, 128
        %3424 = vxpose.xlu0.b32.cont [13/16] 0.0, 128
        %3425 = vxpose.xlu0.b32.cont [14/16] 0.0, 128
        %3426 = vxpose.xlu0.b32.cont [15/16] 0.0, 128
        %3427 = vxpose.xlu0.b32.end [16/16] 0.0, 128
        %v3428 = vpop.trf.xlu0
        %v3429 = vpop.trf.xlu0
        %v3430 = vpop.trf.xlu0
        %v3431 = vpop.trf.xlu0
        %v3432 = vpop.trf.xlu0
        %v3433 = vpop.trf.xlu0
        %v3434 = vpop.trf.xlu0
        %v3435 = vpop.trf.xlu0
        %v3436 = vpop.trf.xlu0
        %v3437 = vpop.trf.xlu0
        %v3438 = vpop.trf.xlu0
        %v3439 = vpop.trf.xlu0
        %v3440 = vpop.trf.xlu0
        %v3441 = vpop.trf.xlu0
        %v3442 = vpop.trf.xlu0
        %v3443 = vpop.trf.xlu0
        %v3444 = vlaneseq
        %v3445 = vshrl.u32 %v3444, 7
        %v3446 = vsub.s32 0, %v3445
        %v3447 = vrot.slane %v3428, %v3446
        %v3448 = vadd.f32 %v3318, %v3447
        %v3449 = vadd.f32 %v3321, %v3447
        %v3450 = vmul.f32 %v3404, 2.0
        %v3451 = vmul.f32 %v3409, 2.0
        %v3452 = vsub.f32 %v3448, %v3450
        %v3453 = vsub.f32 %v3449, %v3451
        %v3454 = vmax.f32 %v3452, 0.0
        %v3455 = vmax.f32 %v3453, 0.0
        %v3456 = vmul.f32 %v3454, -0.5
        %v3457 = vmul.f32 %v3455, -0.5
        %v3458 = vmul.f32 %v3456, 1.442695
        %v3459 = vpow.pop %v3458
        %v3460 = vmul.f32 %v3457, 1.442695
        %v3461 = vpow.pop %v3460
        %3462 = vmatprep.subr.mxu0 0.0
        %3463 = vmatpush1.xpose.msra.mxu0 0.0
        %3464 = vmatprep.subr.mxu0 0.0
        %3465 = vmatpush1.xpose.msra.mxu0 0.0
        %3466 = vmatprep.subr.mxu0 0.0
        %3467 = vmatpush1.xpose.msra.mxu0 0.0
        %3468 = vmatprep.subr.mxu0 0.0
        %3469 = vmatpush1.xpose.msra.mxu0 0.0
        %3470 = vmatprep.subr.mxu0 0.0
        %3471 = vmatpush1.xpose.msra.mxu0 0.0
        %3472 = vmatprep.subr.mxu0 0.0
        %3473 = vmatpush1.xpose.msra.mxu0 0.0
        %3474 = vmatprep.subr.mxu0 0.0
        %3475 = vmatpush1.xpose.msra.mxu0 0.0
        %3476 = vmatprep.subr.mxu0 0.0
        %3477 = vmatpush1.xpose.msra.mxu0 0.0
        %3478 = vmatprep.subr.mxu0 0.0
        %3479 = vmatpush1.xpose.msra.mxu0 0.0
        %3480 = vmatprep.subr.mxu0 0.0
        %3481 = vmatpush1.xpose.msra.mxu0 0.0
        %3482 = vmatprep.subr.mxu0 0.0
        %3483 = vmatpush1.xpose.msra.mxu0 0.0
        %3484 = vmatprep.subr.mxu0 0.0
        %3485 = vmatpush1.xpose.msra.mxu0 0.0
        %3486 = vmatprep.subr.mxu0 0.0
        %3487 = vmatpush1.xpose.msra.mxu0 0.0
        %3488 = vmatprep.subr.mxu0 0.0
        %3489 = vmatpush1.xpose.msra.mxu0 0.0
        %3490 = vmatprep.subr.mxu0 0.0
        %3491 = vmatpush1.xpose.msra.mxu0 0.0
        %3492 = vmatprep.subr.mxu0 0.0
        %3493 = vmatpush1.xpose.msra.mxu0 %v3335
        %3494 = vmatprep.subr.mxu0 0.0
        %3495 = vmatpush2.xpose.msra.mxu0 0.0
        %3496 = vmatprep.subr.mxu0 0.0
        %3497 = vmatpush2.xpose.msra.mxu0 0.0
        %3498 = vmatprep.subr.mxu0 0.0
        %3499 = vmatpush2.xpose.msra.mxu0 0.0
        %3500 = vmatprep.subr.mxu0 0.0
        %3501 = vmatpush2.xpose.msra.mxu0 0.0
        %3502 = vmatprep.subr.mxu0 0.0
        %3503 = vmatpush2.xpose.msra.mxu0 0.0
        %3504 = vmatprep.subr.mxu0 0.0
        %3505 = vmatpush2.xpose.msra.mxu0 0.0
        %3506 = vmatprep.subr.mxu0 0.0
        %3507 = vmatpush2.xpose.msra.mxu0 0.0
        %3508 = vmatprep.subr.mxu0 0.0
        %3509 = vmatpush2.xpose.msra.mxu0 0.0
        %3510 = vmatprep.subr.mxu0 0.0
        %3511 = vmatpush2.xpose.msra.mxu0 0.0
        %3512 = vmatprep.subr.mxu0 0.0
        %3513 = vmatpush2.xpose.msra.mxu0 0.0
        %3514 = vmatprep.subr.mxu0 0.0
        %3515 = vmatpush2.xpose.msra.mxu0 0.0
        %3516 = vmatprep.subr.mxu0 0.0
        %3517 = vmatpush2.xpose.msra.mxu0 0.0
        %3518 = vmatprep.subr.mxu0 0.0
        %3519 = vmatpush2.xpose.msra.mxu0 0.0
        %3520 = vmatprep.subr.mxu0 0.0
        %3521 = vmatpush2.xpose.msra.mxu0 0.0
        %3522 = vmatprep.subr.mxu0 0.0
        %3523 = vmatpush2.xpose.msra.mxu0 0.0
        %3524 = vmatprep.subr.mxu0 0.0
        %3525 = vmatpush2.xpose.msra.mxu0 0.0
        %3526 = vmatprep.mubr.f32.mxu0 0.0
        %3527 = vmatmul.mubr.f32.gmra.mxu0 %v3335
        %v3528 = vpop.f32.mrf.mxu0
        %v3529 = vadd.f32 0.0, %v3528
        %v3530 = vpop.f32.mrf.mxu0
        %3531 = vdwg.mxu0
        %v3532 = vadd.f32 %v3325, %v3447
        %v3533 = vmul.f32 %v3529, 2.0
        %v3534 = vsub.f32 %v3532, %v3533
        %v3535 = vmax.f32 %v3534, 0.0
        %v3536 = vmul.f32 %v3535, -0.5
        %v3537 = vmul.f32 %v3536, 1.442695
        %v3538 = vpow.pop %v3537
        %3539 = vxpose.xlu0.b32.start [1/16] %v3459, 128
        %3540 = vxpose.xlu0.b32.cont [2/16] %v3461, 128
        %3541 = vxpose.xlu0.b32.cont [3/16] 0.0, 128
        %3542 = vxpose.xlu0.b32.cont [4/16] 0.0, 128
        %3543 = vxpose.xlu0.b32.cont [5/16] 0.0, 128
        %3544 = vxpose.xlu0.b32.cont [6/16] 0.0, 128
        %3545 = vxpose.xlu0.b32.cont [7/16] 0.0, 128
        %3546 = vxpose.xlu0.b32.cont [8/16] 0.0, 128
        %3547 = vxpose.xlu0.b32.cont [9/16] 0.0, 128
        %3548 = vxpose.xlu0.b32.cont [10/16] 0.0, 128
        %3549 = vxpose.xlu0.b32.cont [11/16] 0.0, 128
        %3550 = vxpose.xlu0.b32.cont [12/16] 0.0, 128
        %3551 = vxpose.xlu0.b32.cont [13/16] 0.0, 128
        %3552 = vxpose.xlu0.b32.cont [14/16] 0.0, 128
        %3553 = vxpose.xlu0.b32.cont [15/16] 0.0, 128
        %3554 = vxpose.xlu0.b32.end [16/16] 0.0, 128
        %v3555 = vpop.trf.xlu0
        %v3556 = vpop.trf.xlu0
        %v3557 = vpop.trf.xlu0
        %v3558 = vpop.trf.xlu0
        %v3559 = vpop.trf.xlu0
        %v3560 = vpop.trf.xlu0
        %v3561 = vpop.trf.xlu0
        %v3562 = vpop.trf.xlu0
        %v3563 = vpop.trf.xlu0
        %v3564 = vpop.trf.xlu0
        %v3565 = vpop.trf.xlu0
        %v3566 = vpop.trf.xlu0
        %v3567 = vpop.trf.xlu0
        %v3568 = vpop.trf.xlu0
        %v3569 = vpop.trf.xlu0
        %v3570 = vpop.trf.xlu0
        %3571 = vrot.lane.b32.xlu0 %v726, 104
        %v3572 = vpop.permute.xlu0 %3571
        %3573 = vrot.lane.b32.xlu0 %v727, 104
        %v3574 = vpop.permute.xlu0 %3573
        %v3578 = vsel %vm1434, %v3555, 0
        %3580 = vmatprep.subr.mxu0 0.0
        %3581 = vmatpush1.msra.mxu0 0.0
        %3582 = vmatprep.subr.mxu0 0.0
        %3583 = vmatpush1.msra.mxu0 0.0
        %3584 = vmatprep.subr.mxu0 0.0
        %3585 = vmatpush1.msra.mxu0 0.0
        %3586 = vmatprep.subr.mxu0 0.0
        %3587 = vmatpush1.msra.mxu0 0.0
        %3588 = vmatprep.subr.mxu0 0.0
        %3589 = vmatpush1.msra.mxu0 0.0
        %3590 = vmatprep.subr.mxu0 0.0
        %3591 = vmatpush1.msra.mxu0 0.0
        %3592 = vmatprep.subr.mxu0 0.0
        %3593 = vmatpush1.msra.mxu0 0.0
        %3594 = vmatprep.subr.mxu0 0.0
        %3595 = vmatpush1.msra.mxu0 0.0
        %3596 = vmatprep.subr.mxu0 0.0
        %3597 = vmatpush1.msra.mxu0 0.0
        %3598 = vmatprep.subr.mxu0 0.0
        %3599 = vmatpush1.msra.mxu0 0.0
        %3600 = vmatprep.subr.mxu0 0.0
        %3601 = vmatpush1.msra.mxu0 0.0
        %3602 = vmatprep.subr.mxu0 0.0
        %3603 = vmatpush1.msra.mxu0 0.0
        %3604 = vmatprep.subr.mxu0 0.0
        %3605 = vmatpush1.msra.mxu0 0.0
        %3606 = vmatprep.subr.mxu0 0.0
        %3607 = vmatpush1.msra.mxu0 0.0
        %3608 = vmatprep.subr.mxu0 0.0
        %3609 = vmatpush1.msra.mxu0 %v3574
        %3610 = vmatprep.subr.mxu0 0.0
        %3611 = vmatpush1.msra.mxu0 %v3572
        %3612 = vmatprep.subr.mxu0 0.0
        %3613 = vmatpush2.msra.mxu0 0.0
        %3614 = vmatprep.subr.mxu0 0.0
        %3615 = vmatpush2.msra.mxu0 0.0
        %3616 = vmatprep.subr.mxu0 0.0
        %3617 = vmatpush2.msra.mxu0 0.0
        %3618 = vmatprep.subr.mxu0 0.0
        %3619 = vmatpush2.msra.mxu0 0.0
        %3620 = vmatprep.subr.mxu0 0.0
        %3621 = vmatpush2.msra.mxu0 0.0
        %3622 = vmatprep.subr.mxu0 0.0
        %3623 = vmatpush2.msra.mxu0 0.0
        %3624 = vmatprep.subr.mxu0 0.0
        %3625 = vmatpush2.msra.mxu0 0.0
        %3626 = vmatprep.subr.mxu0 0.0
        %3627 = vmatpush2.msra.mxu0 0.0
        %3628 = vmatprep.subr.mxu0 0.0
        %3629 = vmatpush2.msra.mxu0 0.0
        %3630 = vmatprep.subr.mxu0 0.0
        %3631 = vmatpush2.msra.mxu0 0.0
        %3632 = vmatprep.subr.mxu0 0.0
        %3633 = vmatpush2.msra.mxu0 0.0
        %3634 = vmatprep.subr.mxu0 0.0
        %3635 = vmatpush2.msra.mxu0 0.0
        %3636 = vmatprep.subr.mxu0 0.0
        %3637 = vmatpush2.msra.mxu0 0.0
        %3638 = vmatprep.subr.mxu0 0.0
        %3639 = vmatpush2.msra.mxu0 0.0
        %3640 = vmatprep.subr.mxu0 0.0
        %3641 = vmatpush2.msra.mxu0 0.0
        %3642 = vmatprep.subr.mxu0 0.0
        %3643 = vmatpush2.msra.mxu0 0.0
        %3644 = vmatprep.mubr.f32.mxu0 0.0
        %3645 = vmatmul.mubr.f32.gmra.mxu0 %v3578
        %v3646 = vpop.f32.mrf.mxu0
        %v3647 = vadd.f32 0.0, %v3646
        %v3648 = vpop.f32.mrf.mxu0
        %3649 = vdwg.mxu0
        %3652 = vrot.lane.b32.xlu0 %v3459, 12
        %v3653 = vpop.permute.xlu0 %3652
        %3654 = vrot.lane.b32.xlu0 %v3461, 12
        %v3655 = vpop.permute.xlu0 %3654
        %vm3658 = vcmask 130144
        %3659 = vst.msk [vmem:[%s499] sm:$0xff] %vm3658, %v3653
        %3660 = vst.msk [vmem:[%s499 + $0x8] sm:$0xff] %vm3658, %v3655
        %s3661 = scalar_lea.vmem %s506, 12 [#allocation10]
        %3662 = vst.msk [vmem:[%s3661] sm:$0xf] %vm1511, %v3538
        %3664 = vrot.lane.b32.xlu0 %v3647, 24
        %v3665 = vpop.permute.xlu0 %3664
        %vm3667 = vcmask 257216
        %3668 = vst.msk [vmem:[%s513] sm:$0xf] %vm3667, %v3665
        %s3669 = sand.u32 %s264, 1
        %s3670 = scalar_lea.sflag [#allocation5], %s3669
        %s3671 = sand.u32 %s264, 1
        %s3672 = smul.addr %s3671, 16
        %s3673 = scalar_lea.vmem [#allocation9], %s3672
        %s3674 = sand.u32 %s36, 1
        %s3675 = scalar_lea.sflag [#allocation11], %s3674
        %s3676 = sand.u32 %s290, 1
        %s3677 = smul.addr %s3676, 16
        %s3678 = scalar_lea.vmem [#allocation10], %s3677
        %s3679 = sand.u32 %s36, 1
        %s3680 = scalar_lea.sflag [#allocation11], %s3679
        %s3681 = sand.u32 %s316, 1
        %s3682 = smul.addr %s3681, 4
        %s3683 = scalar_lea.vmem [#allocation12], %s3682
        %s3684 = sand.u32 %s342, 1
        %s3685 = scalar_lea.sflag [#allocation14], %s3684
        %s3686 = sand.u32 %s342, 1
        %s3687 = smul.addr %s3686, 16
        %s3688 = scalar_lea.vmem [#allocation13], %s3687
        // Predicated region
        $region73: #{tpu_custom_call.1} parent=59 // pred_check
          %p3689 = pneg %p274
        $region74: #{tpu_custom_call.1} parent=59 // pred_check_branch
          %3691 = sbr.rel (%p3689) target = $region76
        $region75: #{tpu_custom_call.1} parent=59 // pred_region
          %s3693 = ssub.s32 256, 256
          %3694 = vsyncadd %s3670, %s3693
          %s3695 = smul.addr %s36, 2
          %s3696 = smul.addr %s3695, 128
          %s3697 = scalar_lea.hbm %s10, %s3696
          %s3698 = sshll.u32 %s3673, 4
          %s3699 = int_to_ptr.vmem [resolvable:$true] %s3698
          %3704 = dma.vmem_to_hbm [thread:$0]  %s3699, 256, %s3697, %s3670, 128, 128, 8
        $region76: #{tpu_custom_call.1} parent=59 // pred_fallthru
          _
        // Predicated region
        $region77: #{tpu_custom_call.1} parent=59 // pred_check
          %p3705 = pneg %p300
        $region78: #{tpu_custom_call.1} parent=59 // pred_check_branch
          %3707 = sbr.rel (%p3705) target = $region80
        $region79: #{tpu_custom_call.1} parent=59 // pred_region
          %s3709 = ssub.s32 256, 256
          %3710 = vsyncadd %s3675, %s3709
          %s3711 = smul.addr %s36, 4
          %s3712 = smul.addr %s3711, 64
          %s3713 = scalar_lea.hbm %s11, %s3712
          %s3714 = sshll.u32 %s3678, 4
          %s3715 = int_to_ptr.vmem [resolvable:$true] %s3714
          %3720 = dma.vmem_to_hbm [thread:$0]  %s3715, 256, %s3713, %s3675, 64, 64, 4
        $region80: #{tpu_custom_call.1} parent=59 // pred_fallthru
          _
        // Predicated region
        $region81: #{tpu_custom_call.1} parent=59 // pred_check
          %p3721 = pneg %p326
        $region82: #{tpu_custom_call.1} parent=59 // pred_check_branch
          %3723 = sbr.rel (%p3721) target = $region84
        $region83: #{tpu_custom_call.1} parent=59 // pred_region
          %s3725 = ssub.s32 64, 64
          %3726 = vsyncadd %s3680, %s3725
          %s3727 = smul.addr %s36, 64
          %s3728 = scalar_lea.hbm %s12, %s3727
          %s3730 = sshll.u32 %s3683, 4
          %s3731 = int_to_ptr.vmem [resolvable:$true] %s3730
          %3733 = dma.vmem_to_hbm [thread:$0]  %s3731, 64, %s3728, %s3680
        $region84: #{tpu_custom_call.1} parent=59 // pred_fallthru
          _
        // Predicated region
        $region85: #{tpu_custom_call.1} parent=59 // pred_check
          %p3734 = pneg %p352
        $region86: #{tpu_custom_call.1} parent=59 // pred_check_branch
          %3736 = sbr.rel (%p3734) target = $region88
        $region87: #{tpu_custom_call.1} parent=59 // pred_region
          %s3738 = ssub.s32 256, 256
          %3739 = vsyncadd %s3685, %s3738
          %s3740 = smul.addr %s36, 2
          %s3741 = smul.addr %s3740, 128
          %s3742 = scalar_lea.hbm %s13, %s3741
          %s3743 = sshll.u32 %s3688, 4
          %s3744 = int_to_ptr.vmem [resolvable:$true] %s3743
          %3749 = dma.vmem_to_hbm [thread:$0]  %s3744, 256, %s3742, %s3685, 128, 128, 8
        $region88: #{tpu_custom_call.1} parent=59 // pred_fallthru
          _
      $region60: #{tpu_custom_call.1} parent=5 // pred_fallthru
        _
      %p3750 = scmp.le.s32.totalorder 2, %s31
      // Predicated region
      $region89: #{tpu_custom_call.1} parent=5 // pred_check
        %p3751 = pneg %p3750
      $region90: #{tpu_custom_call.1} parent=5 // pred_check_branch
        %3753 = sbr.rel (%p3751) target = $region92
      $region91: #{tpu_custom_call.1} parent=5 // pred_region
        %s3754 = ssub.s32 %s31, 2
        // Predicated region
        $region93: #{tpu_custom_call.1} parent=91 // pred_check
          %p3755 = pneg %p280
        $region94: #{tpu_custom_call.1} parent=91 // pred_check_branch
          %3757 = sbr.rel (%p3755) target = $region96
        $region95: #{tpu_custom_call.1} parent=91 // pred_region
          %s3758 = sand.u32 %s265, 1
          %s3759 = scalar_lea.sflag [#allocation5], %s3758
          %s3760 = sand.u32 %s265, 1
          %s3761 = smul.addr %s3760, 16
          %s3762 = scalar_lea.vmem [#allocation9], %s3761
          %3763 = dma.done %s3759, 256
        $region96: #{tpu_custom_call.1} parent=91 // pred_fallthru
          _
        // Predicated region
        $region97: #{tpu_custom_call.1} parent=91 // pred_check
          %p3764 = pneg %p306
        $region98: #{tpu_custom_call.1} parent=91 // pred_check_branch
          %3766 = sbr.rel (%p3764) target = $region100
        $region99: #{tpu_custom_call.1} parent=91 // pred_region
          %s3767 = sand.u32 %s37, 1
          %s3768 = scalar_lea.sflag [#allocation11], %s3767
          %s3769 = sand.u32 %s291, 1
          %s3770 = smul.addr %s3769, 16
          %s3771 = scalar_lea.vmem [#allocation10], %s3770
          %3772 = dma.done %s3768, 256
        $region100: #{tpu_custom_call.1} parent=91 // pred_fallthru
          _
        // Predicated region
        $region101: #{tpu_custom_call.1} parent=91 // pred_check
          %p3773 = pneg %p332
        $region102: #{tpu_custom_call.1} parent=91 // pred_check_branch
          %3775 = sbr.rel (%p3773) target = $region104
        $region103: #{tpu_custom_call.1} parent=91 // pred_region
          %s3776 = sand.u32 %s37, 1
          %s3777 = scalar_lea.sflag [#allocation11], %s3776
          %s3778 = sand.u32 %s317, 1
          %s3779 = smul.addr %s3778, 4
          %s3780 = scalar_lea.vmem [#allocation12], %s3779
          %3781 = dma.done %s3777, 64
        $region104: #{tpu_custom_call.1} parent=91 // pred_fallthru
          _
        // Predicated region
        $region105: #{tpu_custom_call.1} parent=91 // pred_check
          %p3782 = pneg %p358
        $region106: #{tpu_custom_call.1} parent=91 // pred_check_branch
          %3784 = sbr.rel (%p3782) target = $region108
        $region107: #{tpu_custom_call.1} parent=91 // pred_region
          %s3785 = sand.u32 %s343, 1
          %s3786 = scalar_lea.sflag [#allocation14], %s3785
          %s3787 = sand.u32 %s343, 1
          %s3788 = smul.addr %s3787, 16
          %s3789 = scalar_lea.vmem [#allocation13], %s3788
          %3790 = dma.done %s3786, 256
        $region108: #{tpu_custom_call.1} parent=91 // pred_fallthru
          _
      $region92: #{tpu_custom_call.1} parent=5 // pred_fallthru
        _
    $region6: #{tpu_custom_call.1} parent=1 // loop_footer
      %s35 = sadd.s32 1, %s31
    $region7: #{tpu_custom_call.1} parent=1 // loop_footer_branch
      %30 = sbr.rel target = $region3
    $region8: #{tpu_custom_call.1} parent=1 // loop_exit
      _
    %3791 = vsyncpa [#allocation4], 1
    %s3792 = scalar_lea.sflag [#allocation4], 1
    %3793 = vsyncpa %s3792, 1
    %3794 = vsyncpa [#allocation7], 1
    %3795 = vsyncpa [#allocation5], 1
    %s3796 = scalar_lea.sflag [#allocation5], 1
    %3797 = vsyncpa %s3796, 1
    %3798 = vsyncpa [#allocation11], 1
    %s3799 = scalar_lea.sflag [#allocation11], 1
    %3800 = vsyncpa %s3799, 1
    %3801 = vsyncpa [#allocation14], 1
    %s3802 = scalar_lea.sflag [#allocation14], 1
    %3803 = vsyncpa %s3802, 1

</llo_original>
